<compile_context>
chip_gen: v5e
topology: v5e:2x2
jax: 0.10.0
libtpu: 0.0.40
codegen_flags: <defaults>
</compile_context>

<pallas_src>
import functools

import jax
import jax.numpy as jnp
from jax.experimental import pallas as pl
from jax.experimental.pallas import tpu as pltpu

IN_FEATURES = 784
K_PAD = 896          # 784 rounded up to a multiple of 128 (lane-aligned K)
HIDDEN = 1024
OUT_FEATURES = 10
OUT_PAD = 128        # lane-dense padded output width


def _round_up(n, m):
    return ((n + m - 1) // m) * m


def _quantized_mlp_kernel(x_ref, w1_ref, w2_ref, o_ref, *, inv_scale):
    # fc1: (tm, K_PAD) bf16 @ (K_PAD, 1024) bf16 -> f32 accumulation on the MXU.
    h = jnp.dot(x_ref[...], w1_ref[...], preferred_element_type=jnp.float32)
    # relu
    h = jnp.maximum(h, 0.0)
    # (x.int() >> shiftM).float(): for x >= 0, trunc-then-shift == floor(x / 2**shiftM).
    # 2**-shiftM is an exact power of two, so the multiply introduces no rounding.
    h = jnp.floor(h * inv_scale)
    # clip(0, 255); h is already >= 0.
    h = jnp.minimum(h, 255.0)
    # fc2: quantized integers 0..255 are exactly representable in bf16.
    o_ref[...] = jnp.dot(h.astype(jnp.bfloat16), w2_ref[...],
                         preferred_element_type=jnp.float32)


def quantized_model_forward(x, w1_t, w2_t, shiftM, *, tm=512):
    """x: anything that flattens to (N, 784). w1_t: (784, 1024). w2_t: (1024, 10).

    shiftM is treated as a static (compile-time) Python int, matching the
    PyTorch module where it is fixed at construction time.
    """
    x2d = x.reshape(-1, IN_FEATURES)
    N = x2d.shape[0]

    # --- Adaptive row tile -------------------------------------------------
    # * cap at the requested tm (default 512; MXU-filling, ~8-9 MiB VMEM)
    # * small batches: only pad up to the 16-row bf16 sublane pack
    # * medium batches: split into >= 2 tiles so v7x's 2 TensorCores both get work
    tm_cap = int(tm)
    if N >= 2 * tm_cap:
        tm_eff = tm_cap
    elif N > 32:
        tm_eff = min(tm_cap, _round_up(pl.cdiv(N, 2), 16))
    else:
        tm_eff = _round_up(max(N, 1), 16)

    n_tiles = pl.cdiv(N, tm_eff)
    Np = n_tiles * tm_eff

    # Zero-pad the batch up to a multiple of the row tile and the contraction
    # dim up to K_PAD (both exact: padded rows/cols contribute zeros and padded
    # rows are sliced away below). Pad w2 to a lane-dense 128-wide output.
    x2d = jnp.pad(x2d, ((0, Np - N), (0, K_PAD - IN_FEATURES)))
    x_bf = x2d.astype(jnp.bfloat16)
    w1_bf = jnp.pad(w1_t, ((0, K_PAD - IN_FEATURES), (0, 0))).astype(jnp.bfloat16)
    w2_bf = jnp.pad(w2_t, ((0, 0), (0, OUT_PAD - OUT_FEATURES))).astype(jnp.bfloat16)

    kernel = functools.partial(_quantized_mlp_kernel,
                               inv_scale=1.0 / float(1 << int(shiftM)))

    flops = 2 * Np * K_PAD * HIDDEN + 2 * Np * HIDDEN * OUT_PAD
    bytes_accessed = (Np * K_PAD * 2              # x (bf16)
                      + K_PAD * HIDDEN * 2        # w1 (bf16)
                      + HIDDEN * OUT_PAD * 2      # w2 (bf16)
                      + Np * OUT_PAD * 4)         # out (f32)

    out = pl.pallas_call(
        kernel,
        out_shape=jax.ShapeDtypeStruct((Np, OUT_PAD), jnp.float32),
        grid_spec=pltpu.PrefetchScalarGridSpec(
            num_scalar_prefetch=0,
            grid=(n_tiles,),
            in_specs=[
                pl.BlockSpec((tm_eff, K_PAD), lambda i: (i, 0)),      # x rows
                pl.BlockSpec((K_PAD, HIDDEN), lambda i: (0, 0)),      # fc1 W (resident)
                pl.BlockSpec((HIDDEN, OUT_PAD), lambda i: (0, 0)),    # fc2 W (resident, padded)
            ],
            out_specs=pl.BlockSpec((tm_eff, OUT_PAD), lambda i: (i, 0)),
        ),
        compiler_params=pltpu.CompilerParams(
            dimension_semantics=("parallel",),
            vmem_limit_bytes=32 * 1024 * 1024,
        ),
        cost_estimate=pl.CostEstimate(flops=flops, transcendentals=0,
                                      bytes_accessed=bytes_accessed),
    )(x_bf, w1_bf, w2_bf)

    # Drop batch padding and the lane padding of the output.
    return out[:N, :OUT_FEATURES]


def _reference_forward(x, w1_t, w2_t, shiftM):
    # Pure-JAX reference with the same bf16-operand / f32-accumulate matmul
    # semantics as the kernel (the quantization step itself is exact either way).
    x = x.reshape(-1, IN_FEATURES).astype(jnp.bfloat16)
    h = jnp.dot(x, w1_t.astype(jnp.bfloat16), preferred_element_type=jnp.float32)
    h = jnp.maximum(h, 0.0)
    h = jnp.floor(h / float(1 << int(shiftM)))
    h = jnp.clip(h, 0.0, 255.0)
    return jnp.dot(h.astype(jnp.bfloat16), w2_t.astype(jnp.bfloat16),
                   preferred_element_type=jnp.float32)


if __name__ == "__main__":
    key = jax.random.PRNGKey(0)
    kx, k1, k2 = jax.random.split(key, 3)

    shiftM = 2
    N = 8  # small batch (adaptive tile pads this to just 16 rows internally)

    # Deterministic inputs / parameters (PyTorch Linear default init style, but
    # scaled up so the integer quantization path is non-trivial).
    x = jax.random.uniform(kx, (N, 1, 28, 28), jnp.float32, 0.0, 8.0)
    bound1 = 1.0 / jnp.sqrt(784.0)
    bound2 = 1.0 / jnp.sqrt(1024.0)
    # weights stored as (in, out) == PyTorch weight.T
    w1_t = jax.random.uniform(k1, (784, 1024), jnp.float32, -bound1, bound1) * 8.0
    w2_t = jax.random.uniform(k2, (1024, 10), jnp.float32, -bound2, bound2)

    out = quantized_model_forward(x, w1_t, w2_t, shiftM)
    out = jax.block_until_ready(out)

    ref = _reference_forward(x, w1_t, w2_t, shiftM)
    assert out.shape == (N, 10)
    # Modest tolerance: a single +-1 flip of a quantized value at a floor
    # boundary moves the output by at most ~|w2| (~0.03).
    assert jnp.allclose(out, ref, atol=5e-2, rtol=5e-2), "mismatch vs reference"

    print("KERNEL_OK")
</pallas_src>

<mosaic_0001>
module attributes {stable_mosaic.version = 11 : i64} {
  func.func @_quantized_mlp_kernel(%arg0: i32, %arg1: memref<16x896xbf16, #tpu.memory_space<vmem>>, %arg2: memref<896x1024xbf16, #tpu.memory_space<vmem>>, %arg3: memref<1024x128xbf16, #tpu.memory_space<vmem>>, %arg4: memref<16x128xf32, #tpu.memory_space<vmem>>) attributes {dimension_semantics = [#tpu.dimension_semantics<parallel>], iteration_bounds = array<i64: 1>, scalar_prefetch = 0 : i64, scratch_operands = 0 : i64, tpu.core_type = #tpu.core_type<tc>, window_params = [{transform_indices = @transform_0, window_bounds = array<i64: 16, 896>}, {pipeline_mode = #tpu.pipeline_mode<synchronous>, transform_indices = @transform_1, window_bounds = array<i64: 896, 1024>}, {pipeline_mode = #tpu.pipeline_mode<synchronous>, transform_indices = @transform_2, window_bounds = array<i64: 1024, 128>}, {transform_indices = @transform_3, window_bounds = array<i64: 16, 128>}]} {
    %c0 = arith.constant 0 : index
    %c0_0 = arith.constant 0 : index
    %0 = vector.load %arg1[%c0, %c0_0] : memref<16x896xbf16, #tpu.memory_space<vmem>>, vector<16x896xbf16>
    %c0_1 = arith.constant 0 : index
    %c0_2 = arith.constant 0 : index
    %1 = vector.load %arg2[%c0_1, %c0_2] : memref<896x1024xbf16, #tpu.memory_space<vmem>>, vector<896x1024xbf16>
    %cst = arith.constant dense<0.000000e+00> : vector<16x1024xf32>
    %2 = tpu.matmul %0, %1, %cst {dimension_numbers = #tpu.dot_dimension_numbers<[1], [0], [0], [1], [0, 0, 1, 1], [], []>} : vector<16x896xbf16>, vector<896x1024xbf16>, vector<16x1024xf32> -> vector<16x1024xf32>
    %cst_3 = arith.constant 0.000000e+00 : f32
    %3 = vector.broadcast %cst_3 : f32 to vector<16x1024xf32>
    %4 = arith.maximumf %2, %3 : vector<16x1024xf32>
    %cst_4 = arith.constant 2.500000e-01 : f32
    %5 = vector.broadcast %cst_4 : f32 to vector<16x1024xf32>
    %6 = arith.mulf %4, %5 : vector<16x1024xf32>
    %7 = math.floor %6 : vector<16x1024xf32>
    %cst_5 = arith.constant 2.550000e+02 : f32
    %8 = vector.broadcast %cst_5 : f32 to vector<16x1024xf32>
    %9 = arith.minimumf %7, %8 : vector<16x1024xf32>
    %10 = arith.truncf %9 : vector<16x1024xf32> to vector<16x1024xbf16>
    %c0_6 = arith.constant 0 : index
    %c0_7 = arith.constant 0 : index
    %11 = vector.load %arg3[%c0_6, %c0_7] : memref<1024x128xbf16, #tpu.memory_space<vmem>>, vector<1024x128xbf16>
    %cst_8 = arith.constant dense<0.000000e+00> : vector<16x128xf32>
    %12 = tpu.matmul %10, %11, %cst_8 {dimension_numbers = #tpu.dot_dimension_numbers<[1], [0], [0], [1], [0, 0, 1, 1], [], []>} : vector<16x1024xbf16>, vector<1024x128xbf16>, vector<16x128xf32> -> vector<16x128xf32>
    %c0_9 = arith.constant 0 : index
    %c0_10 = arith.constant 0 : index
    %13 = vector.load %arg4[%c0_9, %c0_10] : memref<16x128xf32, #tpu.memory_space<vmem>>, vector<16x128xf32>
    tpu.vector_store %arg4[%c0_9, %c0_10], %12 {strides = array<i32>} : memref<16x128xf32, #tpu.memory_space<vmem>>, vector<16x128xf32>,
    return
  }
  func.func @transform_0(%arg0: i32) -> (i32, i32) {
    %c0_i32 = arith.constant 0 : i32
    %c0_i32_0 = arith.constant 0 : i32
    return %arg0, %c0_i32 : i32, i32
  }
  func.func @transform_1(%arg0: i32) -> (i32, i32) {
    %c0_i32 = arith.constant 0 : i32
    %c0_i32_0 = arith.constant 0 : i32
    %c0_i32_1 = arith.constant 0 : i32
    return %c0_i32, %c0_i32_0 : i32, i32
  }
  func.func @transform_2(%arg0: i32) -> (i32, i32) {
    %c0_i32 = arith.constant 0 : i32
    %c0_i32_0 = arith.constant 0 : i32
    %c0_i32_1 = arith.constant 0 : i32
    return %c0_i32, %c0_i32_0 : i32, i32
  }
  func.func @transform_3(%arg0: i32) -> (i32, i32) {
    %c0_i32 = arith.constant 0 : i32
    %c0_i32_0 = arith.constant 0 : i32
    return %arg0, %c0_i32 : i32, i32
  }
}

</mosaic_0001>

<llo_original>
// kernel: tpu_custom_call.1
$region0: #{tpu_custom_call.1}
  #allocation0 [shape = 'u32[]', space=smem, size = 0x4, offset = 0x4, fixed_abs, tag = 'smem constant byte address 0x4 - core index']
  #allocation1 [shape = 'u32[72,128]{1,0:T(1,128)}', space=vmem, size = 0x9000, scoped, tag = 'internal scratch']
  %s0 = inlined_call_operand.hbm [shape: bf16[16,896], index: 0, kind: input, shape index: {}]
  %s1 = inlined_call_operand.hbm [shape: bf16[896,1024], index: 1, kind: input, shape index: {}]
  %s2 = inlined_call_operand.hbm [shape: bf16[1024,128], index: 2, kind: input, shape index: {}]
  %s3 = inlined_call_operand.hbm [shape: f32[16,128], index: 3, kind: output, shape index: {}]
  %s4 = sld [smem:[#allocation0]]
  $region34: #{tpu_custom_call.1} parent=0
    _
  %s6 = ssub.s32 1, %s4
  %s7 = scalar_select 0, %s6, %s4
  $region1: #{tpu_custom_call.1} parent=0
    #allocation2 [shape = 'u8[28672]{0}', space=vmem, size = 0x7000, scoped, tag = 'input window, operand 0, single buffered']
    #allocation3 [shape = 's32[1]{0}', space=sflag, size = 0x4, scoped, tag = 'scoped memory for tpu_custom_call.1']
    #allocation4 [shape = 's32[1]{0}', space=sflag, size = 0x4, scoped, tag = 'scoped memory for tpu_custom_call.1']
    #allocation5 [shape = 'u8[1835008]{0}', space=vmem, size = 0x1c0000, scoped, tag = 'input window, operand 1, single buffered']
    #allocation6 [shape = 's32[1]{0}', space=sflag, size = 0x4, scoped, tag = 'scoped memory for tpu_custom_call.1']
    #allocation7 [shape = 'u8[262144]{0}', space=vmem, size = 0x40000, scoped, tag = 'input window, operand 2, single buffered']
    #allocation8 [shape = 'u8[8192]{0}', space=vmem, size = 0x2000, scoped, tag = 'output window, operand 0, single buffered']
    %8 = vsyncpa [#allocation3], 0
    %9 = vsyncpa [#allocation6], 0
    %10 = vsyncpa [#allocation4], 0
    // Predicated region
    $region2: #{tpu_custom_call.1} parent=1 // pred_check
      _
    $region3: #{tpu_custom_call.1} parent=1 // pred_check_branch
      %12 = sbr.rel (0) target = $region5
    $region4: #{tpu_custom_call.1} parent=1 // pred_region
      %14 = vsyncadd [#allocation3], 0
      %s15 = sshll.u32 %s0, 4
      %s16 = int_to_ptr.hbm [resolvable:$true] %s15
      %s17 = sshll.u32 [#allocation2], 4
      %s18 = int_to_ptr.vmem [resolvable:$true] %s17
      %23 = dma.hbm_to_vmem [thread:$0]  %s16, 896, %s18, [#allocation3], 448, 448, 28
    $region5: #{tpu_custom_call.1} parent=1 // pred_fallthru
      _
    // Predicated region
    $region6: #{tpu_custom_call.1} parent=1 // pred_check
      _
    $region7: #{tpu_custom_call.1} parent=1 // pred_check_branch
      %25 = sbr.rel (0) target = $region9
    $region8: #{tpu_custom_call.1} parent=1 // pred_region
      %27 = vsyncadd [#allocation6], 0
      %s28 = sshll.u32 %s1, 4
      %s29 = int_to_ptr.hbm [resolvable:$true] %s28
      %s30 = sshll.u32 [#allocation5], 4
      %s31 = int_to_ptr.vmem [resolvable:$true] %s30
      %36 = dma.hbm_to_vmem [thread:$0]  %s29, 57344, %s31, [#allocation6], 512, 512, 32
    $region9: #{tpu_custom_call.1} parent=1 // pred_fallthru
      _
    // Predicated region
    $region10: #{tpu_custom_call.1} parent=1 // pred_check
      _
    $region11: #{tpu_custom_call.1} parent=1 // pred_check_branch
      %38 = sbr.rel (0) target = $region13
    $region12: #{tpu_custom_call.1} parent=1 // pred_region
      %40 = vsyncadd [#allocation6], 0
      %s41 = sshll.u32 %s2, 4
      %s42 = int_to_ptr.hbm [resolvable:$true] %s41
      %s43 = sshll.u32 [#allocation7], 4
      %s44 = int_to_ptr.vmem [resolvable:$true] %s43
      %49 = dma.hbm_to_vmem [thread:$0]  %s42, 8192, %s44, [#allocation6], 64, 64, 4
    $region13: #{tpu_custom_call.1} parent=1 // pred_fallthru
      _
    // Predicated region
    $region14: #{tpu_custom_call.1} parent=1 // pred_check
      _
    $region15: #{tpu_custom_call.1} parent=1 // pred_check_branch
      %51 = sbr.rel (0) target = $region17
    $region16: #{tpu_custom_call.1} parent=1 // pred_region
      %53 = dma.done [#allocation3], 896
    $region17: #{tpu_custom_call.1} parent=1 // pred_fallthru
      _
    // Predicated region
    $region18: #{tpu_custom_call.1} parent=1 // pred_check
      _
    $region19: #{tpu_custom_call.1} parent=1 // pred_check_branch
      %55 = sbr.rel (0) target = $region21
    $region20: #{tpu_custom_call.1} parent=1 // pred_region
      %57 = dma.done [#allocation6], 57344
    $region21: #{tpu_custom_call.1} parent=1 // pred_fallthru
      _
    // Predicated region
    $region22: #{tpu_custom_call.1} parent=1 // pred_check
      _
    $region23: #{tpu_custom_call.1} parent=1 // pred_check_branch
      %59 = sbr.rel (0) target = $region25
    $region24: #{tpu_custom_call.1} parent=1 // pred_region
      %61 = dma.done [#allocation6], 8192
    $region25: #{tpu_custom_call.1} parent=1 // pred_fallthru
      _
    %v62 = vld [vmem:[#allocation2] sm:$0xff]
    %v63 = vld [vmem:[#allocation2 + $0x8] sm:$0xff]
    %v64 = vld [vmem:[#allocation2 + $0x10] sm:$0xff]
    %v65 = vld [vmem:[#allocation2 + $0x18] sm:$0xf]
    %v66 = vld [vmem:[#allocation2 + $0x1c] sm:$0xff]
    %v67 = vld [vmem:[#allocation2 + $0x24] sm:$0xff]
    %v68 = vld [vmem:[#allocation2 + $0x2c] sm:$0xff]
    %v69 = vld [vmem:[#allocation2 + $0x34] sm:$0xf]
    %v70 = vld [vmem:[#allocation5] sm:$0xff]
    %v71 = vld [vmem:[#allocation5 + $0x8] sm:$0xff]
    %v72 = vld [vmem:[#allocation5 + $0x10] sm:$0xff]
    %v73 = vld [vmem:[#allocation5 + $0x18] sm:$0xff]
    %v74 = vld [vmem:[#allocation5 + $0x20] sm:$0xff]
    %v75 = vld [vmem:[#allocation5 + $0x28] sm:$0xff]
    %v76 = vld [vmem:[#allocation5 + $0x30] sm:$0xff]
    %v77 = vld [vmem:[#allocation5 + $0x38] sm:$0xff]
    %v78 = vld [vmem:[#allocation5 + $0x40] sm:$0xff]
    %v79 = vld [vmem:[#allocation5 + $0x48] sm:$0xff]
    %v80 = vld [vmem:[#allocation5 + $0x50] sm:$0xff]
    %v81 = vld [vmem:[#allocation5 + $0x58] sm:$0xff]
    %v82 = vld [vmem:[#allocation5 + $0x60] sm:$0xff]
    %v83 = vld [vmem:[#allocation5 + $0x68] sm:$0xff]
    %v84 = vld [vmem:[#allocation5 + $0x70] sm:$0xff]
    %v85 = vld [vmem:[#allocation5 + $0x78] sm:$0xff]
    %v86 = vld [vmem:[#allocation5 + $0x80] sm:$0xff]
    %v87 = vld [vmem:[#allocation5 + $0x88] sm:$0xff]
    %v88 = vld [vmem:[#allocation5 + $0x90] sm:$0xff]
    %v89 = vld [vmem:[#allocation5 + $0x98] sm:$0xff]
    %v90 = vld [vmem:[#allocation5 + $0xa0] sm:$0xff]
    %v91 = vld [vmem:[#allocation5 + $0xa8] sm:$0xff]
    %v92 = vld [vmem:[#allocation5 + $0xb0] sm:$0xff]
    %v93 = vld [vmem:[#allocation5 + $0xb8] sm:$0xff]
    %v94 = vld [vmem:[#allocation5 + $0xc0] sm:$0xff]
    %v95 = vld [vmem:[#allocation5 + $0xc8] sm:$0xff]
    %v96 = vld [vmem:[#allocation5 + $0xd0] sm:$0xff]
    %v97 = vld [vmem:[#allocation5 + $0xd8] sm:$0xff]
    %v98 = vld [vmem:[#allocation5 + $0xe0] sm:$0xff]
    %v99 = vld [vmem:[#allocation5 + $0xe8] sm:$0xff]
    %v100 = vld [vmem:[#allocation5 + $0xf0] sm:$0xff]
    %v101 = vld [vmem:[#allocation5 + $0xf8] sm:$0xff]
    %v102 = vld [vmem:[#allocation5 + $0x100] sm:$0xff]
    %v103 = vld [vmem:[#allocation5 + $0x108] sm:$0xff]
    %v104 = vld [vmem:[#allocation5 + $0x110] sm:$0xff]
    %v105 = vld [vmem:[#allocation5 + $0x118] sm:$0xff]
    %v106 = vld [vmem:[#allocation5 + $0x120] sm:$0xff]
    %v107 = vld [vmem:[#allocation5 + $0x128] sm:$0xff]
    %v108 = vld [vmem:[#allocation5 + $0x130] sm:$0xff]
    %v109 = vld [vmem:[#allocation5 + $0x138] sm:$0xff]
    %v110 = vld [vmem:[#allocation5 + $0x140] sm:$0xff]
    %v111 = vld [vmem:[#allocation5 + $0x148] sm:$0xff]
    %v112 = vld [vmem:[#allocation5 + $0x150] sm:$0xff]
    %v113 = vld [vmem:[#allocation5 + $0x158] sm:$0xff]
    %v114 = vld [vmem:[#allocation5 + $0x160] sm:$0xff]
    %v115 = vld [vmem:[#allocation5 + $0x168] sm:$0xff]
    %v116 = vld [vmem:[#allocation5 + $0x170] sm:$0xff]
    %v117 = vld [vmem:[#allocation5 + $0x178] sm:$0xff]
    %v118 = vld [vmem:[#allocation5 + $0x180] sm:$0xff]
    %v119 = vld [vmem:[#allocation5 + $0x188] sm:$0xff]
    %v120 = vld [vmem:[#allocation5 + $0x190] sm:$0xff]
    %v121 = vld [vmem:[#allocation5 + $0x198] sm:$0xff]
    %v122 = vld [vmem:[#allocation5 + $0x1a0] sm:$0xff]
    %v123 = vld [vmem:[#allocation5 + $0x1a8] sm:$0xff]
    %v124 = vld [vmem:[#allocation5 + $0x1b0] sm:$0xff]
    %v125 = vld [vmem:[#allocation5 + $0x1b8] sm:$0xff]
    %v126 = vld [vmem:[#allocation5 + $0x1c0] sm:$0xff]
    %v127 = vld [vmem:[#allocation5 + $0x1c8] sm:$0xff]
    %v128 = vld [vmem:[#allocation5 + $0x1d0] sm:$0xff]
    %v129 = vld [vmem:[#allocation5 + $0x1d8] sm:$0xff]
    %v130 = vld [vmem:[#allocation5 + $0x1e0] sm:$0xff]
    %v131 = vld [vmem:[#allocation5 + $0x1e8] sm:$0xff]
    %v132 = vld [vmem:[#allocation5 + $0x1f0] sm:$0xff]
    %v133 = vld [vmem:[#allocation5 + $0x1f8] sm:$0xff]
    %v134 = vld [vmem:[#allocation5 + $0x200] sm:$0xff]
    %v135 = vld [vmem:[#allocation5 + $0x208] sm:$0xff]
    %v136 = vld [vmem:[#allocation5 + $0x210] sm:$0xff]
    %v137 = vld [vmem:[#allocation5 + $0x218] sm:$0xff]
    %v138 = vld [vmem:[#allocation5 + $0x220] sm:$0xff]
    %v139 = vld [vmem:[#allocation5 + $0x228] sm:$0xff]
    %v140 = vld [vmem:[#allocation5 + $0x230] sm:$0xff]
    %v141 = vld [vmem:[#allocation5 + $0x238] sm:$0xff]
    %v142 = vld [vmem:[#allocation5 + $0x240] sm:$0xff]
    %v143 = vld [vmem:[#allocation5 + $0x248] sm:$0xff]
    %v144 = vld [vmem:[#allocation5 + $0x250] sm:$0xff]
    %v145 = vld [vmem:[#allocation5 + $0x258] sm:$0xff]
    %v146 = vld [vmem:[#allocation5 + $0x260] sm:$0xff]
    %v147 = vld [vmem:[#allocation5 + $0x268] sm:$0xff]
    %v148 = vld [vmem:[#allocation5 + $0x270] sm:$0xff]
    %v149 = vld [vmem:[#allocation5 + $0x278] sm:$0xff]
    %v150 = vld [vmem:[#allocation5 + $0x280] sm:$0xff]
    %v151 = vld [vmem:[#allocation5 + $0x288] sm:$0xff]
    %v152 = vld [vmem:[#allocation5 + $0x290] sm:$0xff]
    %v153 = vld [vmem:[#allocation5 + $0x298] sm:$0xff]
    %v154 = vld [vmem:[#allocation5 + $0x2a0] sm:$0xff]
    %v155 = vld [vmem:[#allocation5 + $0x2a8] sm:$0xff]
    %v156 = vld [vmem:[#allocation5 + $0x2b0] sm:$0xff]
    %v157 = vld [vmem:[#allocation5 + $0x2b8] sm:$0xff]
    %v158 = vld [vmem:[#allocation5 + $0x2c0] sm:$0xff]
    %v159 = vld [vmem:[#allocation5 + $0x2c8] sm:$0xff]
    %v160 = vld [vmem:[#allocation5 + $0x2d0] sm:$0xff]
    %v161 = vld [vmem:[#allocation5 + $0x2d8] sm:$0xff]
    %v162 = vld [vmem:[#allocation5 + $0x2e0] sm:$0xff]
    %v163 = vld [vmem:[#allocation5 + $0x2e8] sm:$0xff]
    %v164 = vld [vmem:[#allocation5 + $0x2f0] sm:$0xff]
    %v165 = vld [vmem:[#allocation5 + $0x2f8] sm:$0xff]
    %v166 = vld [vmem:[#allocation5 + $0x300] sm:$0xff]
    %v167 = vld [vmem:[#allocation5 + $0x308] sm:$0xff]
    %v168 = vld [vmem:[#allocation5 + $0x310] sm:$0xff]
    %v169 = vld [vmem:[#allocation5 + $0x318] sm:$0xff]
    %v170 = vld [vmem:[#allocation5 + $0x320] sm:$0xff]
    %v171 = vld [vmem:[#allocation5 + $0x328] sm:$0xff]
    %v172 = vld [vmem:[#allocation5 + $0x330] sm:$0xff]
    %v173 = vld [vmem:[#allocation5 + $0x338] sm:$0xff]
    %v174 = vld [vmem:[#allocation5 + $0x340] sm:$0xff]
    %v175 = vld [vmem:[#allocation5 + $0x348] sm:$0xff]
    %v176 = vld [vmem:[#allocation5 + $0x350] sm:$0xff]
    %v177 = vld [vmem:[#allocation5 + $0x358] sm:$0xff]
    %v178 = vld [vmem:[#allocation5 + $0x360] sm:$0xff]
    %v179 = vld [vmem:[#allocation5 + $0x368] sm:$0xff]
    %v180 = vld [vmem:[#allocation5 + $0x370] sm:$0xff]
    %v181 = vld [vmem:[#allocation5 + $0x378] sm:$0xff]
    %v182 = vld [vmem:[#allocation5 + $0x380] sm:$0xff]
    %v183 = vld [vmem:[#allocation5 + $0x388] sm:$0xff]
    %v184 = vld [vmem:[#allocation5 + $0x390] sm:$0xff]
    %v185 = vld [vmem:[#allocation5 + $0x398] sm:$0xff]
    %v186 = vld [vmem:[#allocation5 + $0x3a0] sm:$0xff]
    %v187 = vld [vmem:[#allocation5 + $0x3a8] sm:$0xff]
    %v188 = vld [vmem:[#allocation5 + $0x3b0] sm:$0xff]
    %v189 = vld [vmem:[#allocation5 + $0x3b8] sm:$0xff]
    %v190 = vld [vmem:[#allocation5 + $0x3c0] sm:$0xff]
    %v191 = vld [vmem:[#allocation5 + $0x3c8] sm:$0xff]
    %v192 = vld [vmem:[#allocation5 + $0x3d0] sm:$0xff]
    %v193 = vld [vmem:[#allocation5 + $0x3d8] sm:$0xff]
    %v194 = vld [vmem:[#allocation5 + $0x3e0] sm:$0xff]
    %v195 = vld [vmem:[#allocation5 + $0x3e8] sm:$0xff]
    %v196 = vld [vmem:[#allocation5 + $0x3f0] sm:$0xff]
    %v197 = vld [vmem:[#allocation5 + $0x3f8] sm:$0xff]
    %v198 = vld [vmem:[#allocation5 + $0x400] sm:$0xff]
    %v199 = vld [vmem:[#allocation5 + $0x408] sm:$0xff]
    %v200 = vld [vmem:[#allocation5 + $0x410] sm:$0xff]
    %v201 = vld [vmem:[#allocation5 + $0x418] sm:$0xff]
    %v202 = vld [vmem:[#allocation5 + $0x420] sm:$0xff]
    %v203 = vld [vmem:[#allocation5 + $0x428] sm:$0xff]
    %v204 = vld [vmem:[#allocation5 + $0x430] sm:$0xff]
    %v205 = vld [vmem:[#allocation5 + $0x438] sm:$0xff]
    %v206 = vld [vmem:[#allocation5 + $0x440] sm:$0xff]
    %v207 = vld [vmem:[#allocation5 + $0x448] sm:$0xff]
    %v208 = vld [vmem:[#allocation5 + $0x450] sm:$0xff]
    %v209 = vld [vmem:[#allocation5 + $0x458] sm:$0xff]
    %v210 = vld [vmem:[#allocation5 + $0x460] sm:$0xff]
    %v211 = vld [vmem:[#allocation5 + $0x468] sm:$0xff]
    %v212 = vld [vmem:[#allocation5 + $0x470] sm:$0xff]
    %v213 = vld [vmem:[#allocation5 + $0x478] sm:$0xff]
    %v214 = vld [vmem:[#allocation5 + $0x480] sm:$0xff]
    %v215 = vld [vmem:[#allocation5 + $0x488] sm:$0xff]
    %v216 = vld [vmem:[#allocation5 + $0x490] sm:$0xff]
    %v217 = vld [vmem:[#allocation5 + $0x498] sm:$0xff]
    %v218 = vld [vmem:[#allocation5 + $0x4a0] sm:$0xff]
    %v219 = vld [vmem:[#allocation5 + $0x4a8] sm:$0xff]
    %v220 = vld [vmem:[#allocation5 + $0x4b0] sm:$0xff]
    %v221 = vld [vmem:[#allocation5 + $0x4b8] sm:$0xff]
    %v222 = vld [vmem:[#allocation5 + $0x4c0] sm:$0xff]
    %v223 = vld [vmem:[#allocation5 + $0x4c8] sm:$0xff]
    %v224 = vld [vmem:[#allocation5 + $0x4d0] sm:$0xff]
    %v225 = vld [vmem:[#allocation5 + $0x4d8] sm:$0xff]
    %v226 = vld [vmem:[#allocation5 + $0x4e0] sm:$0xff]
    %v227 = vld [vmem:[#allocation5 + $0x4e8] sm:$0xff]
    %v228 = vld [vmem:[#allocation5 + $0x4f0] sm:$0xff]
    %v229 = vld [vmem:[#allocation5 + $0x4f8] sm:$0xff]
    %v230 = vld [vmem:[#allocation5 + $0x500] sm:$0xff]
    %v231 = vld [vmem:[#allocation5 + $0x508] sm:$0xff]
    %v232 = vld [vmem:[#allocation5 + $0x510] sm:$0xff]
    %v233 = vld [vmem:[#allocation5 + $0x518] sm:$0xff]
    %v234 = vld [vmem:[#allocation5 + $0x520] sm:$0xff]
    %v235 = vld [vmem:[#allocation5 + $0x528] sm:$0xff]
    %v236 = vld [vmem:[#allocation5 + $0x530] sm:$0xff]
    %v237 = vld [vmem:[#allocation5 + $0x538] sm:$0xff]
    %v238 = vld [vmem:[#allocation5 + $0x540] sm:$0xff]
    %v239 = vld [vmem:[#allocation5 + $0x548] sm:$0xff]
    %v240 = vld [vmem:[#allocation5 + $0x550] sm:$0xff]
    %v241 = vld [vmem:[#allocation5 + $0x558] sm:$0xff]
    %v242 = vld [vmem:[#allocation5 + $0x560] sm:$0xff]
    %v243 = vld [vmem:[#allocation5 + $0x568] sm:$0xff]
    %v244 = vld [vmem:[#allocation5 + $0x570] sm:$0xff]
    %v245 = vld [vmem:[#allocation5 + $0x578] sm:$0xff]
    %v246 = vld [vmem:[#allocation5 + $0x580] sm:$0xff]
    %v247 = vld [vmem:[#allocation5 + $0x588] sm:$0xff]
    %v248 = vld [vmem:[#allocation5 + $0x590] sm:$0xff]
    %v249 = vld [vmem:[#allocation5 + $0x598] sm:$0xff]
    %v250 = vld [vmem:[#allocation5 + $0x5a0] sm:$0xff]
    %v251 = vld [vmem:[#allocation5 + $0x5a8] sm:$0xff]
    %v252 = vld [vmem:[#allocation5 + $0x5b0] sm:$0xff]
    %v253 = vld [vmem:[#allocation5 + $0x5b8] sm:$0xff]
    %v254 = vld [vmem:[#allocation5 + $0x5c0] sm:$0xff]
    %v255 = vld [vmem:[#allocation5 + $0x5c8] sm:$0xff]
    %v256 = vld [vmem:[#allocation5 + $0x5d0] sm:$0xff]
    %v257 = vld [vmem:[#allocation5 + $0x5d8] sm:$0xff]
    %v258 = vld [vmem:[#allocation5 + $0x5e0] sm:$0xff]
    %v259 = vld [vmem:[#allocation5 + $0x5e8] sm:$0xff]
    %v260 = vld [vmem:[#allocation5 + $0x5f0] sm:$0xff]
    %v261 = vld [vmem:[#allocation5 + $0x5f8] sm:$0xff]
    %v262 = vld [vmem:[#allocation5 + $0x600] sm:$0xff]
    %v263 = vld [vmem:[#allocation5 + $0x608] sm:$0xff]
    %v264 = vld [vmem:[#allocation5 + $0x610] sm:$0xff]
    %v265 = vld [vmem:[#allocation5 + $0x618] sm:$0xff]
    %v266 = vld [vmem:[#allocation5 + $0x620] sm:$0xff]
    %v267 = vld [vmem:[#allocation5 + $0x628] sm:$0xff]
    %v268 = vld [vmem:[#allocation5 + $0x630] sm:$0xff]
    %v269 = vld [vmem:[#allocation5 + $0x638] sm:$0xff]
    %v270 = vld [vmem:[#allocation5 + $0x640] sm:$0xff]
    %v271 = vld [vmem:[#allocation5 + $0x648] sm:$0xff]
    %v272 = vld [vmem:[#allocation5 + $0x650] sm:$0xff]
    %v273 = vld [vmem:[#allocation5 + $0x658] sm:$0xff]
    %v274 = vld [vmem:[#allocation5 + $0x660] sm:$0xff]
    %v275 = vld [vmem:[#allocation5 + $0x668] sm:$0xff]
    %v276 = vld [vmem:[#allocation5 + $0x670] sm:$0xff]
    %v277 = vld [vmem:[#allocation5 + $0x678] sm:$0xff]
    %v278 = vld [vmem:[#allocation5 + $0x680] sm:$0xff]
    %v279 = vld [vmem:[#allocation5 + $0x688] sm:$0xff]
    %v280 = vld [vmem:[#allocation5 + $0x690] sm:$0xff]
    %v281 = vld [vmem:[#allocation5 + $0x698] sm:$0xff]
    %v282 = vld [vmem:[#allocation5 + $0x6a0] sm:$0xff]
    %v283 = vld [vmem:[#allocation5 + $0x6a8] sm:$0xff]
    %v284 = vld [vmem:[#allocation5 + $0x6b0] sm:$0xff]
    %v285 = vld [vmem:[#allocation5 + $0x6b8] sm:$0xff]
    %v286 = vld [vmem:[#allocation5 + $0x6c0] sm:$0xff]
    %v287 = vld [vmem:[#allocation5 + $0x6c8] sm:$0xff]
    %v288 = vld [vmem:[#allocation5 + $0x6d0] sm:$0xff]
    %v289 = vld [vmem:[#allocation5 + $0x6d8] sm:$0xff]
    %v290 = vld [vmem:[#allocation5 + $0x6e0] sm:$0xff]
    %v291 = vld [vmem:[#allocation5 + $0x6e8] sm:$0xff]
    %v292 = vld [vmem:[#allocation5 + $0x6f0] sm:$0xff]
    %v293 = vld [vmem:[#allocation5 + $0x6f8] sm:$0xff]
    %v294 = vld [vmem:[#allocation5 + $0x700] sm:$0xff]
    %v295 = vld [vmem:[#allocation5 + $0x708] sm:$0xff]
    %v296 = vld [vmem:[#allocation5 + $0x710] sm:$0xff]
    %v297 = vld [vmem:[#allocation5 + $0x718] sm:$0xff]
    %v298 = vld [vmem:[#allocation5 + $0x720] sm:$0xff]
    %v299 = vld [vmem:[#allocation5 + $0x728] sm:$0xff]
    %v300 = vld [vmem:[#allocation5 + $0x730] sm:$0xff]
    %v301 = vld [vmem:[#allocation5 + $0x738] sm:$0xff]
    %v302 = vld [vmem:[#allocation5 + $0x740] sm:$0xff]
    %v303 = vld [vmem:[#allocation5 + $0x748] sm:$0xff]
    %v304 = vld [vmem:[#allocation5 + $0x750] sm:$0xff]
    %v305 = vld [vmem:[#allocation5 + $0x758] sm:$0xff]
    %v306 = vld [vmem:[#allocation5 + $0x760] sm:$0xff]
    %v307 = vld [vmem:[#allocation5 + $0x768] sm:$0xff]
    %v308 = vld [vmem:[#allocation5 + $0x770] sm:$0xff]
    %v309 = vld [vmem:[#allocation5 + $0x778] sm:$0xff]
    %v310 = vld [vmem:[#allocation5 + $0x780] sm:$0xff]
    %v311 = vld [vmem:[#allocation5 + $0x788] sm:$0xff]
    %v312 = vld [vmem:[#allocation5 + $0x790] sm:$0xff]
    %v313 = vld [vmem:[#allocation5 + $0x798] sm:$0xff]
    %v314 = vld [vmem:[#allocation5 + $0x7a0] sm:$0xff]
    %v315 = vld [vmem:[#allocation5 + $0x7a8] sm:$0xff]
    %v316 = vld [vmem:[#allocation5 + $0x7b0] sm:$0xff]
    %v317 = vld [vmem:[#allocation5 + $0x7b8] sm:$0xff]
    %v318 = vld [vmem:[#allocation5 + $0x7c0] sm:$0xff]
    %v319 = vld [vmem:[#allocation5 + $0x7c8] sm:$0xff]
    %v320 = vld [vmem:[#allocation5 + $0x7d0] sm:$0xff]
    %v321 = vld [vmem:[#allocation5 + $0x7d8] sm:$0xff]
    %v322 = vld [vmem:[#allocation5 + $0x7e0] sm:$0xff]
    %v323 = vld [vmem:[#allocation5 + $0x7e8] sm:$0xff]
    %v324 = vld [vmem:[#allocation5 + $0x7f0] sm:$0xff]
    %v325 = vld [vmem:[#allocation5 + $0x7f8] sm:$0xff]
    %v326 = vld [vmem:[#allocation5 + $0x800] sm:$0xff]
    %v327 = vld [vmem:[#allocation5 + $0x808] sm:$0xff]
    %v328 = vld [vmem:[#allocation5 + $0x810] sm:$0xff]
    %v329 = vld [vmem:[#allocation5 + $0x818] sm:$0xff]
    %v330 = vld [vmem:[#allocation5 + $0x820] sm:$0xff]
    %v331 = vld [vmem:[#allocation5 + $0x828] sm:$0xff]
    %v332 = vld [vmem:[#allocation5 + $0x830] sm:$0xff]
    %v333 = vld [vmem:[#allocation5 + $0x838] sm:$0xff]
    %v334 = vld [vmem:[#allocation5 + $0x840] sm:$0xff]
    %v335 = vld [vmem:[#allocation5 + $0x848] sm:$0xff]
    %v336 = vld [vmem:[#allocation5 + $0x850] sm:$0xff]
    %v337 = vld [vmem:[#allocation5 + $0x858] sm:$0xff]
    %v338 = vld [vmem:[#allocation5 + $0x860] sm:$0xff]
    %v339 = vld [vmem:[#allocation5 + $0x868] sm:$0xff]
    %v340 = vld [vmem:[#allocation5 + $0x870] sm:$0xff]
    %v341 = vld [vmem:[#allocation5 + $0x878] sm:$0xff]
    %v342 = vld [vmem:[#allocation5 + $0x880] sm:$0xff]
    %v343 = vld [vmem:[#allocation5 + $0x888] sm:$0xff]
    %v344 = vld [vmem:[#allocation5 + $0x890] sm:$0xff]
    %v345 = vld [vmem:[#allocation5 + $0x898] sm:$0xff]
    %v346 = vld [vmem:[#allocation5 + $0x8a0] sm:$0xff]
    %v347 = vld [vmem:[#allocation5 + $0x8a8] sm:$0xff]
    %v348 = vld [vmem:[#allocation5 + $0x8b0] sm:$0xff]
    %v349 = vld [vmem:[#allocation5 + $0x8b8] sm:$0xff]
    %v350 = vld [vmem:[#allocation5 + $0x8c0] sm:$0xff]
    %v351 = vld [vmem:[#allocation5 + $0x8c8] sm:$0xff]
    %v352 = vld [vmem:[#allocation5 + $0x8d0] sm:$0xff]
    %v353 = vld [vmem:[#allocation5 + $0x8d8] sm:$0xff]
    %v354 = vld [vmem:[#allocation5 + $0x8e0] sm:$0xff]
    %v355 = vld [vmem:[#allocation5 + $0x8e8] sm:$0xff]
    %v356 = vld [vmem:[#allocation5 + $0x8f0] sm:$0xff]
    %v357 = vld [vmem:[#allocation5 + $0x8f8] sm:$0xff]
    %v358 = vld [vmem:[#allocation5 + $0x900] sm:$0xff]
    %v359 = vld [vmem:[#allocation5 + $0x908] sm:$0xff]
    %v360 = vld [vmem:[#allocation5 + $0x910] sm:$0xff]
    %v361 = vld [vmem:[#allocation5 + $0x918] sm:$0xff]
    %v362 = vld [vmem:[#allocation5 + $0x920] sm:$0xff]
    %v363 = vld [vmem:[#allocation5 + $0x928] sm:$0xff]
    %v364 = vld [vmem:[#allocation5 + $0x930] sm:$0xff]
    %v365 = vld [vmem:[#allocation5 + $0x938] sm:$0xff]
    %v366 = vld [vmem:[#allocation5 + $0x940] sm:$0xff]
    %v367 = vld [vmem:[#allocation5 + $0x948] sm:$0xff]
    %v368 = vld [vmem:[#allocation5 + $0x950] sm:$0xff]
    %v369 = vld [vmem:[#allocation5 + $0x958] sm:$0xff]
    %v370 = vld [vmem:[#allocation5 + $0x960] sm:$0xff]
    %v371 = vld [vmem:[#allocation5 + $0x968] sm:$0xff]
    %v372 = vld [vmem:[#allocation5 + $0x970] sm:$0xff]
    %v373 = vld [vmem:[#allocation5 + $0x978] sm:$0xff]
    %v374 = vld [vmem:[#allocation5 + $0x980] sm:$0xff]
    %v375 = vld [vmem:[#allocation5 + $0x988] sm:$0xff]
    %v376 = vld [vmem:[#allocation5 + $0x990] sm:$0xff]
    %v377 = vld [vmem:[#allocation5 + $0x998] sm:$0xff]
    %v378 = vld [vmem:[#allocation5 + $0x9a0] sm:$0xff]
    %v379 = vld [vmem:[#allocation5 + $0x9a8] sm:$0xff]
    %v380 = vld [vmem:[#allocation5 + $0x9b0] sm:$0xff]
    %v381 = vld [vmem:[#allocation5 + $0x9b8] sm:$0xff]
    %v382 = vld [vmem:[#allocation5 + $0x9c0] sm:$0xff]
    %v383 = vld [vmem:[#allocation5 + $0x9c8] sm:$0xff]
    %v384 = vld [vmem:[#allocation5 + $0x9d0] sm:$0xff]
    %v385 = vld [vmem:[#allocation5 + $0x9d8] sm:$0xff]
    %v386 = vld [vmem:[#allocation5 + $0x9e0] sm:$0xff]
    %v387 = vld [vmem:[#allocation5 + $0x9e8] sm:$0xff]
    %v388 = vld [vmem:[#allocation5 + $0x9f0] sm:$0xff]
    %v389 = vld [vmem:[#allocation5 + $0x9f8] sm:$0xff]
    %v390 = vld [vmem:[#allocation5 + $0xa00] sm:$0xff]
    %v391 = vld [vmem:[#allocation5 + $0xa08] sm:$0xff]
    %v392 = vld [vmem:[#allocation5 + $0xa10] sm:$0xff]
    %v393 = vld [vmem:[#allocation5 + $0xa18] sm:$0xff]
    %v394 = vld [vmem:[#allocation5 + $0xa20] sm:$0xff]
    %v395 = vld [vmem:[#allocation5 + $0xa28] sm:$0xff]
    %v396 = vld [vmem:[#allocation5 + $0xa30] sm:$0xff]
    %v397 = vld [vmem:[#allocation5 + $0xa38] sm:$0xff]
    %v398 = vld [vmem:[#allocation5 + $0xa40] sm:$0xff]
    %v399 = vld [vmem:[#allocation5 + $0xa48] sm:$0xff]
    %v400 = vld [vmem:[#allocation5 + $0xa50] sm:$0xff]
    %v401 = vld [vmem:[#allocation5 + $0xa58] sm:$0xff]
    %v402 = vld [vmem:[#allocation5 + $0xa60] sm:$0xff]
    %v403 = vld [vmem:[#allocation5 + $0xa68] sm:$0xff]
    %v404 = vld [vmem:[#allocation5 + $0xa70] sm:$0xff]
    %v405 = vld [vmem:[#allocation5 + $0xa78] sm:$0xff]
    %v406 = vld [vmem:[#allocation5 + $0xa80] sm:$0xff]
    %v407 = vld [vmem:[#allocation5 + $0xa88] sm:$0xff]
    %v408 = vld [vmem:[#allocation5 + $0xa90] sm:$0xff]
    %v409 = vld [vmem:[#allocation5 + $0xa98] sm:$0xff]
    %v410 = vld [vmem:[#allocation5 + $0xaa0] sm:$0xff]
    %v411 = vld [vmem:[#allocation5 + $0xaa8] sm:$0xff]
    %v412 = vld [vmem:[#allocation5 + $0xab0] sm:$0xff]
    %v413 = vld [vmem:[#allocation5 + $0xab8] sm:$0xff]
    %v414 = vld [vmem:[#allocation5 + $0xac0] sm:$0xff]
    %v415 = vld [vmem:[#allocation5 + $0xac8] sm:$0xff]
    %v416 = vld [vmem:[#allocation5 + $0xad0] sm:$0xff]
    %v417 = vld [vmem:[#allocation5 + $0xad8] sm:$0xff]
    %v418 = vld [vmem:[#allocation5 + $0xae0] sm:$0xff]
    %v419 = vld [vmem:[#allocation5 + $0xae8] sm:$0xff]
    %v420 = vld [vmem:[#allocation5 + $0xaf0] sm:$0xff]
    %v421 = vld [vmem:[#allocation5 + $0xaf8] sm:$0xff]
    %v422 = vld [vmem:[#allocation5 + $0xb00] sm:$0xff]
    %v423 = vld [vmem:[#allocation5 + $0xb08] sm:$0xff]
    %v424 = vld [vmem:[#allocation5 + $0xb10] sm:$0xff]
    %v425 = vld [vmem:[#allocation5 + $0xb18] sm:$0xff]
    %v426 = vld [vmem:[#allocation5 + $0xb20] sm:$0xff]
    %v427 = vld [vmem:[#allocation5 + $0xb28] sm:$0xff]
    %v428 = vld [vmem:[#allocation5 + $0xb30] sm:$0xff]
    %v429 = vld [vmem:[#allocation5 + $0xb38] sm:$0xff]
    %v430 = vld [vmem:[#allocation5 + $0xb40] sm:$0xff]
    %v431 = vld [vmem:[#allocation5 + $0xb48] sm:$0xff]
    %v432 = vld [vmem:[#allocation5 + $0xb50] sm:$0xff]
    %v433 = vld [vmem:[#allocation5 + $0xb58] sm:$0xff]
    %v434 = vld [vmem:[#allocation5 + $0xb60] sm:$0xff]
    %v435 = vld [vmem:[#allocation5 + $0xb68] sm:$0xff]
    %v436 = vld [vmem:[#allocation5 + $0xb70] sm:$0xff]
    %v437 = vld [vmem:[#allocation5 + $0xb78] sm:$0xff]
    %v438 = vld [vmem:[#allocation5 + $0xb80] sm:$0xff]
    %v439 = vld [vmem:[#allocation5 + $0xb88] sm:$0xff]
    %v440 = vld [vmem:[#allocation5 + $0xb90] sm:$0xff]
    %v441 = vld [vmem:[#allocation5 + $0xb98] sm:$0xff]
    %v442 = vld [vmem:[#allocation5 + $0xba0] sm:$0xff]
    %v443 = vld [vmem:[#allocation5 + $0xba8] sm:$0xff]
    %v444 = vld [vmem:[#allocation5 + $0xbb0] sm:$0xff]
    %v445 = vld [vmem:[#allocation5 + $0xbb8] sm:$0xff]
    %v446 = vld [vmem:[#allocation5 + $0xbc0] sm:$0xff]
    %v447 = vld [vmem:[#allocation5 + $0xbc8] sm:$0xff]
    %v448 = vld [vmem:[#allocation5 + $0xbd0] sm:$0xff]
    %v449 = vld [vmem:[#allocation5 + $0xbd8] sm:$0xff]
    %v450 = vld [vmem:[#allocation5 + $0xbe0] sm:$0xff]
    %v451 = vld [vmem:[#allocation5 + $0xbe8] sm:$0xff]
    %v452 = vld [vmem:[#allocation5 + $0xbf0] sm:$0xff]
    %v453 = vld [vmem:[#allocation5 + $0xbf8] sm:$0xff]
    %v454 = vld [vmem:[#allocation5 + $0xc00] sm:$0xff]
    %v455 = vld [vmem:[#allocation5 + $0xc08] sm:$0xff]
    %v456 = vld [vmem:[#allocation5 + $0xc10] sm:$0xff]
    %v457 = vld [vmem:[#allocation5 + $0xc18] sm:$0xff]
    %v458 = vld [vmem:[#allocation5 + $0xc20] sm:$0xff]
    %v459 = vld [vmem:[#allocation5 + $0xc28] sm:$0xff]
    %v460 = vld [vmem:[#allocation5 + $0xc30] sm:$0xff]
    %v461 = vld [vmem:[#allocation5 + $0xc38] sm:$0xff]
    %v462 = vld [vmem:[#allocation5 + $0xc40] sm:$0xff]
    %v463 = vld [vmem:[#allocation5 + $0xc48] sm:$0xff]
    %v464 = vld [vmem:[#allocation5 + $0xc50] sm:$0xff]
    %v465 = vld [vmem:[#allocation5 + $0xc58] sm:$0xff]
    %v466 = vld [vmem:[#allocation5 + $0xc60] sm:$0xff]
    %v467 = vld [vmem:[#allocation5 + $0xc68] sm:$0xff]
    %v468 = vld [vmem:[#allocation5 + $0xc70] sm:$0xff]
    %v469 = vld [vmem:[#allocation5 + $0xc78] sm:$0xff]
    %v470 = vld [vmem:[#allocation5 + $0xc80] sm:$0xff]
    %v471 = vld [vmem:[#allocation5 + $0xc88] sm:$0xff]
    %v472 = vld [vmem:[#allocation5 + $0xc90] sm:$0xff]
    %v473 = vld [vmem:[#allocation5 + $0xc98] sm:$0xff]
    %v474 = vld [vmem:[#allocation5 + $0xca0] sm:$0xff]
    %v475 = vld [vmem:[#allocation5 + $0xca8] sm:$0xff]
    %v476 = vld [vmem:[#allocation5 + $0xcb0] sm:$0xff]
    %v477 = vld [vmem:[#allocation5 + $0xcb8] sm:$0xff]
    %v478 = vld [vmem:[#allocation5 + $0xcc0] sm:$0xff]
    %v479 = vld [vmem:[#allocation5 + $0xcc8] sm:$0xff]
    %v480 = vld [vmem:[#allocation5 + $0xcd0] sm:$0xff]
    %v481 = vld [vmem:[#allocation5 + $0xcd8] sm:$0xff]
    %v482 = vld [vmem:[#allocation5 + $0xce0] sm:$0xff]
    %v483 = vld [vmem:[#allocation5 + $0xce8] sm:$0xff]
    %v484 = vld [vmem:[#allocation5 + $0xcf0] sm:$0xff]
    %v485 = vld [vmem:[#allocation5 + $0xcf8] sm:$0xff]
    %v486 = vld [vmem:[#allocation5 + $0xd00] sm:$0xff]
    %v487 = vld [vmem:[#allocation5 + $0xd08] sm:$0xff]
    %v488 = vld [vmem:[#allocation5 + $0xd10] sm:$0xff]
    %v489 = vld [vmem:[#allocation5 + $0xd18] sm:$0xff]
    %v490 = vld [vmem:[#allocation5 + $0xd20] sm:$0xff]
    %v491 = vld [vmem:[#allocation5 + $0xd28] sm:$0xff]
    %v492 = vld [vmem:[#allocation5 + $0xd30] sm:$0xff]
    %v493 = vld [vmem:[#allocation5 + $0xd38] sm:$0xff]
    %v494 = vld [vmem:[#allocation5 + $0xd40] sm:$0xff]
    %v495 = vld [vmem:[#allocation5 + $0xd48] sm:$0xff]
    %v496 = vld [vmem:[#allocation5 + $0xd50] sm:$0xff]
    %v497 = vld [vmem:[#allocation5 + $0xd58] sm:$0xff]
    %v498 = vld [vmem:[#allocation5 + $0xd60] sm:$0xff]
    %v499 = vld [vmem:[#allocation5 + $0xd68] sm:$0xff]
    %v500 = vld [vmem:[#allocation5 + $0xd70] sm:$0xff]
    %v501 = vld [vmem:[#allocation5 + $0xd78] sm:$0xff]
    %v502 = vld [vmem:[#allocation5 + $0xd80] sm:$0xff]
    %v503 = vld [vmem:[#allocation5 + $0xd88] sm:$0xff]
    %v504 = vld [vmem:[#allocation5 + $0xd90] sm:$0xff]
    %v505 = vld [vmem:[#allocation5 + $0xd98] sm:$0xff]
    %v506 = vld [vmem:[#allocation5 + $0xda0] sm:$0xff]
    %v507 = vld [vmem:[#allocation5 + $0xda8] sm:$0xff]
    %v508 = vld [vmem:[#allocation5 + $0xdb0] sm:$0xff]
    %v509 = vld [vmem:[#allocation5 + $0xdb8] sm:$0xff]
    %v510 = vld [vmem:[#allocation5 + $0xdc0] sm:$0xff]
    %v511 = vld [vmem:[#allocation5 + $0xdc8] sm:$0xff]
    %v512 = vld [vmem:[#allocation5 + $0xdd0] sm:$0xff]
    %v513 = vld [vmem:[#allocation5 + $0xdd8] sm:$0xff]
    %v514 = vld [vmem:[#allocation5 + $0xde0] sm:$0xff]
    %v515 = vld [vmem:[#allocation5 + $0xde8] sm:$0xff]
    %v516 = vld [vmem:[#allocation5 + $0xdf0] sm:$0xff]
    %v517 = vld [vmem:[#allocation5 + $0xdf8] sm:$0xff]
    %v526 = vunpack.c.l.b16 %v62
    %v527 = vunpack.c.h.b16 %v62
    %v528 = vunpack.c.l.b16 %v63
    %v529 = vunpack.c.h.b16 %v63
    %v530 = vunpack.c.l.b16 %v64
    %v531 = vunpack.c.h.b16 %v64
    %v532 = vunpack.c.l.b16 %v65
    %v533 = vunpack.c.l.b16 %v66
    %v534 = vunpack.c.h.b16 %v66
    %v535 = vunpack.c.l.b16 %v67
    %v536 = vunpack.c.h.b16 %v67
    %v537 = vunpack.c.l.b16 %v68
    %v538 = vunpack.c.h.b16 %v68
    %v539 = vunpack.c.l.b16 %v69
    %v540 = vpack.c.b16 %v533, %v526
    %v541 = vpack.c.b16 %v534, %v527
    %v542 = vpack.c.b16 %v535, %v528
    %v543 = vpack.c.b16 %v536, %v529
    %v544 = vpack.c.b16 %v537, %v530
    %v545 = vpack.c.b16 %v538, %v531
    %v546 = vpack.c.b16 %v539, %v532
    %v1002 = vunpack.c.l.b16 %v70
    %v1003 = vunpack.c.h.b16 %v70
    %v1004 = vunpack.c.l.b16 %v71
    %v1005 = vunpack.c.h.b16 %v71
    %v1006 = vunpack.c.l.b16 %v72
    %v1007 = vunpack.c.h.b16 %v72
    %v1008 = vunpack.c.l.b16 %v73
    %v1009 = vunpack.c.h.b16 %v73
    %v1010 = vunpack.c.l.b16 %v74
    %v1011 = vunpack.c.h.b16 %v74
    %v1012 = vunpack.c.l.b16 %v75
    %v1013 = vunpack.c.h.b16 %v75
    %v1014 = vunpack.c.l.b16 %v76
    %v1015 = vunpack.c.h.b16 %v76
    %v1016 = vunpack.c.l.b16 %v77
    %v1017 = vunpack.c.h.b16 %v77
    %v1018 = vunpack.c.l.b16 %v78
    %v1019 = vunpack.c.h.b16 %v78
    %v1020 = vunpack.c.l.b16 %v79
    %v1021 = vunpack.c.h.b16 %v79
    %v1022 = vunpack.c.l.b16 %v80
    %v1023 = vunpack.c.h.b16 %v80
    %v1024 = vunpack.c.l.b16 %v81
    %v1025 = vunpack.c.h.b16 %v81
    %v1026 = vunpack.c.l.b16 %v82
    %v1027 = vunpack.c.h.b16 %v82
    %v1028 = vunpack.c.l.b16 %v83
    %v1029 = vunpack.c.h.b16 %v83
    %v1030 = vunpack.c.l.b16 %v84
    %v1031 = vunpack.c.h.b16 %v84
    %v1032 = vunpack.c.l.b16 %v85
    %v1033 = vunpack.c.h.b16 %v85
    %v1034 = vunpack.c.l.b16 %v86
    %v1035 = vunpack.c.h.b16 %v86
    %v1036 = vunpack.c.l.b16 %v87
    %v1037 = vunpack.c.h.b16 %v87
    %v1038 = vunpack.c.l.b16 %v88
    %v1039 = vunpack.c.h.b16 %v88
    %v1040 = vunpack.c.l.b16 %v89
    %v1041 = vunpack.c.h.b16 %v89
    %v1042 = vunpack.c.l.b16 %v90
    %v1043 = vunpack.c.h.b16 %v90
    %v1044 = vunpack.c.l.b16 %v91
    %v1045 = vunpack.c.h.b16 %v91
    %v1046 = vunpack.c.l.b16 %v92
    %v1047 = vunpack.c.h.b16 %v92
    %v1048 = vunpack.c.l.b16 %v93
    %v1049 = vunpack.c.h.b16 %v93
    %v1050 = vunpack.c.l.b16 %v94
    %v1051 = vunpack.c.h.b16 %v94
    %v1052 = vunpack.c.l.b16 %v95
    %v1053 = vunpack.c.h.b16 %v95
    %v1054 = vunpack.c.l.b16 %v96
    %v1055 = vunpack.c.h.b16 %v96
    %v1056 = vunpack.c.l.b16 %v97
    %v1057 = vunpack.c.h.b16 %v97
    %v1058 = vunpack.c.l.b16 %v98
    %v1059 = vunpack.c.h.b16 %v98
    %v1060 = vunpack.c.l.b16 %v99
    %v1061 = vunpack.c.h.b16 %v99
    %v1062 = vunpack.c.l.b16 %v100
    %v1063 = vunpack.c.h.b16 %v100
    %v1064 = vunpack.c.l.b16 %v101
    %v1065 = vunpack.c.h.b16 %v101
    %v1066 = vunpack.c.l.b16 %v102
    %v1067 = vunpack.c.h.b16 %v102
    %v1068 = vunpack.c.l.b16 %v103
    %v1069 = vunpack.c.h.b16 %v103
    %v1070 = vunpack.c.l.b16 %v104
    %v1071 = vunpack.c.h.b16 %v104
    %v1072 = vunpack.c.l.b16 %v105
    %v1073 = vunpack.c.h.b16 %v105
    %v1074 = vunpack.c.l.b16 %v106
    %v1075 = vunpack.c.h.b16 %v106
    %v1076 = vunpack.c.l.b16 %v107
    %v1077 = vunpack.c.h.b16 %v107
    %v1078 = vunpack.c.l.b16 %v108
    %v1079 = vunpack.c.h.b16 %v108
    %v1080 = vunpack.c.l.b16 %v109
    %v1081 = vunpack.c.h.b16 %v109
    %v1082 = vunpack.c.l.b16 %v110
    %v1083 = vunpack.c.h.b16 %v110
    %v1084 = vunpack.c.l.b16 %v111
    %v1085 = vunpack.c.h.b16 %v111
    %v1086 = vunpack.c.l.b16 %v112
    %v1087 = vunpack.c.h.b16 %v112
    %v1088 = vunpack.c.l.b16 %v113
    %v1089 = vunpack.c.h.b16 %v113
    %v1090 = vunpack.c.l.b16 %v114
    %v1091 = vunpack.c.h.b16 %v114
    %v1092 = vunpack.c.l.b16 %v115
    %v1093 = vunpack.c.h.b16 %v115
    %v1094 = vunpack.c.l.b16 %v116
    %v1095 = vunpack.c.h.b16 %v116
    %v1096 = vunpack.c.l.b16 %v117
    %v1097 = vunpack.c.h.b16 %v117
    %v1098 = vunpack.c.l.b16 %v118
    %v1099 = vunpack.c.h.b16 %v118
    %v1100 = vunpack.c.l.b16 %v119
    %v1101 = vunpack.c.h.b16 %v119
    %v1102 = vunpack.c.l.b16 %v120
    %v1103 = vunpack.c.h.b16 %v120
    %v1104 = vunpack.c.l.b16 %v121
    %v1105 = vunpack.c.h.b16 %v121
    %v1106 = vunpack.c.l.b16 %v122
    %v1107 = vunpack.c.h.b16 %v122
    %v1108 = vunpack.c.l.b16 %v123
    %v1109 = vunpack.c.h.b16 %v123
    %v1110 = vunpack.c.l.b16 %v124
    %v1111 = vunpack.c.h.b16 %v124
    %v1112 = vunpack.c.l.b16 %v125
    %v1113 = vunpack.c.h.b16 %v125
    %v1114 = vunpack.c.l.b16 %v126
    %v1115 = vunpack.c.h.b16 %v126
    %v1116 = vunpack.c.l.b16 %v127
    %v1117 = vunpack.c.h.b16 %v127
    %v1118 = vunpack.c.l.b16 %v128
    %v1119 = vunpack.c.h.b16 %v128
    %v1120 = vunpack.c.l.b16 %v129
    %v1121 = vunpack.c.h.b16 %v129
    %v1122 = vunpack.c.l.b16 %v130
    %v1123 = vunpack.c.h.b16 %v130
    %v1124 = vunpack.c.l.b16 %v131
    %v1125 = vunpack.c.h.b16 %v131
    %v1126 = vunpack.c.l.b16 %v132
    %v1127 = vunpack.c.h.b16 %v132
    %v1128 = vunpack.c.l.b16 %v133
    %v1129 = vunpack.c.h.b16 %v133
    %v1130 = vunpack.c.l.b16 %v134
    %v1131 = vunpack.c.h.b16 %v134
    %v1132 = vunpack.c.l.b16 %v135
    %v1133 = vunpack.c.h.b16 %v135
    %v1134 = vunpack.c.l.b16 %v136
    %v1135 = vunpack.c.h.b16 %v136
    %v1136 = vunpack.c.l.b16 %v137
    %v1137 = vunpack.c.h.b16 %v137
    %v1138 = vunpack.c.l.b16 %v138
    %v1139 = vunpack.c.h.b16 %v138
    %v1140 = vunpack.c.l.b16 %v139
    %v1141 = vunpack.c.h.b16 %v139
    %v1142 = vunpack.c.l.b16 %v140
    %v1143 = vunpack.c.h.b16 %v140
    %v1144 = vunpack.c.l.b16 %v141
    %v1145 = vunpack.c.h.b16 %v141
    %v1146 = vunpack.c.l.b16 %v142
    %v1147 = vunpack.c.h.b16 %v142
    %v1148 = vunpack.c.l.b16 %v143
    %v1149 = vunpack.c.h.b16 %v143
    %v1150 = vunpack.c.l.b16 %v144
    %v1151 = vunpack.c.h.b16 %v144
    %v1152 = vunpack.c.l.b16 %v145
    %v1153 = vunpack.c.h.b16 %v145
    %v1154 = vunpack.c.l.b16 %v146
    %v1155 = vunpack.c.h.b16 %v146
    %v1156 = vunpack.c.l.b16 %v147
    %v1157 = vunpack.c.h.b16 %v147
    %v1158 = vunpack.c.l.b16 %v148
    %v1159 = vunpack.c.h.b16 %v148
    %v1160 = vunpack.c.l.b16 %v149
    %v1161 = vunpack.c.h.b16 %v149
    %v1162 = vunpack.c.l.b16 %v150
    %v1163 = vunpack.c.h.b16 %v150
    %v1164 = vunpack.c.l.b16 %v151
    %v1165 = vunpack.c.h.b16 %v151
    %v1166 = vunpack.c.l.b16 %v152
    %v1167 = vunpack.c.h.b16 %v152
    %v1168 = vunpack.c.l.b16 %v153
    %v1169 = vunpack.c.h.b16 %v153
    %v1170 = vunpack.c.l.b16 %v154
    %v1171 = vunpack.c.h.b16 %v154
    %v1172 = vunpack.c.l.b16 %v155
    %v1173 = vunpack.c.h.b16 %v155
    %v1174 = vunpack.c.l.b16 %v156
    %v1175 = vunpack.c.h.b16 %v156
    %v1176 = vunpack.c.l.b16 %v157
    %v1177 = vunpack.c.h.b16 %v157
    %v1178 = vunpack.c.l.b16 %v158
    %v1179 = vunpack.c.h.b16 %v158
    %v1180 = vunpack.c.l.b16 %v159
    %v1181 = vunpack.c.h.b16 %v159
    %v1182 = vunpack.c.l.b16 %v160
    %v1183 = vunpack.c.h.b16 %v160
    %v1184 = vunpack.c.l.b16 %v161
    %v1185 = vunpack.c.h.b16 %v161
    %v1186 = vunpack.c.l.b16 %v162
    %v1187 = vunpack.c.h.b16 %v162
    %v1188 = vunpack.c.l.b16 %v163
    %v1189 = vunpack.c.h.b16 %v163
    %v1190 = vunpack.c.l.b16 %v164
    %v1191 = vunpack.c.h.b16 %v164
    %v1192 = vunpack.c.l.b16 %v165
    %v1193 = vunpack.c.h.b16 %v165
    %v1194 = vunpack.c.l.b16 %v166
    %v1195 = vunpack.c.h.b16 %v166
    %v1196 = vunpack.c.l.b16 %v167
    %v1197 = vunpack.c.h.b16 %v167
    %v1198 = vunpack.c.l.b16 %v168
    %v1199 = vunpack.c.h.b16 %v168
    %v1200 = vunpack.c.l.b16 %v169
    %v1201 = vunpack.c.h.b16 %v169
    %v1202 = vunpack.c.l.b16 %v170
    %v1203 = vunpack.c.h.b16 %v170
    %v1204 = vunpack.c.l.b16 %v171
    %v1205 = vunpack.c.h.b16 %v171
    %v1206 = vunpack.c.l.b16 %v172
    %v1207 = vunpack.c.h.b16 %v172
    %v1208 = vunpack.c.l.b16 %v173
    %v1209 = vunpack.c.h.b16 %v173
    %v1210 = vunpack.c.l.b16 %v174
    %v1211 = vunpack.c.h.b16 %v174
    %v1212 = vunpack.c.l.b16 %v175
    %v1213 = vunpack.c.h.b16 %v175
    %v1214 = vunpack.c.l.b16 %v176
    %v1215 = vunpack.c.h.b16 %v176
    %v1216 = vunpack.c.l.b16 %v177
    %v1217 = vunpack.c.h.b16 %v177
    %v1218 = vunpack.c.l.b16 %v178
    %v1219 = vunpack.c.h.b16 %v178
    %v1220 = vunpack.c.l.b16 %v179
    %v1221 = vunpack.c.h.b16 %v179
    %v1222 = vunpack.c.l.b16 %v180
    %v1223 = vunpack.c.h.b16 %v180
    %v1224 = vunpack.c.l.b16 %v181
    %v1225 = vunpack.c.h.b16 %v181
    %v1226 = vunpack.c.l.b16 %v182
    %v1227 = vunpack.c.h.b16 %v182
    %v1228 = vunpack.c.l.b16 %v183
    %v1229 = vunpack.c.h.b16 %v183
    %v1230 = vunpack.c.l.b16 %v184
    %v1231 = vunpack.c.h.b16 %v184
    %v1232 = vunpack.c.l.b16 %v185
    %v1233 = vunpack.c.h.b16 %v185
    %v1234 = vunpack.c.l.b16 %v186
    %v1235 = vunpack.c.h.b16 %v186
    %v1236 = vunpack.c.l.b16 %v187
    %v1237 = vunpack.c.h.b16 %v187
    %v1238 = vunpack.c.l.b16 %v188
    %v1239 = vunpack.c.h.b16 %v188
    %v1240 = vunpack.c.l.b16 %v189
    %v1241 = vunpack.c.h.b16 %v189
    %v1242 = vunpack.c.l.b16 %v190
    %v1243 = vunpack.c.h.b16 %v190
    %v1244 = vunpack.c.l.b16 %v191
    %v1245 = vunpack.c.h.b16 %v191
    %v1246 = vunpack.c.l.b16 %v192
    %v1247 = vunpack.c.h.b16 %v192
    %v1248 = vunpack.c.l.b16 %v193
    %v1249 = vunpack.c.h.b16 %v193
    %v1250 = vunpack.c.l.b16 %v194
    %v1251 = vunpack.c.h.b16 %v194
    %v1252 = vunpack.c.l.b16 %v195
    %v1253 = vunpack.c.h.b16 %v195
    %v1254 = vunpack.c.l.b16 %v196
    %v1255 = vunpack.c.h.b16 %v196
    %v1256 = vunpack.c.l.b16 %v197
    %v1257 = vunpack.c.h.b16 %v197
    %v1258 = vunpack.c.l.b16 %v198
    %v1259 = vunpack.c.h.b16 %v198
    %v1260 = vunpack.c.l.b16 %v199
    %v1261 = vunpack.c.h.b16 %v199
    %v1262 = vunpack.c.l.b16 %v200
    %v1263 = vunpack.c.h.b16 %v200
    %v1264 = vunpack.c.l.b16 %v201
    %v1265 = vunpack.c.h.b16 %v201
    %v1266 = vunpack.c.l.b16 %v202
    %v1267 = vunpack.c.h.b16 %v202
    %v1268 = vunpack.c.l.b16 %v203
    %v1269 = vunpack.c.h.b16 %v203
    %v1270 = vunpack.c.l.b16 %v204
    %v1271 = vunpack.c.h.b16 %v204
    %v1272 = vunpack.c.l.b16 %v205
    %v1273 = vunpack.c.h.b16 %v205
    %v1274 = vunpack.c.l.b16 %v206
    %v1275 = vunpack.c.h.b16 %v206
    %v1276 = vunpack.c.l.b16 %v207
    %v1277 = vunpack.c.h.b16 %v207
    %v1278 = vunpack.c.l.b16 %v208
    %v1279 = vunpack.c.h.b16 %v208
    %v1280 = vunpack.c.l.b16 %v209
    %v1281 = vunpack.c.h.b16 %v209
    %v1282 = vunpack.c.l.b16 %v210
    %v1283 = vunpack.c.h.b16 %v210
    %v1284 = vunpack.c.l.b16 %v211
    %v1285 = vunpack.c.h.b16 %v211
    %v1286 = vunpack.c.l.b16 %v212
    %v1287 = vunpack.c.h.b16 %v212
    %v1288 = vunpack.c.l.b16 %v213
    %v1289 = vunpack.c.h.b16 %v213
    %v1290 = vunpack.c.l.b16 %v214
    %v1291 = vunpack.c.h.b16 %v214
    %v1292 = vunpack.c.l.b16 %v215
    %v1293 = vunpack.c.h.b16 %v215
    %v1294 = vunpack.c.l.b16 %v216
    %v1295 = vunpack.c.h.b16 %v216
    %v1296 = vunpack.c.l.b16 %v217
    %v1297 = vunpack.c.h.b16 %v217
    %v1298 = vunpack.c.l.b16 %v218
    %v1299 = vunpack.c.h.b16 %v218
    %v1300 = vunpack.c.l.b16 %v219
    %v1301 = vunpack.c.h.b16 %v219
    %v1302 = vunpack.c.l.b16 %v220
    %v1303 = vunpack.c.h.b16 %v220
    %v1304 = vunpack.c.l.b16 %v221
    %v1305 = vunpack.c.h.b16 %v221
    %v1306 = vunpack.c.l.b16 %v222
    %v1307 = vunpack.c.h.b16 %v222
    %v1308 = vunpack.c.l.b16 %v223
    %v1309 = vunpack.c.h.b16 %v223
    %v1310 = vunpack.c.l.b16 %v224
    %v1311 = vunpack.c.h.b16 %v224
    %v1312 = vunpack.c.l.b16 %v225
    %v1313 = vunpack.c.h.b16 %v225
    %v1314 = vunpack.c.l.b16 %v226
    %v1315 = vunpack.c.h.b16 %v226
    %v1316 = vunpack.c.l.b16 %v227
    %v1317 = vunpack.c.h.b16 %v227
    %v1318 = vunpack.c.l.b16 %v228
    %v1319 = vunpack.c.h.b16 %v228
    %v1320 = vunpack.c.l.b16 %v229
    %v1321 = vunpack.c.h.b16 %v229
    %v1322 = vunpack.c.l.b16 %v230
    %v1323 = vunpack.c.h.b16 %v230
    %v1324 = vunpack.c.l.b16 %v231
    %v1325 = vunpack.c.h.b16 %v231
    %v1326 = vunpack.c.l.b16 %v232
    %v1327 = vunpack.c.h.b16 %v232
    %v1328 = vunpack.c.l.b16 %v233
    %v1329 = vunpack.c.h.b16 %v233
    %v1330 = vunpack.c.l.b16 %v234
    %v1331 = vunpack.c.h.b16 %v234
    %v1332 = vunpack.c.l.b16 %v235
    %v1333 = vunpack.c.h.b16 %v235
    %v1334 = vunpack.c.l.b16 %v236
    %v1335 = vunpack.c.h.b16 %v236
    %v1336 = vunpack.c.l.b16 %v237
    %v1337 = vunpack.c.h.b16 %v237
    %v1338 = vunpack.c.l.b16 %v238
    %v1339 = vunpack.c.h.b16 %v238
    %v1340 = vunpack.c.l.b16 %v239
    %v1341 = vunpack.c.h.b16 %v239
    %v1342 = vunpack.c.l.b16 %v240
    %v1343 = vunpack.c.h.b16 %v240
    %v1344 = vunpack.c.l.b16 %v241
    %v1345 = vunpack.c.h.b16 %v241
    %v1346 = vunpack.c.l.b16 %v242
    %v1347 = vunpack.c.h.b16 %v242
    %v1348 = vunpack.c.l.b16 %v243
    %v1349 = vunpack.c.h.b16 %v243
    %v1350 = vunpack.c.l.b16 %v244
    %v1351 = vunpack.c.h.b16 %v244
    %v1352 = vunpack.c.l.b16 %v245
    %v1353 = vunpack.c.h.b16 %v245
    %v1354 = vunpack.c.l.b16 %v246
    %v1355 = vunpack.c.h.b16 %v246
    %v1356 = vunpack.c.l.b16 %v247
    %v1357 = vunpack.c.h.b16 %v247
    %v1358 = vunpack.c.l.b16 %v248
    %v1359 = vunpack.c.h.b16 %v248
    %v1360 = vunpack.c.l.b16 %v249
    %v1361 = vunpack.c.h.b16 %v249
    %v1362 = vunpack.c.l.b16 %v250
    %v1363 = vunpack.c.h.b16 %v250
    %v1364 = vunpack.c.l.b16 %v251
    %v1365 = vunpack.c.h.b16 %v251
    %v1366 = vunpack.c.l.b16 %v252
    %v1367 = vunpack.c.h.b16 %v252
    %v1368 = vunpack.c.l.b16 %v253
    %v1369 = vunpack.c.h.b16 %v253
    %v1370 = vunpack.c.l.b16 %v254
    %v1371 = vunpack.c.h.b16 %v254
    %v1372 = vunpack.c.l.b16 %v255
    %v1373 = vunpack.c.h.b16 %v255
    %v1374 = vunpack.c.l.b16 %v256
    %v1375 = vunpack.c.h.b16 %v256
    %v1376 = vunpack.c.l.b16 %v257
    %v1377 = vunpack.c.h.b16 %v257
    %v1378 = vunpack.c.l.b16 %v258
    %v1379 = vunpack.c.h.b16 %v258
    %v1380 = vunpack.c.l.b16 %v259
    %v1381 = vunpack.c.h.b16 %v259
    %v1382 = vunpack.c.l.b16 %v260
    %v1383 = vunpack.c.h.b16 %v260
    %v1384 = vunpack.c.l.b16 %v261
    %v1385 = vunpack.c.h.b16 %v261
    %v1386 = vunpack.c.l.b16 %v262
    %v1387 = vunpack.c.h.b16 %v262
    %v1388 = vunpack.c.l.b16 %v263
    %v1389 = vunpack.c.h.b16 %v263
    %v1390 = vunpack.c.l.b16 %v264
    %v1391 = vunpack.c.h.b16 %v264
    %v1392 = vunpack.c.l.b16 %v265
    %v1393 = vunpack.c.h.b16 %v265
    %v1394 = vunpack.c.l.b16 %v266
    %v1395 = vunpack.c.h.b16 %v266
    %v1396 = vunpack.c.l.b16 %v267
    %v1397 = vunpack.c.h.b16 %v267
    %v1398 = vunpack.c.l.b16 %v268
    %v1399 = vunpack.c.h.b16 %v268
    %v1400 = vunpack.c.l.b16 %v269
    %v1401 = vunpack.c.h.b16 %v269
    %v1402 = vunpack.c.l.b16 %v270
    %v1403 = vunpack.c.h.b16 %v270
    %v1404 = vunpack.c.l.b16 %v271
    %v1405 = vunpack.c.h.b16 %v271
    %v1406 = vunpack.c.l.b16 %v272
    %v1407 = vunpack.c.h.b16 %v272
    %v1408 = vunpack.c.l.b16 %v273
    %v1409 = vunpack.c.h.b16 %v273
    %v1410 = vunpack.c.l.b16 %v274
    %v1411 = vunpack.c.h.b16 %v274
    %v1412 = vunpack.c.l.b16 %v275
    %v1413 = vunpack.c.h.b16 %v275
    %v1414 = vunpack.c.l.b16 %v276
    %v1415 = vunpack.c.h.b16 %v276
    %v1416 = vunpack.c.l.b16 %v277
    %v1417 = vunpack.c.h.b16 %v277
    %v1418 = vunpack.c.l.b16 %v278
    %v1419 = vunpack.c.h.b16 %v278
    %v1420 = vunpack.c.l.b16 %v279
    %v1421 = vunpack.c.h.b16 %v279
    %v1422 = vunpack.c.l.b16 %v280
    %v1423 = vunpack.c.h.b16 %v280
    %v1424 = vunpack.c.l.b16 %v281
    %v1425 = vunpack.c.h.b16 %v281
    %v1426 = vunpack.c.l.b16 %v282
    %v1427 = vunpack.c.h.b16 %v282
    %v1428 = vunpack.c.l.b16 %v283
    %v1429 = vunpack.c.h.b16 %v283
    %v1430 = vunpack.c.l.b16 %v284
    %v1431 = vunpack.c.h.b16 %v284
    %v1432 = vunpack.c.l.b16 %v285
    %v1433 = vunpack.c.h.b16 %v285
    %v1434 = vunpack.c.l.b16 %v286
    %v1435 = vunpack.c.h.b16 %v286
    %v1436 = vunpack.c.l.b16 %v287
    %v1437 = vunpack.c.h.b16 %v287
    %v1438 = vunpack.c.l.b16 %v288
    %v1439 = vunpack.c.h.b16 %v288
    %v1440 = vunpack.c.l.b16 %v289
    %v1441 = vunpack.c.h.b16 %v289
    %v1442 = vunpack.c.l.b16 %v290
    %v1443 = vunpack.c.h.b16 %v290
    %v1444 = vunpack.c.l.b16 %v291
    %v1445 = vunpack.c.h.b16 %v291
    %v1446 = vunpack.c.l.b16 %v292
    %v1447 = vunpack.c.h.b16 %v292
    %v1448 = vunpack.c.l.b16 %v293
    %v1449 = vunpack.c.h.b16 %v293
    %v1450 = vunpack.c.l.b16 %v294
    %v1451 = vunpack.c.h.b16 %v294
    %v1452 = vunpack.c.l.b16 %v295
    %v1453 = vunpack.c.h.b16 %v295
    %v1454 = vunpack.c.l.b16 %v296
    %v1455 = vunpack.c.h.b16 %v296
    %v1456 = vunpack.c.l.b16 %v297
    %v1457 = vunpack.c.h.b16 %v297
    %v1458 = vunpack.c.l.b16 %v298
    %v1459 = vunpack.c.h.b16 %v298
    %v1460 = vunpack.c.l.b16 %v299
    %v1461 = vunpack.c.h.b16 %v299
    %v1462 = vunpack.c.l.b16 %v300
    %v1463 = vunpack.c.h.b16 %v300
    %v1464 = vunpack.c.l.b16 %v301
    %v1465 = vunpack.c.h.b16 %v301
    %v1466 = vunpack.c.l.b16 %v302
    %v1467 = vunpack.c.h.b16 %v302
    %v1468 = vunpack.c.l.b16 %v303
    %v1469 = vunpack.c.h.b16 %v303
    %v1470 = vunpack.c.l.b16 %v304
    %v1471 = vunpack.c.h.b16 %v304
    %v1472 = vunpack.c.l.b16 %v305
    %v1473 = vunpack.c.h.b16 %v305
    %v1474 = vunpack.c.l.b16 %v306
    %v1475 = vunpack.c.h.b16 %v306
    %v1476 = vunpack.c.l.b16 %v307
    %v1477 = vunpack.c.h.b16 %v307
    %v1478 = vunpack.c.l.b16 %v308
    %v1479 = vunpack.c.h.b16 %v308
    %v1480 = vunpack.c.l.b16 %v309
    %v1481 = vunpack.c.h.b16 %v309
    %v1482 = vunpack.c.l.b16 %v310
    %v1483 = vunpack.c.h.b16 %v310
    %v1484 = vunpack.c.l.b16 %v311
    %v1485 = vunpack.c.h.b16 %v311
    %v1486 = vunpack.c.l.b16 %v312
    %v1487 = vunpack.c.h.b16 %v312
    %v1488 = vunpack.c.l.b16 %v313
    %v1489 = vunpack.c.h.b16 %v313
    %v1490 = vunpack.c.l.b16 %v314
    %v1491 = vunpack.c.h.b16 %v314
    %v1492 = vunpack.c.l.b16 %v315
    %v1493 = vunpack.c.h.b16 %v315
    %v1494 = vunpack.c.l.b16 %v316
    %v1495 = vunpack.c.h.b16 %v316
    %v1496 = vunpack.c.l.b16 %v317
    %v1497 = vunpack.c.h.b16 %v317
    %v1498 = vunpack.c.l.b16 %v318
    %v1499 = vunpack.c.h.b16 %v318
    %v1500 = vunpack.c.l.b16 %v319
    %v1501 = vunpack.c.h.b16 %v319
    %v1502 = vunpack.c.l.b16 %v320
    %v1503 = vunpack.c.h.b16 %v320
    %v1504 = vunpack.c.l.b16 %v321
    %v1505 = vunpack.c.h.b16 %v321
    %v1506 = vunpack.c.l.b16 %v322
    %v1507 = vunpack.c.h.b16 %v322
    %v1508 = vunpack.c.l.b16 %v323
    %v1509 = vunpack.c.h.b16 %v323
    %v1510 = vunpack.c.l.b16 %v324
    %v1511 = vunpack.c.h.b16 %v324
    %v1512 = vunpack.c.l.b16 %v325
    %v1513 = vunpack.c.h.b16 %v325
    %v1514 = vunpack.c.l.b16 %v326
    %v1515 = vunpack.c.h.b16 %v326
    %v1516 = vunpack.c.l.b16 %v327
    %v1517 = vunpack.c.h.b16 %v327
    %v1518 = vunpack.c.l.b16 %v328
    %v1519 = vunpack.c.h.b16 %v328
    %v1520 = vunpack.c.l.b16 %v329
    %v1521 = vunpack.c.h.b16 %v329
    %v1522 = vunpack.c.l.b16 %v330
    %v1523 = vunpack.c.h.b16 %v330
    %v1524 = vunpack.c.l.b16 %v331
    %v1525 = vunpack.c.h.b16 %v331
    %v1526 = vunpack.c.l.b16 %v332
    %v1527 = vunpack.c.h.b16 %v332
    %v1528 = vunpack.c.l.b16 %v333
    %v1529 = vunpack.c.h.b16 %v333
    %v1530 = vunpack.c.l.b16 %v334
    %v1531 = vunpack.c.h.b16 %v334
    %v1532 = vunpack.c.l.b16 %v335
    %v1533 = vunpack.c.h.b16 %v335
    %v1534 = vunpack.c.l.b16 %v336
    %v1535 = vunpack.c.h.b16 %v336
    %v1536 = vunpack.c.l.b16 %v337
    %v1537 = vunpack.c.h.b16 %v337
    %v1538 = vunpack.c.l.b16 %v338
    %v1539 = vunpack.c.h.b16 %v338
    %v1540 = vunpack.c.l.b16 %v339
    %v1541 = vunpack.c.h.b16 %v339
    %v1542 = vunpack.c.l.b16 %v340
    %v1543 = vunpack.c.h.b16 %v340
    %v1544 = vunpack.c.l.b16 %v341
    %v1545 = vunpack.c.h.b16 %v341
    %v1546 = vunpack.c.l.b16 %v342
    %v1547 = vunpack.c.h.b16 %v342
    %v1548 = vunpack.c.l.b16 %v343
    %v1549 = vunpack.c.h.b16 %v343
    %v1550 = vunpack.c.l.b16 %v344
    %v1551 = vunpack.c.h.b16 %v344
    %v1552 = vunpack.c.l.b16 %v345
    %v1553 = vunpack.c.h.b16 %v345
    %v1554 = vunpack.c.l.b16 %v346
    %v1555 = vunpack.c.h.b16 %v346
    %v1556 = vunpack.c.l.b16 %v347
    %v1557 = vunpack.c.h.b16 %v347
    %v1558 = vunpack.c.l.b16 %v348
    %v1559 = vunpack.c.h.b16 %v348
    %v1560 = vunpack.c.l.b16 %v349
    %v1561 = vunpack.c.h.b16 %v349
    %v1562 = vunpack.c.l.b16 %v350
    %v1563 = vunpack.c.h.b16 %v350
    %v1564 = vunpack.c.l.b16 %v351
    %v1565 = vunpack.c.h.b16 %v351
    %v1566 = vunpack.c.l.b16 %v352
    %v1567 = vunpack.c.h.b16 %v352
    %v1568 = vunpack.c.l.b16 %v353
    %v1569 = vunpack.c.h.b16 %v353
    %v1570 = vunpack.c.l.b16 %v354
    %v1571 = vunpack.c.h.b16 %v354
    %v1572 = vunpack.c.l.b16 %v355
    %v1573 = vunpack.c.h.b16 %v355
    %v1574 = vunpack.c.l.b16 %v356
    %v1575 = vunpack.c.h.b16 %v356
    %v1576 = vunpack.c.l.b16 %v357
    %v1577 = vunpack.c.h.b16 %v357
    %v1578 = vunpack.c.l.b16 %v358
    %v1579 = vunpack.c.h.b16 %v358
    %v1580 = vunpack.c.l.b16 %v359
    %v1581 = vunpack.c.h.b16 %v359
    %v1582 = vunpack.c.l.b16 %v360
    %v1583 = vunpack.c.h.b16 %v360
    %v1584 = vunpack.c.l.b16 %v361
    %v1585 = vunpack.c.h.b16 %v361
    %v1586 = vunpack.c.l.b16 %v362
    %v1587 = vunpack.c.h.b16 %v362
    %v1588 = vunpack.c.l.b16 %v363
    %v1589 = vunpack.c.h.b16 %v363
    %v1590 = vunpack.c.l.b16 %v364
    %v1591 = vunpack.c.h.b16 %v364
    %v1592 = vunpack.c.l.b16 %v365
    %v1593 = vunpack.c.h.b16 %v365
    %v1594 = vunpack.c.l.b16 %v366
    %v1595 = vunpack.c.h.b16 %v366
    %v1596 = vunpack.c.l.b16 %v367
    %v1597 = vunpack.c.h.b16 %v367
    %v1598 = vunpack.c.l.b16 %v368
    %v1599 = vunpack.c.h.b16 %v368
    %v1600 = vunpack.c.l.b16 %v369
    %v1601 = vunpack.c.h.b16 %v369
    %v1602 = vunpack.c.l.b16 %v370
    %v1603 = vunpack.c.h.b16 %v370
    %v1604 = vunpack.c.l.b16 %v371
    %v1605 = vunpack.c.h.b16 %v371
    %v1606 = vunpack.c.l.b16 %v372
    %v1607 = vunpack.c.h.b16 %v372
    %v1608 = vunpack.c.l.b16 %v373
    %v1609 = vunpack.c.h.b16 %v373
    %v1610 = vunpack.c.l.b16 %v374
    %v1611 = vunpack.c.h.b16 %v374
    %v1612 = vunpack.c.l.b16 %v375
    %v1613 = vunpack.c.h.b16 %v375
    %v1614 = vunpack.c.l.b16 %v376
    %v1615 = vunpack.c.h.b16 %v376
    %v1616 = vunpack.c.l.b16 %v377
    %v1617 = vunpack.c.h.b16 %v377
    %v1618 = vunpack.c.l.b16 %v378
    %v1619 = vunpack.c.h.b16 %v378
    %v1620 = vunpack.c.l.b16 %v379
    %v1621 = vunpack.c.h.b16 %v379
    %v1622 = vunpack.c.l.b16 %v380
    %v1623 = vunpack.c.h.b16 %v380
    %v1624 = vunpack.c.l.b16 %v381
    %v1625 = vunpack.c.h.b16 %v381
    %v1626 = vunpack.c.l.b16 %v382
    %v1627 = vunpack.c.h.b16 %v382
    %v1628 = vunpack.c.l.b16 %v383
    %v1629 = vunpack.c.h.b16 %v383
    %v1630 = vunpack.c.l.b16 %v384
    %v1631 = vunpack.c.h.b16 %v384
    %v1632 = vunpack.c.l.b16 %v385
    %v1633 = vunpack.c.h.b16 %v385
    %v1634 = vunpack.c.l.b16 %v386
    %v1635 = vunpack.c.h.b16 %v386
    %v1636 = vunpack.c.l.b16 %v387
    %v1637 = vunpack.c.h.b16 %v387
    %v1638 = vunpack.c.l.b16 %v388
    %v1639 = vunpack.c.h.b16 %v388
    %v1640 = vunpack.c.l.b16 %v389
    %v1641 = vunpack.c.h.b16 %v389
    %v1642 = vunpack.c.l.b16 %v390
    %v1643 = vunpack.c.h.b16 %v390
    %v1644 = vunpack.c.l.b16 %v391
    %v1645 = vunpack.c.h.b16 %v391
    %v1646 = vunpack.c.l.b16 %v392
    %v1647 = vunpack.c.h.b16 %v392
    %v1648 = vunpack.c.l.b16 %v393
    %v1649 = vunpack.c.h.b16 %v393
    %v1650 = vunpack.c.l.b16 %v394
    %v1651 = vunpack.c.h.b16 %v394
    %v1652 = vunpack.c.l.b16 %v395
    %v1653 = vunpack.c.h.b16 %v395
    %v1654 = vunpack.c.l.b16 %v396
    %v1655 = vunpack.c.h.b16 %v396
    %v1656 = vunpack.c.l.b16 %v397
    %v1657 = vunpack.c.h.b16 %v397
    %v1658 = vunpack.c.l.b16 %v398
    %v1659 = vunpack.c.h.b16 %v398
    %v1660 = vunpack.c.l.b16 %v399
    %v1661 = vunpack.c.h.b16 %v399
    %v1662 = vunpack.c.l.b16 %v400
    %v1663 = vunpack.c.h.b16 %v400
    %v1664 = vunpack.c.l.b16 %v401
    %v1665 = vunpack.c.h.b16 %v401
    %v1666 = vunpack.c.l.b16 %v402
    %v1667 = vunpack.c.h.b16 %v402
    %v1668 = vunpack.c.l.b16 %v403
    %v1669 = vunpack.c.h.b16 %v403
    %v1670 = vunpack.c.l.b16 %v404
    %v1671 = vunpack.c.h.b16 %v404
    %v1672 = vunpack.c.l.b16 %v405
    %v1673 = vunpack.c.h.b16 %v405
    %v1674 = vunpack.c.l.b16 %v406
    %v1675 = vunpack.c.h.b16 %v406
    %v1676 = vunpack.c.l.b16 %v407
    %v1677 = vunpack.c.h.b16 %v407
    %v1678 = vunpack.c.l.b16 %v408
    %v1679 = vunpack.c.h.b16 %v408
    %v1680 = vunpack.c.l.b16 %v409
    %v1681 = vunpack.c.h.b16 %v409
    %v1682 = vunpack.c.l.b16 %v410
    %v1683 = vunpack.c.h.b16 %v410
    %v1684 = vunpack.c.l.b16 %v411
    %v1685 = vunpack.c.h.b16 %v411
    %v1686 = vunpack.c.l.b16 %v412
    %v1687 = vunpack.c.h.b16 %v412
    %v1688 = vunpack.c.l.b16 %v413
    %v1689 = vunpack.c.h.b16 %v413
    %v1690 = vunpack.c.l.b16 %v414
    %v1691 = vunpack.c.h.b16 %v414
    %v1692 = vunpack.c.l.b16 %v415
    %v1693 = vunpack.c.h.b16 %v415
    %v1694 = vunpack.c.l.b16 %v416
    %v1695 = vunpack.c.h.b16 %v416
    %v1696 = vunpack.c.l.b16 %v417
    %v1697 = vunpack.c.h.b16 %v417
    %v1698 = vunpack.c.l.b16 %v418
    %v1699 = vunpack.c.h.b16 %v418
    %v1700 = vunpack.c.l.b16 %v419
    %v1701 = vunpack.c.h.b16 %v419
    %v1702 = vunpack.c.l.b16 %v420
    %v1703 = vunpack.c.h.b16 %v420
    %v1704 = vunpack.c.l.b16 %v421
    %v1705 = vunpack.c.h.b16 %v421
    %v1706 = vunpack.c.l.b16 %v422
    %v1707 = vunpack.c.h.b16 %v422
    %v1708 = vunpack.c.l.b16 %v423
    %v1709 = vunpack.c.h.b16 %v423
    %v1710 = vunpack.c.l.b16 %v424
    %v1711 = vunpack.c.h.b16 %v424
    %v1712 = vunpack.c.l.b16 %v425
    %v1713 = vunpack.c.h.b16 %v425
    %v1714 = vunpack.c.l.b16 %v426
    %v1715 = vunpack.c.h.b16 %v426
    %v1716 = vunpack.c.l.b16 %v427
    %v1717 = vunpack.c.h.b16 %v427
    %v1718 = vunpack.c.l.b16 %v428
    %v1719 = vunpack.c.h.b16 %v428
    %v1720 = vunpack.c.l.b16 %v429
    %v1721 = vunpack.c.h.b16 %v429
    %v1722 = vunpack.c.l.b16 %v430
    %v1723 = vunpack.c.h.b16 %v430
    %v1724 = vunpack.c.l.b16 %v431
    %v1725 = vunpack.c.h.b16 %v431
    %v1726 = vunpack.c.l.b16 %v432
    %v1727 = vunpack.c.h.b16 %v432
    %v1728 = vunpack.c.l.b16 %v433
    %v1729 = vunpack.c.h.b16 %v433
    %v1730 = vunpack.c.l.b16 %v434
    %v1731 = vunpack.c.h.b16 %v434
    %v1732 = vunpack.c.l.b16 %v435
    %v1733 = vunpack.c.h.b16 %v435
    %v1734 = vunpack.c.l.b16 %v436
    %v1735 = vunpack.c.h.b16 %v436
    %v1736 = vunpack.c.l.b16 %v437
    %v1737 = vunpack.c.h.b16 %v437
    %v1738 = vunpack.c.l.b16 %v438
    %v1739 = vunpack.c.h.b16 %v438
    %v1740 = vunpack.c.l.b16 %v439
    %v1741 = vunpack.c.h.b16 %v439
    %v1742 = vunpack.c.l.b16 %v440
    %v1743 = vunpack.c.h.b16 %v440
    %v1744 = vunpack.c.l.b16 %v441
    %v1745 = vunpack.c.h.b16 %v441
    %v1746 = vunpack.c.l.b16 %v442
    %v1747 = vunpack.c.h.b16 %v442
    %v1748 = vunpack.c.l.b16 %v443
    %v1749 = vunpack.c.h.b16 %v443
    %v1750 = vunpack.c.l.b16 %v444
    %v1751 = vunpack.c.h.b16 %v444
    %v1752 = vunpack.c.l.b16 %v445
    %v1753 = vunpack.c.h.b16 %v445
    %v1754 = vunpack.c.l.b16 %v446
    %v1755 = vunpack.c.h.b16 %v446
    %v1756 = vunpack.c.l.b16 %v447
    %v1757 = vunpack.c.h.b16 %v447
    %v1758 = vunpack.c.l.b16 %v448
    %v1759 = vunpack.c.h.b16 %v448
    %v1760 = vunpack.c.l.b16 %v449
    %v1761 = vunpack.c.h.b16 %v449
    %v1762 = vunpack.c.l.b16 %v450
    %v1763 = vunpack.c.h.b16 %v450
    %v1764 = vunpack.c.l.b16 %v451
    %v1765 = vunpack.c.h.b16 %v451
    %v1766 = vunpack.c.l.b16 %v452
    %v1767 = vunpack.c.h.b16 %v452
    %v1768 = vunpack.c.l.b16 %v453
    %v1769 = vunpack.c.h.b16 %v453
    %v1770 = vunpack.c.l.b16 %v454
    %v1771 = vunpack.c.h.b16 %v454
    %v1772 = vunpack.c.l.b16 %v455
    %v1773 = vunpack.c.h.b16 %v455
    %v1774 = vunpack.c.l.b16 %v456
    %v1775 = vunpack.c.h.b16 %v456
    %v1776 = vunpack.c.l.b16 %v457
    %v1777 = vunpack.c.h.b16 %v457
    %v1778 = vunpack.c.l.b16 %v458
    %v1779 = vunpack.c.h.b16 %v458
    %v1780 = vunpack.c.l.b16 %v459
    %v1781 = vunpack.c.h.b16 %v459
    %v1782 = vunpack.c.l.b16 %v460
    %v1783 = vunpack.c.h.b16 %v460
    %v1784 = vunpack.c.l.b16 %v461
    %v1785 = vunpack.c.h.b16 %v461
    %v1786 = vunpack.c.l.b16 %v462
    %v1787 = vunpack.c.h.b16 %v462
    %v1788 = vunpack.c.l.b16 %v463
    %v1789 = vunpack.c.h.b16 %v463
    %v1790 = vunpack.c.l.b16 %v464
    %v1791 = vunpack.c.h.b16 %v464
    %v1792 = vunpack.c.l.b16 %v465
    %v1793 = vunpack.c.h.b16 %v465
    %v1794 = vunpack.c.l.b16 %v466
    %v1795 = vunpack.c.h.b16 %v466
    %v1796 = vunpack.c.l.b16 %v467
    %v1797 = vunpack.c.h.b16 %v467
    %v1798 = vunpack.c.l.b16 %v468
    %v1799 = vunpack.c.h.b16 %v468
    %v1800 = vunpack.c.l.b16 %v469
    %v1801 = vunpack.c.h.b16 %v469
    %v1802 = vunpack.c.l.b16 %v470
    %v1803 = vunpack.c.h.b16 %v470
    %v1804 = vunpack.c.l.b16 %v471
    %v1805 = vunpack.c.h.b16 %v471
    %v1806 = vunpack.c.l.b16 %v472
    %v1807 = vunpack.c.h.b16 %v472
    %v1808 = vunpack.c.l.b16 %v473
    %v1809 = vunpack.c.h.b16 %v473
    %v1810 = vunpack.c.l.b16 %v474
    %v1811 = vunpack.c.h.b16 %v474
    %v1812 = vunpack.c.l.b16 %v475
    %v1813 = vunpack.c.h.b16 %v475
    %v1814 = vunpack.c.l.b16 %v476
    %v1815 = vunpack.c.h.b16 %v476
    %v1816 = vunpack.c.l.b16 %v477
    %v1817 = vunpack.c.h.b16 %v477
    %v1818 = vunpack.c.l.b16 %v478
    %v1819 = vunpack.c.h.b16 %v478
    %v1820 = vunpack.c.l.b16 %v479
    %v1821 = vunpack.c.h.b16 %v479
    %v1822 = vunpack.c.l.b16 %v480
    %v1823 = vunpack.c.h.b16 %v480
    %v1824 = vunpack.c.l.b16 %v481
    %v1825 = vunpack.c.h.b16 %v481
    %v1826 = vunpack.c.l.b16 %v482
    %v1827 = vunpack.c.h.b16 %v482
    %v1828 = vunpack.c.l.b16 %v483
    %v1829 = vunpack.c.h.b16 %v483
    %v1830 = vunpack.c.l.b16 %v484
    %v1831 = vunpack.c.h.b16 %v484
    %v1832 = vunpack.c.l.b16 %v485
    %v1833 = vunpack.c.h.b16 %v485
    %v1834 = vunpack.c.l.b16 %v486
    %v1835 = vunpack.c.h.b16 %v486
    %v1836 = vunpack.c.l.b16 %v487
    %v1837 = vunpack.c.h.b16 %v487
    %v1838 = vunpack.c.l.b16 %v488
    %v1839 = vunpack.c.h.b16 %v488
    %v1840 = vunpack.c.l.b16 %v489
    %v1841 = vunpack.c.h.b16 %v489
    %v1842 = vunpack.c.l.b16 %v490
    %v1843 = vunpack.c.h.b16 %v490
    %v1844 = vunpack.c.l.b16 %v491
    %v1845 = vunpack.c.h.b16 %v491
    %v1846 = vunpack.c.l.b16 %v492
    %v1847 = vunpack.c.h.b16 %v492
    %v1848 = vunpack.c.l.b16 %v493
    %v1849 = vunpack.c.h.b16 %v493
    %v1850 = vunpack.c.l.b16 %v494
    %v1851 = vunpack.c.h.b16 %v494
    %v1852 = vunpack.c.l.b16 %v495
    %v1853 = vunpack.c.h.b16 %v495
    %v1854 = vunpack.c.l.b16 %v496
    %v1855 = vunpack.c.h.b16 %v496
    %v1856 = vunpack.c.l.b16 %v497
    %v1857 = vunpack.c.h.b16 %v497
    %v1858 = vunpack.c.l.b16 %v498
    %v1859 = vunpack.c.h.b16 %v498
    %v1860 = vunpack.c.l.b16 %v499
    %v1861 = vunpack.c.h.b16 %v499
    %v1862 = vunpack.c.l.b16 %v500
    %v1863 = vunpack.c.h.b16 %v500
    %v1864 = vunpack.c.l.b16 %v501
    %v1865 = vunpack.c.h.b16 %v501
    %v1866 = vunpack.c.l.b16 %v502
    %v1867 = vunpack.c.h.b16 %v502
    %v1868 = vunpack.c.l.b16 %v503
    %v1869 = vunpack.c.h.b16 %v503
    %v1870 = vunpack.c.l.b16 %v504
    %v1871 = vunpack.c.h.b16 %v504
    %v1872 = vunpack.c.l.b16 %v505
    %v1873 = vunpack.c.h.b16 %v505
    %v1874 = vunpack.c.l.b16 %v506
    %v1875 = vunpack.c.h.b16 %v506
    %v1876 = vunpack.c.l.b16 %v507
    %v1877 = vunpack.c.h.b16 %v507
    %v1878 = vunpack.c.l.b16 %v508
    %v1879 = vunpack.c.h.b16 %v508
    %v1880 = vunpack.c.l.b16 %v509
    %v1881 = vunpack.c.h.b16 %v509
    %v1882 = vunpack.c.l.b16 %v510
    %v1883 = vunpack.c.h.b16 %v510
    %v1884 = vunpack.c.l.b16 %v511
    %v1885 = vunpack.c.h.b16 %v511
    %v1886 = vunpack.c.l.b16 %v512
    %v1887 = vunpack.c.h.b16 %v512
    %v1888 = vunpack.c.l.b16 %v513
    %v1889 = vunpack.c.h.b16 %v513
    %v1890 = vunpack.c.l.b16 %v514
    %v1891 = vunpack.c.h.b16 %v514
    %v1892 = vunpack.c.l.b16 %v515
    %v1893 = vunpack.c.h.b16 %v515
    %v1894 = vunpack.c.l.b16 %v516
    %v1895 = vunpack.c.h.b16 %v516
    %v1896 = vunpack.c.l.b16 %v517
    %v1897 = vunpack.c.h.b16 %v517
    %v1898 = vpack.c.b16 %v1010, %v1002
    %v1899 = vpack.c.b16 %v1011, %v1003
    %v1900 = vpack.c.b16 %v1012, %v1004
    %v1901 = vpack.c.b16 %v1013, %v1005
    %v1902 = vpack.c.b16 %v1014, %v1006
    %v1903 = vpack.c.b16 %v1015, %v1007
    %v1904 = vpack.c.b16 %v1016, %v1008
    %v1905 = vpack.c.b16 %v1017, %v1009
    %v1906 = vpack.c.b16 %v1026, %v1018
    %v1907 = vpack.c.b16 %v1027, %v1019
    %v1908 = vpack.c.b16 %v1028, %v1020
    %v1909 = vpack.c.b16 %v1029, %v1021
    %v1910 = vpack.c.b16 %v1030, %v1022
    %v1911 = vpack.c.b16 %v1031, %v1023
    %v1912 = vpack.c.b16 %v1032, %v1024
    %v1913 = vpack.c.b16 %v1033, %v1025
    %v1914 = vpack.c.b16 %v1042, %v1034
    %v1915 = vpack.c.b16 %v1043, %v1035
    %v1916 = vpack.c.b16 %v1044, %v1036
    %v1917 = vpack.c.b16 %v1045, %v1037
    %v1918 = vpack.c.b16 %v1046, %v1038
    %v1919 = vpack.c.b16 %v1047, %v1039
    %v1920 = vpack.c.b16 %v1048, %v1040
    %v1921 = vpack.c.b16 %v1049, %v1041
    %v1922 = vpack.c.b16 %v1058, %v1050
    %v1923 = vpack.c.b16 %v1059, %v1051
    %v1924 = vpack.c.b16 %v1060, %v1052
    %v1925 = vpack.c.b16 %v1061, %v1053
    %v1926 = vpack.c.b16 %v1062, %v1054
    %v1927 = vpack.c.b16 %v1063, %v1055
    %v1928 = vpack.c.b16 %v1064, %v1056
    %v1929 = vpack.c.b16 %v1065, %v1057
    %v1930 = vpack.c.b16 %v1074, %v1066
    %v1931 = vpack.c.b16 %v1075, %v1067
    %v1932 = vpack.c.b16 %v1076, %v1068
    %v1933 = vpack.c.b16 %v1077, %v1069
    %v1934 = vpack.c.b16 %v1078, %v1070
    %v1935 = vpack.c.b16 %v1079, %v1071
    %v1936 = vpack.c.b16 %v1080, %v1072
    %v1937 = vpack.c.b16 %v1081, %v1073
    %v1938 = vpack.c.b16 %v1090, %v1082
    %v1939 = vpack.c.b16 %v1091, %v1083
    %v1940 = vpack.c.b16 %v1092, %v1084
    %v1941 = vpack.c.b16 %v1093, %v1085
    %v1942 = vpack.c.b16 %v1094, %v1086
    %v1943 = vpack.c.b16 %v1095, %v1087
    %v1944 = vpack.c.b16 %v1096, %v1088
    %v1945 = vpack.c.b16 %v1097, %v1089
    %v1946 = vpack.c.b16 %v1106, %v1098
    %v1947 = vpack.c.b16 %v1107, %v1099
    %v1948 = vpack.c.b16 %v1108, %v1100
    %v1949 = vpack.c.b16 %v1109, %v1101
    %v1950 = vpack.c.b16 %v1110, %v1102
    %v1951 = vpack.c.b16 %v1111, %v1103
    %v1952 = vpack.c.b16 %v1112, %v1104
    %v1953 = vpack.c.b16 %v1113, %v1105
    %v1954 = vpack.c.b16 %v1122, %v1114
    %v1955 = vpack.c.b16 %v1123, %v1115
    %v1956 = vpack.c.b16 %v1124, %v1116
    %v1957 = vpack.c.b16 %v1125, %v1117
    %v1958 = vpack.c.b16 %v1126, %v1118
    %v1959 = vpack.c.b16 %v1127, %v1119
    %v1960 = vpack.c.b16 %v1128, %v1120
    %v1961 = vpack.c.b16 %v1129, %v1121
    %v1962 = vpack.c.b16 %v1138, %v1130
    %v1963 = vpack.c.b16 %v1139, %v1131
    %v1964 = vpack.c.b16 %v1140, %v1132
    %v1965 = vpack.c.b16 %v1141, %v1133
    %v1966 = vpack.c.b16 %v1142, %v1134
    %v1967 = vpack.c.b16 %v1143, %v1135
    %v1968 = vpack.c.b16 %v1144, %v1136
    %v1969 = vpack.c.b16 %v1145, %v1137
    %v1970 = vpack.c.b16 %v1154, %v1146
    %v1971 = vpack.c.b16 %v1155, %v1147
    %v1972 = vpack.c.b16 %v1156, %v1148
    %v1973 = vpack.c.b16 %v1157, %v1149
    %v1974 = vpack.c.b16 %v1158, %v1150
    %v1975 = vpack.c.b16 %v1159, %v1151
    %v1976 = vpack.c.b16 %v1160, %v1152
    %v1977 = vpack.c.b16 %v1161, %v1153
    %v1978 = vpack.c.b16 %v1170, %v1162
    %v1979 = vpack.c.b16 %v1171, %v1163
    %v1980 = vpack.c.b16 %v1172, %v1164
    %v1981 = vpack.c.b16 %v1173, %v1165
    %v1982 = vpack.c.b16 %v1174, %v1166
    %v1983 = vpack.c.b16 %v1175, %v1167
    %v1984 = vpack.c.b16 %v1176, %v1168
    %v1985 = vpack.c.b16 %v1177, %v1169
    %v1986 = vpack.c.b16 %v1186, %v1178
    %v1987 = vpack.c.b16 %v1187, %v1179
    %v1988 = vpack.c.b16 %v1188, %v1180
    %v1989 = vpack.c.b16 %v1189, %v1181
    %v1990 = vpack.c.b16 %v1190, %v1182
    %v1991 = vpack.c.b16 %v1191, %v1183
    %v1992 = vpack.c.b16 %v1192, %v1184
    %v1993 = vpack.c.b16 %v1193, %v1185
    %v1994 = vpack.c.b16 %v1202, %v1194
    %v1995 = vpack.c.b16 %v1203, %v1195
    %v1996 = vpack.c.b16 %v1204, %v1196
    %v1997 = vpack.c.b16 %v1205, %v1197
    %v1998 = vpack.c.b16 %v1206, %v1198
    %v1999 = vpack.c.b16 %v1207, %v1199
    %v2000 = vpack.c.b16 %v1208, %v1200
    %v2001 = vpack.c.b16 %v1209, %v1201
    %v2002 = vpack.c.b16 %v1218, %v1210
    %v2003 = vpack.c.b16 %v1219, %v1211
    %v2004 = vpack.c.b16 %v1220, %v1212
    %v2005 = vpack.c.b16 %v1221, %v1213
    %v2006 = vpack.c.b16 %v1222, %v1214
    %v2007 = vpack.c.b16 %v1223, %v1215
    %v2008 = vpack.c.b16 %v1224, %v1216
    %v2009 = vpack.c.b16 %v1225, %v1217
    %v2010 = vpack.c.b16 %v1234, %v1226
    %v2011 = vpack.c.b16 %v1235, %v1227
    %v2012 = vpack.c.b16 %v1236, %v1228
    %v2013 = vpack.c.b16 %v1237, %v1229
    %v2014 = vpack.c.b16 %v1238, %v1230
    %v2015 = vpack.c.b16 %v1239, %v1231
    %v2016 = vpack.c.b16 %v1240, %v1232
    %v2017 = vpack.c.b16 %v1241, %v1233
    %v2018 = vpack.c.b16 %v1250, %v1242
    %v2019 = vpack.c.b16 %v1251, %v1243
    %v2020 = vpack.c.b16 %v1252, %v1244
    %v2021 = vpack.c.b16 %v1253, %v1245
    %v2022 = vpack.c.b16 %v1254, %v1246
    %v2023 = vpack.c.b16 %v1255, %v1247
    %v2024 = vpack.c.b16 %v1256, %v1248
    %v2025 = vpack.c.b16 %v1257, %v1249
    %v2026 = vpack.c.b16 %v1266, %v1258
    %v2027 = vpack.c.b16 %v1267, %v1259
    %v2028 = vpack.c.b16 %v1268, %v1260
    %v2029 = vpack.c.b16 %v1269, %v1261
    %v2030 = vpack.c.b16 %v1270, %v1262
    %v2031 = vpack.c.b16 %v1271, %v1263
    %v2032 = vpack.c.b16 %v1272, %v1264
    %v2033 = vpack.c.b16 %v1273, %v1265
    %v2034 = vpack.c.b16 %v1282, %v1274
    %v2035 = vpack.c.b16 %v1283, %v1275
    %v2036 = vpack.c.b16 %v1284, %v1276
    %v2037 = vpack.c.b16 %v1285, %v1277
    %v2038 = vpack.c.b16 %v1286, %v1278
    %v2039 = vpack.c.b16 %v1287, %v1279
    %v2040 = vpack.c.b16 %v1288, %v1280
    %v2041 = vpack.c.b16 %v1289, %v1281
    %v2042 = vpack.c.b16 %v1298, %v1290
    %v2043 = vpack.c.b16 %v1299, %v1291
    %v2044 = vpack.c.b16 %v1300, %v1292
    %v2045 = vpack.c.b16 %v1301, %v1293
    %v2046 = vpack.c.b16 %v1302, %v1294
    %v2047 = vpack.c.b16 %v1303, %v1295
    %v2048 = vpack.c.b16 %v1304, %v1296
    %v2049 = vpack.c.b16 %v1305, %v1297
    %v2050 = vpack.c.b16 %v1314, %v1306
    %v2051 = vpack.c.b16 %v1315, %v1307
    %v2052 = vpack.c.b16 %v1316, %v1308
    %v2053 = vpack.c.b16 %v1317, %v1309
    %v2054 = vpack.c.b16 %v1318, %v1310
    %v2055 = vpack.c.b16 %v1319, %v1311
    %v2056 = vpack.c.b16 %v1320, %v1312
    %v2057 = vpack.c.b16 %v1321, %v1313
    %v2058 = vpack.c.b16 %v1330, %v1322
    %v2059 = vpack.c.b16 %v1331, %v1323
    %v2060 = vpack.c.b16 %v1332, %v1324
    %v2061 = vpack.c.b16 %v1333, %v1325
    %v2062 = vpack.c.b16 %v1334, %v1326
    %v2063 = vpack.c.b16 %v1335, %v1327
    %v2064 = vpack.c.b16 %v1336, %v1328
    %v2065 = vpack.c.b16 %v1337, %v1329
    %v2066 = vpack.c.b16 %v1346, %v1338
    %v2067 = vpack.c.b16 %v1347, %v1339
    %v2068 = vpack.c.b16 %v1348, %v1340
    %v2069 = vpack.c.b16 %v1349, %v1341
    %v2070 = vpack.c.b16 %v1350, %v1342
    %v2071 = vpack.c.b16 %v1351, %v1343
    %v2072 = vpack.c.b16 %v1352, %v1344
    %v2073 = vpack.c.b16 %v1353, %v1345
    %v2074 = vpack.c.b16 %v1362, %v1354
    %v2075 = vpack.c.b16 %v1363, %v1355
    %v2076 = vpack.c.b16 %v1364, %v1356
    %v2077 = vpack.c.b16 %v1365, %v1357
    %v2078 = vpack.c.b16 %v1366, %v1358
    %v2079 = vpack.c.b16 %v1367, %v1359
    %v2080 = vpack.c.b16 %v1368, %v1360
    %v2081 = vpack.c.b16 %v1369, %v1361
    %v2082 = vpack.c.b16 %v1378, %v1370
    %v2083 = vpack.c.b16 %v1379, %v1371
    %v2084 = vpack.c.b16 %v1380, %v1372
    %v2085 = vpack.c.b16 %v1381, %v1373
    %v2086 = vpack.c.b16 %v1382, %v1374
    %v2087 = vpack.c.b16 %v1383, %v1375
    %v2088 = vpack.c.b16 %v1384, %v1376
    %v2089 = vpack.c.b16 %v1385, %v1377
    %v2090 = vpack.c.b16 %v1394, %v1386
    %v2091 = vpack.c.b16 %v1395, %v1387
    %v2092 = vpack.c.b16 %v1396, %v1388
    %v2093 = vpack.c.b16 %v1397, %v1389
    %v2094 = vpack.c.b16 %v1398, %v1390
    %v2095 = vpack.c.b16 %v1399, %v1391
    %v2096 = vpack.c.b16 %v1400, %v1392
    %v2097 = vpack.c.b16 %v1401, %v1393
    %v2098 = vpack.c.b16 %v1410, %v1402
    %v2099 = vpack.c.b16 %v1411, %v1403
    %v2100 = vpack.c.b16 %v1412, %v1404
    %v2101 = vpack.c.b16 %v1413, %v1405
    %v2102 = vpack.c.b16 %v1414, %v1406
    %v2103 = vpack.c.b16 %v1415, %v1407
    %v2104 = vpack.c.b16 %v1416, %v1408
    %v2105 = vpack.c.b16 %v1417, %v1409
    %v2106 = vpack.c.b16 %v1426, %v1418
    %v2107 = vpack.c.b16 %v1427, %v1419
    %v2108 = vpack.c.b16 %v1428, %v1420
    %v2109 = vpack.c.b16 %v1429, %v1421
    %v2110 = vpack.c.b16 %v1430, %v1422
    %v2111 = vpack.c.b16 %v1431, %v1423
    %v2112 = vpack.c.b16 %v1432, %v1424
    %v2113 = vpack.c.b16 %v1433, %v1425
    %v2114 = vpack.c.b16 %v1442, %v1434
    %v2115 = vpack.c.b16 %v1443, %v1435
    %v2116 = vpack.c.b16 %v1444, %v1436
    %v2117 = vpack.c.b16 %v1445, %v1437
    %v2118 = vpack.c.b16 %v1446, %v1438
    %v2119 = vpack.c.b16 %v1447, %v1439
    %v2120 = vpack.c.b16 %v1448, %v1440
    %v2121 = vpack.c.b16 %v1449, %v1441
    %v2122 = vpack.c.b16 %v1458, %v1450
    %v2123 = vpack.c.b16 %v1459, %v1451
    %v2124 = vpack.c.b16 %v1460, %v1452
    %v2125 = vpack.c.b16 %v1461, %v1453
    %v2126 = vpack.c.b16 %v1462, %v1454
    %v2127 = vpack.c.b16 %v1463, %v1455
    %v2128 = vpack.c.b16 %v1464, %v1456
    %v2129 = vpack.c.b16 %v1465, %v1457
    %v2130 = vpack.c.b16 %v1474, %v1466
    %v2131 = vpack.c.b16 %v1475, %v1467
    %v2132 = vpack.c.b16 %v1476, %v1468
    %v2133 = vpack.c.b16 %v1477, %v1469
    %v2134 = vpack.c.b16 %v1478, %v1470
    %v2135 = vpack.c.b16 %v1479, %v1471
    %v2136 = vpack.c.b16 %v1480, %v1472
    %v2137 = vpack.c.b16 %v1481, %v1473
    %v2138 = vpack.c.b16 %v1490, %v1482
    %v2139 = vpack.c.b16 %v1491, %v1483
    %v2140 = vpack.c.b16 %v1492, %v1484
    %v2141 = vpack.c.b16 %v1493, %v1485
    %v2142 = vpack.c.b16 %v1494, %v1486
    %v2143 = vpack.c.b16 %v1495, %v1487
    %v2144 = vpack.c.b16 %v1496, %v1488
    %v2145 = vpack.c.b16 %v1497, %v1489
    %v2146 = vpack.c.b16 %v1506, %v1498
    %v2147 = vpack.c.b16 %v1507, %v1499
    %v2148 = vpack.c.b16 %v1508, %v1500
    %v2149 = vpack.c.b16 %v1509, %v1501
    %v2150 = vpack.c.b16 %v1510, %v1502
    %v2151 = vpack.c.b16 %v1511, %v1503
    %v2152 = vpack.c.b16 %v1512, %v1504
    %v2153 = vpack.c.b16 %v1513, %v1505
    %v2154 = vpack.c.b16 %v1522, %v1514
    %v2155 = vpack.c.b16 %v1523, %v1515
    %v2156 = vpack.c.b16 %v1524, %v1516
    %v2157 = vpack.c.b16 %v1525, %v1517
    %v2158 = vpack.c.b16 %v1526, %v1518
    %v2159 = vpack.c.b16 %v1527, %v1519
    %v2160 = vpack.c.b16 %v1528, %v1520
    %v2161 = vpack.c.b16 %v1529, %v1521
    %v2162 = vpack.c.b16 %v1538, %v1530
    %v2163 = vpack.c.b16 %v1539, %v1531
    %v2164 = vpack.c.b16 %v1540, %v1532
    %v2165 = vpack.c.b16 %v1541, %v1533
    %v2166 = vpack.c.b16 %v1542, %v1534
    %v2167 = vpack.c.b16 %v1543, %v1535
    %v2168 = vpack.c.b16 %v1544, %v1536
    %v2169 = vpack.c.b16 %v1545, %v1537
    %v2170 = vpack.c.b16 %v1554, %v1546
    %v2171 = vpack.c.b16 %v1555, %v1547
    %v2172 = vpack.c.b16 %v1556, %v1548
    %v2173 = vpack.c.b16 %v1557, %v1549
    %v2174 = vpack.c.b16 %v1558, %v1550
    %v2175 = vpack.c.b16 %v1559, %v1551
    %v2176 = vpack.c.b16 %v1560, %v1552
    %v2177 = vpack.c.b16 %v1561, %v1553
    %v2178 = vpack.c.b16 %v1570, %v1562
    %v2179 = vpack.c.b16 %v1571, %v1563
    %v2180 = vpack.c.b16 %v1572, %v1564
    %v2181 = vpack.c.b16 %v1573, %v1565
    %v2182 = vpack.c.b16 %v1574, %v1566
    %v2183 = vpack.c.b16 %v1575, %v1567
    %v2184 = vpack.c.b16 %v1576, %v1568
    %v2185 = vpack.c.b16 %v1577, %v1569
    %v2186 = vpack.c.b16 %v1586, %v1578
    %v2187 = vpack.c.b16 %v1587, %v1579
    %v2188 = vpack.c.b16 %v1588, %v1580
    %v2189 = vpack.c.b16 %v1589, %v1581
    %v2190 = vpack.c.b16 %v1590, %v1582
    %v2191 = vpack.c.b16 %v1591, %v1583
    %v2192 = vpack.c.b16 %v1592, %v1584
    %v2193 = vpack.c.b16 %v1593, %v1585
    %v2194 = vpack.c.b16 %v1602, %v1594
    %v2195 = vpack.c.b16 %v1603, %v1595
    %v2196 = vpack.c.b16 %v1604, %v1596
    %v2197 = vpack.c.b16 %v1605, %v1597
    %v2198 = vpack.c.b16 %v1606, %v1598
    %v2199 = vpack.c.b16 %v1607, %v1599
    %v2200 = vpack.c.b16 %v1608, %v1600
    %v2201 = vpack.c.b16 %v1609, %v1601
    %v2202 = vpack.c.b16 %v1618, %v1610
    %v2203 = vpack.c.b16 %v1619, %v1611
    %v2204 = vpack.c.b16 %v1620, %v1612
    %v2205 = vpack.c.b16 %v1621, %v1613
    %v2206 = vpack.c.b16 %v1622, %v1614
    %v2207 = vpack.c.b16 %v1623, %v1615
    %v2208 = vpack.c.b16 %v1624, %v1616
    %v2209 = vpack.c.b16 %v1625, %v1617
    %v2210 = vpack.c.b16 %v1634, %v1626
    %v2211 = vpack.c.b16 %v1635, %v1627
    %v2212 = vpack.c.b16 %v1636, %v1628
    %v2213 = vpack.c.b16 %v1637, %v1629
    %v2214 = vpack.c.b16 %v1638, %v1630
    %v2215 = vpack.c.b16 %v1639, %v1631
    %v2216 = vpack.c.b16 %v1640, %v1632
    %v2217 = vpack.c.b16 %v1641, %v1633
    %v2218 = vpack.c.b16 %v1650, %v1642
    %v2219 = vpack.c.b16 %v1651, %v1643
    %v2220 = vpack.c.b16 %v1652, %v1644
    %v2221 = vpack.c.b16 %v1653, %v1645
    %v2222 = vpack.c.b16 %v1654, %v1646
    %v2223 = vpack.c.b16 %v1655, %v1647
    %v2224 = vpack.c.b16 %v1656, %v1648
    %v2225 = vpack.c.b16 %v1657, %v1649
    %v2226 = vpack.c.b16 %v1666, %v1658
    %v2227 = vpack.c.b16 %v1667, %v1659
    %v2228 = vpack.c.b16 %v1668, %v1660
    %v2229 = vpack.c.b16 %v1669, %v1661
    %v2230 = vpack.c.b16 %v1670, %v1662
    %v2231 = vpack.c.b16 %v1671, %v1663
    %v2232 = vpack.c.b16 %v1672, %v1664
    %v2233 = vpack.c.b16 %v1673, %v1665
    %v2234 = vpack.c.b16 %v1682, %v1674
    %v2235 = vpack.c.b16 %v1683, %v1675
    %v2236 = vpack.c.b16 %v1684, %v1676
    %v2237 = vpack.c.b16 %v1685, %v1677
    %v2238 = vpack.c.b16 %v1686, %v1678
    %v2239 = vpack.c.b16 %v1687, %v1679
    %v2240 = vpack.c.b16 %v1688, %v1680
    %v2241 = vpack.c.b16 %v1689, %v1681
    %v2242 = vpack.c.b16 %v1698, %v1690
    %v2243 = vpack.c.b16 %v1699, %v1691
    %v2244 = vpack.c.b16 %v1700, %v1692
    %v2245 = vpack.c.b16 %v1701, %v1693
    %v2246 = vpack.c.b16 %v1702, %v1694
    %v2247 = vpack.c.b16 %v1703, %v1695
    %v2248 = vpack.c.b16 %v1704, %v1696
    %v2249 = vpack.c.b16 %v1705, %v1697
    %v2250 = vpack.c.b16 %v1714, %v1706
    %v2251 = vpack.c.b16 %v1715, %v1707
    %v2252 = vpack.c.b16 %v1716, %v1708
    %v2253 = vpack.c.b16 %v1717, %v1709
    %v2254 = vpack.c.b16 %v1718, %v1710
    %v2255 = vpack.c.b16 %v1719, %v1711
    %v2256 = vpack.c.b16 %v1720, %v1712
    %v2257 = vpack.c.b16 %v1721, %v1713
    %v2258 = vpack.c.b16 %v1730, %v1722
    %v2259 = vpack.c.b16 %v1731, %v1723
    %v2260 = vpack.c.b16 %v1732, %v1724
    %v2261 = vpack.c.b16 %v1733, %v1725
    %v2262 = vpack.c.b16 %v1734, %v1726
    %v2263 = vpack.c.b16 %v1735, %v1727
    %v2264 = vpack.c.b16 %v1736, %v1728
    %v2265 = vpack.c.b16 %v1737, %v1729
    %v2266 = vpack.c.b16 %v1746, %v1738
    %v2267 = vpack.c.b16 %v1747, %v1739
    %v2268 = vpack.c.b16 %v1748, %v1740
    %v2269 = vpack.c.b16 %v1749, %v1741
    %v2270 = vpack.c.b16 %v1750, %v1742
    %v2271 = vpack.c.b16 %v1751, %v1743
    %v2272 = vpack.c.b16 %v1752, %v1744
    %v2273 = vpack.c.b16 %v1753, %v1745
    %v2274 = vpack.c.b16 %v1762, %v1754
    %v2275 = vpack.c.b16 %v1763, %v1755
    %v2276 = vpack.c.b16 %v1764, %v1756
    %v2277 = vpack.c.b16 %v1765, %v1757
    %v2278 = vpack.c.b16 %v1766, %v1758
    %v2279 = vpack.c.b16 %v1767, %v1759
    %v2280 = vpack.c.b16 %v1768, %v1760
    %v2281 = vpack.c.b16 %v1769, %v1761
    %v2282 = vpack.c.b16 %v1778, %v1770
    %v2283 = vpack.c.b16 %v1779, %v1771
    %v2284 = vpack.c.b16 %v1780, %v1772
    %v2285 = vpack.c.b16 %v1781, %v1773
    %v2286 = vpack.c.b16 %v1782, %v1774
    %v2287 = vpack.c.b16 %v1783, %v1775
    %v2288 = vpack.c.b16 %v1784, %v1776
    %v2289 = vpack.c.b16 %v1785, %v1777
    %v2290 = vpack.c.b16 %v1794, %v1786
    %v2291 = vpack.c.b16 %v1795, %v1787
    %v2292 = vpack.c.b16 %v1796, %v1788
    %v2293 = vpack.c.b16 %v1797, %v1789
    %v2294 = vpack.c.b16 %v1798, %v1790
    %v2295 = vpack.c.b16 %v1799, %v1791
    %v2296 = vpack.c.b16 %v1800, %v1792
    %v2297 = vpack.c.b16 %v1801, %v1793
    %v2298 = vpack.c.b16 %v1810, %v1802
    %v2299 = vpack.c.b16 %v1811, %v1803
    %v2300 = vpack.c.b16 %v1812, %v1804
    %v2301 = vpack.c.b16 %v1813, %v1805
    %v2302 = vpack.c.b16 %v1814, %v1806
    %v2303 = vpack.c.b16 %v1815, %v1807
    %v2304 = vpack.c.b16 %v1816, %v1808
    %v2305 = vpack.c.b16 %v1817, %v1809
    %v2306 = vpack.c.b16 %v1826, %v1818
    %v2307 = vpack.c.b16 %v1827, %v1819
    %v2308 = vpack.c.b16 %v1828, %v1820
    %v2309 = vpack.c.b16 %v1829, %v1821
    %v2310 = vpack.c.b16 %v1830, %v1822
    %v2311 = vpack.c.b16 %v1831, %v1823
    %v2312 = vpack.c.b16 %v1832, %v1824
    %v2313 = vpack.c.b16 %v1833, %v1825
    %v2314 = vpack.c.b16 %v1842, %v1834
    %v2315 = vpack.c.b16 %v1843, %v1835
    %v2316 = vpack.c.b16 %v1844, %v1836
    %v2317 = vpack.c.b16 %v1845, %v1837
    %v2318 = vpack.c.b16 %v1846, %v1838
    %v2319 = vpack.c.b16 %v1847, %v1839
    %v2320 = vpack.c.b16 %v1848, %v1840
    %v2321 = vpack.c.b16 %v1849, %v1841
    %v2322 = vpack.c.b16 %v1858, %v1850
    %v2323 = vpack.c.b16 %v1859, %v1851
    %v2324 = vpack.c.b16 %v1860, %v1852
    %v2325 = vpack.c.b16 %v1861, %v1853
    %v2326 = vpack.c.b16 %v1862, %v1854
    %v2327 = vpack.c.b16 %v1863, %v1855
    %v2328 = vpack.c.b16 %v1864, %v1856
    %v2329 = vpack.c.b16 %v1865, %v1857
    %v2330 = vpack.c.b16 %v1874, %v1866
    %v2331 = vpack.c.b16 %v1875, %v1867
    %v2332 = vpack.c.b16 %v1876, %v1868
    %v2333 = vpack.c.b16 %v1877, %v1869
    %v2334 = vpack.c.b16 %v1878, %v1870
    %v2335 = vpack.c.b16 %v1879, %v1871
    %v2336 = vpack.c.b16 %v1880, %v1872
    %v2337 = vpack.c.b16 %v1881, %v1873
    %v2338 = vpack.c.b16 %v1890, %v1882
    %v2339 = vpack.c.b16 %v1891, %v1883
    %v2340 = vpack.c.b16 %v1892, %v1884
    %v2341 = vpack.c.b16 %v1893, %v1885
    %v2342 = vpack.c.b16 %v1894, %v1886
    %v2343 = vpack.c.b16 %v1895, %v1887
    %v2344 = vpack.c.b16 %v1896, %v1888
    %v2345 = vpack.c.b16 %v1897, %v1889
    %2794 = vmatpush.bf16.msra.mxu0 %v1954
    %2795 = vmatpush.bf16.msra.mxu0 %v1946
    %2796 = vmatpush.bf16.msra.mxu0 %v1938
    %2797 = vmatpush.bf16.msra.mxu0 %v1930
    %2798 = vmatpush.bf16.msra.mxu0 %v1922
    %2799 = vmatpush.bf16.msra.mxu0 %v1914
    %2800 = vmatpush.bf16.msra.mxu0 %v1906
    %2801 = vmatpush.bf16.msra.mxu0 %v1898
    %2802 = vmatmul.bf16.gmra.mxu0 %v540
    %v2803 = vpop.f32.mrf.mxu0
    %v2804 = vadd.f32 0.0, %v2803
    %v2805 = vpop.f32.mrf.mxu0
    %v2806 = vadd.f32 0.0, %v2805
    %2807 = vdwg.mxu0
    %2808 = vmatpush.bf16.msra.mxu0 %v2018
    %2809 = vmatpush.bf16.msra.mxu0 %v2010
    %2810 = vmatpush.bf16.msra.mxu0 %v2002
    %2811 = vmatpush.bf16.msra.mxu0 %v1994
    %2812 = vmatpush.bf16.msra.mxu0 %v1986
    %2813 = vmatpush.bf16.msra.mxu0 %v1978
    %2814 = vmatpush.bf16.msra.mxu0 %v1970
    %2815 = vmatpush.bf16.msra.mxu0 %v1962
    %2816 = vmatmul.bf16.gmra.mxu0 %v541
    %v2817 = vpop.f32.mrf.mxu0
    %v2818 = vadd.f32 %v2804, %v2817
    %v2819 = vpop.f32.mrf.mxu0
    %v2820 = vadd.f32 %v2806, %v2819
    %2821 = vdwg.mxu0
    %2822 = vmatpush.bf16.msra.mxu0 %v2082
    %2823 = vmatpush.bf16.msra.mxu0 %v2074
    %2824 = vmatpush.bf16.msra.mxu0 %v2066
    %2825 = vmatpush.bf16.msra.mxu0 %v2058
    %2826 = vmatpush.bf16.msra.mxu0 %v2050
    %2827 = vmatpush.bf16.msra.mxu0 %v2042
    %2828 = vmatpush.bf16.msra.mxu0 %v2034
    %2829 = vmatpush.bf16.msra.mxu0 %v2026
    %2830 = vmatmul.bf16.gmra.mxu0 %v542
    %v2831 = vpop.f32.mrf.mxu0
    %v2832 = vadd.f32 %v2818, %v2831
    %v2833 = vpop.f32.mrf.mxu0
    %v2834 = vadd.f32 %v2820, %v2833
    %2835 = vdwg.mxu0
    %2836 = vmatpush.bf16.msra.mxu0 %v2146
    %2837 = vmatpush.bf16.msra.mxu0 %v2138
    %2838 = vmatpush.bf16.msra.mxu0 %v2130
    %2839 = vmatpush.bf16.msra.mxu0 %v2122
    %2840 = vmatpush.bf16.msra.mxu0 %v2114
    %2841 = vmatpush.bf16.msra.mxu0 %v2106
    %2842 = vmatpush.bf16.msra.mxu0 %v2098
    %2843 = vmatpush.bf16.msra.mxu0 %v2090
    %2844 = vmatmul.bf16.gmra.mxu0 %v543
    %v2845 = vpop.f32.mrf.mxu0
    %v2846 = vadd.f32 %v2832, %v2845
    %v2847 = vpop.f32.mrf.mxu0
    %v2848 = vadd.f32 %v2834, %v2847
    %2849 = vdwg.mxu0
    %2850 = vmatpush.bf16.msra.mxu0 %v2210
    %2851 = vmatpush.bf16.msra.mxu0 %v2202
    %2852 = vmatpush.bf16.msra.mxu0 %v2194
    %2853 = vmatpush.bf16.msra.mxu0 %v2186
    %2854 = vmatpush.bf16.msra.mxu0 %v2178
    %2855 = vmatpush.bf16.msra.mxu0 %v2170
    %2856 = vmatpush.bf16.msra.mxu0 %v2162
    %2857 = vmatpush.bf16.msra.mxu0 %v2154
    %2858 = vmatmul.bf16.gmra.mxu0 %v544
    %v2859 = vpop.f32.mrf.mxu0
    %v2860 = vadd.f32 %v2846, %v2859
    %v2861 = vpop.f32.mrf.mxu0
    %v2862 = vadd.f32 %v2848, %v2861
    %2863 = vdwg.mxu0
    %2864 = vmatpush.bf16.msra.mxu0 %v2274
    %2865 = vmatpush.bf16.msra.mxu0 %v2266
    %2866 = vmatpush.bf16.msra.mxu0 %v2258
    %2867 = vmatpush.bf16.msra.mxu0 %v2250
    %2868 = vmatpush.bf16.msra.mxu0 %v2242
    %2869 = vmatpush.bf16.msra.mxu0 %v2234
    %2870 = vmatpush.bf16.msra.mxu0 %v2226
    %2871 = vmatpush.bf16.msra.mxu0 %v2218
    %2872 = vmatmul.bf16.gmra.mxu0 %v545
    %v2873 = vpop.f32.mrf.mxu0
    %v2874 = vadd.f32 %v2860, %v2873
    %v2875 = vpop.f32.mrf.mxu0
    %v2876 = vadd.f32 %v2862, %v2875
    %2877 = vdwg.mxu0
    %2878 = vmatpush.bf16.msra.mxu0 %v2338
    %2879 = vmatpush.bf16.msra.mxu0 %v2330
    %2880 = vmatpush.bf16.msra.mxu0 %v2322
    %2881 = vmatpush.bf16.msra.mxu0 %v2314
    %2882 = vmatpush.bf16.msra.mxu0 %v2306
    %2883 = vmatpush.bf16.msra.mxu0 %v2298
    %2884 = vmatpush.bf16.msra.mxu0 %v2290
    %2885 = vmatpush.bf16.msra.mxu0 %v2282
    %2886 = vmatmul.bf16.gmra.mxu0 %v546
    %v2887 = vpop.f32.mrf.mxu0
    %v2888 = vadd.f32 %v2874, %v2887
    %v2889 = vpop.f32.mrf.mxu0
    %v2890 = vadd.f32 %v2876, %v2889
    %2891 = vdwg.mxu0
    %2892 = vmatpush.bf16.msra.mxu0 %v1955
    %2893 = vmatpush.bf16.msra.mxu0 %v1947
    %2894 = vmatpush.bf16.msra.mxu0 %v1939
    %2895 = vmatpush.bf16.msra.mxu0 %v1931
    %2896 = vmatpush.bf16.msra.mxu0 %v1923
    %2897 = vmatpush.bf16.msra.mxu0 %v1915
    %2898 = vmatpush.bf16.msra.mxu0 %v1907
    %2899 = vmatpush.bf16.msra.mxu0 %v1899
    %2900 = vmatmul.bf16.gmra.mxu0 %v540
    %v2901 = vpop.f32.mrf.mxu0
    %v2902 = vadd.f32 0.0, %v2901
    %v2903 = vpop.f32.mrf.mxu0
    %v2904 = vadd.f32 0.0, %v2903
    %2905 = vdwg.mxu0
    %2906 = vmatpush.bf16.msra.mxu0 %v2019
    %2907 = vmatpush.bf16.msra.mxu0 %v2011
    %2908 = vmatpush.bf16.msra.mxu0 %v2003
    %2909 = vmatpush.bf16.msra.mxu0 %v1995
    %2910 = vmatpush.bf16.msra.mxu0 %v1987
    %2911 = vmatpush.bf16.msra.mxu0 %v1979
    %2912 = vmatpush.bf16.msra.mxu0 %v1971
    %2913 = vmatpush.bf16.msra.mxu0 %v1963
    %2914 = vmatmul.bf16.gmra.mxu0 %v541
    %v2915 = vpop.f32.mrf.mxu0
    %v2916 = vadd.f32 %v2902, %v2915
    %v2917 = vpop.f32.mrf.mxu0
    %v2918 = vadd.f32 %v2904, %v2917
    %2919 = vdwg.mxu0
    %2920 = vmatpush.bf16.msra.mxu0 %v2083
    %2921 = vmatpush.bf16.msra.mxu0 %v2075
    %2922 = vmatpush.bf16.msra.mxu0 %v2067
    %2923 = vmatpush.bf16.msra.mxu0 %v2059
    %2924 = vmatpush.bf16.msra.mxu0 %v2051
    %2925 = vmatpush.bf16.msra.mxu0 %v2043
    %2926 = vmatpush.bf16.msra.mxu0 %v2035
    %2927 = vmatpush.bf16.msra.mxu0 %v2027
    %2928 = vmatmul.bf16.gmra.mxu0 %v542
    %v2929 = vpop.f32.mrf.mxu0
    %v2930 = vadd.f32 %v2916, %v2929
    %v2931 = vpop.f32.mrf.mxu0
    %v2932 = vadd.f32 %v2918, %v2931
    %2933 = vdwg.mxu0
    %2934 = vmatpush.bf16.msra.mxu0 %v2147
    %2935 = vmatpush.bf16.msra.mxu0 %v2139
    %2936 = vmatpush.bf16.msra.mxu0 %v2131
    %2937 = vmatpush.bf16.msra.mxu0 %v2123
    %2938 = vmatpush.bf16.msra.mxu0 %v2115
    %2939 = vmatpush.bf16.msra.mxu0 %v2107
    %2940 = vmatpush.bf16.msra.mxu0 %v2099
    %2941 = vmatpush.bf16.msra.mxu0 %v2091
    %2942 = vmatmul.bf16.gmra.mxu0 %v543
    %v2943 = vpop.f32.mrf.mxu0
    %v2944 = vadd.f32 %v2930, %v2943
    %v2945 = vpop.f32.mrf.mxu0
    %v2946 = vadd.f32 %v2932, %v2945
    %2947 = vdwg.mxu0
    %2948 = vmatpush.bf16.msra.mxu0 %v2211
    %2949 = vmatpush.bf16.msra.mxu0 %v2203
    %2950 = vmatpush.bf16.msra.mxu0 %v2195
    %2951 = vmatpush.bf16.msra.mxu0 %v2187
    %2952 = vmatpush.bf16.msra.mxu0 %v2179
    %2953 = vmatpush.bf16.msra.mxu0 %v2171
    %2954 = vmatpush.bf16.msra.mxu0 %v2163
    %2955 = vmatpush.bf16.msra.mxu0 %v2155
    %2956 = vmatmul.bf16.gmra.mxu0 %v544
    %v2957 = vpop.f32.mrf.mxu0
    %v2958 = vadd.f32 %v2944, %v2957
    %v2959 = vpop.f32.mrf.mxu0
    %v2960 = vadd.f32 %v2946, %v2959
    %2961 = vdwg.mxu0
    %2962 = vmatpush.bf16.msra.mxu0 %v2275
    %2963 = vmatpush.bf16.msra.mxu0 %v2267
    %2964 = vmatpush.bf16.msra.mxu0 %v2259
    %2965 = vmatpush.bf16.msra.mxu0 %v2251
    %2966 = vmatpush.bf16.msra.mxu0 %v2243
    %2967 = vmatpush.bf16.msra.mxu0 %v2235
    %2968 = vmatpush.bf16.msra.mxu0 %v2227
    %2969 = vmatpush.bf16.msra.mxu0 %v2219
    %2970 = vmatmul.bf16.gmra.mxu0 %v545
    %v2971 = vpop.f32.mrf.mxu0
    %v2972 = vadd.f32 %v2958, %v2971
    %v2973 = vpop.f32.mrf.mxu0
    %v2974 = vadd.f32 %v2960, %v2973
    %2975 = vdwg.mxu0
    %2976 = vmatpush.bf16.msra.mxu0 %v2339
    %2977 = vmatpush.bf16.msra.mxu0 %v2331
    %2978 = vmatpush.bf16.msra.mxu0 %v2323
    %2979 = vmatpush.bf16.msra.mxu0 %v2315
    %2980 = vmatpush.bf16.msra.mxu0 %v2307
    %2981 = vmatpush.bf16.msra.mxu0 %v2299
    %2982 = vmatpush.bf16.msra.mxu0 %v2291
    %2983 = vmatpush.bf16.msra.mxu0 %v2283
    %2984 = vmatmul.bf16.gmra.mxu0 %v546
    %v2985 = vpop.f32.mrf.mxu0
    %v2986 = vadd.f32 %v2972, %v2985
    %v2987 = vpop.f32.mrf.mxu0
    %v2988 = vadd.f32 %v2974, %v2987
    %2989 = vdwg.mxu0
    %2990 = vmatpush.bf16.msra.mxu0 %v1956
    %2991 = vmatpush.bf16.msra.mxu0 %v1948
    %2992 = vmatpush.bf16.msra.mxu0 %v1940
    %2993 = vmatpush.bf16.msra.mxu0 %v1932
    %2994 = vmatpush.bf16.msra.mxu0 %v1924
    %2995 = vmatpush.bf16.msra.mxu0 %v1916
    %2996 = vmatpush.bf16.msra.mxu0 %v1908
    %2997 = vmatpush.bf16.msra.mxu0 %v1900
    %2998 = vmatmul.bf16.gmra.mxu0 %v540
    %v2999 = vpop.f32.mrf.mxu0
    %v3000 = vadd.f32 0.0, %v2999
    %v3001 = vpop.f32.mrf.mxu0
    %v3002 = vadd.f32 0.0, %v3001
    %3003 = vdwg.mxu0
    %3004 = vmatpush.bf16.msra.mxu0 %v2020
    %3005 = vmatpush.bf16.msra.mxu0 %v2012
    %3006 = vmatpush.bf16.msra.mxu0 %v2004
    %3007 = vmatpush.bf16.msra.mxu0 %v1996
    %3008 = vmatpush.bf16.msra.mxu0 %v1988
    %3009 = vmatpush.bf16.msra.mxu0 %v1980
    %3010 = vmatpush.bf16.msra.mxu0 %v1972
    %3011 = vmatpush.bf16.msra.mxu0 %v1964
    %3012 = vmatmul.bf16.gmra.mxu0 %v541
    %v3013 = vpop.f32.mrf.mxu0
    %v3014 = vadd.f32 %v3000, %v3013
    %v3015 = vpop.f32.mrf.mxu0
    %v3016 = vadd.f32 %v3002, %v3015
    %3017 = vdwg.mxu0
    %3018 = vmatpush.bf16.msra.mxu0 %v2084
    %3019 = vmatpush.bf16.msra.mxu0 %v2076
    %3020 = vmatpush.bf16.msra.mxu0 %v2068
    %3021 = vmatpush.bf16.msra.mxu0 %v2060
    %3022 = vmatpush.bf16.msra.mxu0 %v2052
    %3023 = vmatpush.bf16.msra.mxu0 %v2044
    %3024 = vmatpush.bf16.msra.mxu0 %v2036
    %3025 = vmatpush.bf16.msra.mxu0 %v2028
    %3026 = vmatmul.bf16.gmra.mxu0 %v542
    %v3027 = vpop.f32.mrf.mxu0
    %v3028 = vadd.f32 %v3014, %v3027
    %v3029 = vpop.f32.mrf.mxu0
    %v3030 = vadd.f32 %v3016, %v3029
    %3031 = vdwg.mxu0
    %3032 = vmatpush.bf16.msra.mxu0 %v2148
    %3033 = vmatpush.bf16.msra.mxu0 %v2140
    %3034 = vmatpush.bf16.msra.mxu0 %v2132
    %3035 = vmatpush.bf16.msra.mxu0 %v2124
    %3036 = vmatpush.bf16.msra.mxu0 %v2116
    %3037 = vmatpush.bf16.msra.mxu0 %v2108
    %3038 = vmatpush.bf16.msra.mxu0 %v2100
    %3039 = vmatpush.bf16.msra.mxu0 %v2092
    %3040 = vmatmul.bf16.gmra.mxu0 %v543
    %v3041 = vpop.f32.mrf.mxu0
    %v3042 = vadd.f32 %v3028, %v3041
    %v3043 = vpop.f32.mrf.mxu0
    %v3044 = vadd.f32 %v3030, %v3043
    %3045 = vdwg.mxu0
    %3046 = vmatpush.bf16.msra.mxu0 %v2212
    %3047 = vmatpush.bf16.msra.mxu0 %v2204
    %3048 = vmatpush.bf16.msra.mxu0 %v2196
    %3049 = vmatpush.bf16.msra.mxu0 %v2188
    %3050 = vmatpush.bf16.msra.mxu0 %v2180
    %3051 = vmatpush.bf16.msra.mxu0 %v2172
    %3052 = vmatpush.bf16.msra.mxu0 %v2164
    %3053 = vmatpush.bf16.msra.mxu0 %v2156
    %3054 = vmatmul.bf16.gmra.mxu0 %v544
    %v3055 = vpop.f32.mrf.mxu0
    %v3056 = vadd.f32 %v3042, %v3055
    %v3057 = vpop.f32.mrf.mxu0
    %v3058 = vadd.f32 %v3044, %v3057
    %3059 = vdwg.mxu0
    %3060 = vmatpush.bf16.msra.mxu0 %v2276
    %3061 = vmatpush.bf16.msra.mxu0 %v2268
    %3062 = vmatpush.bf16.msra.mxu0 %v2260
    %3063 = vmatpush.bf16.msra.mxu0 %v2252
    %3064 = vmatpush.bf16.msra.mxu0 %v2244
    %3065 = vmatpush.bf16.msra.mxu0 %v2236
    %3066 = vmatpush.bf16.msra.mxu0 %v2228
    %3067 = vmatpush.bf16.msra.mxu0 %v2220
    %3068 = vmatmul.bf16.gmra.mxu0 %v545
    %v3069 = vpop.f32.mrf.mxu0
    %v3070 = vadd.f32 %v3056, %v3069
    %v3071 = vpop.f32.mrf.mxu0
    %v3072 = vadd.f32 %v3058, %v3071
    %3073 = vdwg.mxu0
    %3074 = vmatpush.bf16.msra.mxu0 %v2340
    %3075 = vmatpush.bf16.msra.mxu0 %v2332
    %3076 = vmatpush.bf16.msra.mxu0 %v2324
    %3077 = vmatpush.bf16.msra.mxu0 %v2316
    %3078 = vmatpush.bf16.msra.mxu0 %v2308
    %3079 = vmatpush.bf16.msra.mxu0 %v2300
    %3080 = vmatpush.bf16.msra.mxu0 %v2292
    %3081 = vmatpush.bf16.msra.mxu0 %v2284
    %3082 = vmatmul.bf16.gmra.mxu0 %v546
    %v3083 = vpop.f32.mrf.mxu0
    %v3084 = vadd.f32 %v3070, %v3083
    %v3085 = vpop.f32.mrf.mxu0
    %v3086 = vadd.f32 %v3072, %v3085
    %3087 = vdwg.mxu0
    %3088 = vmatpush.bf16.msra.mxu0 %v1957
    %3089 = vmatpush.bf16.msra.mxu0 %v1949
    %3090 = vmatpush.bf16.msra.mxu0 %v1941
    %3091 = vmatpush.bf16.msra.mxu0 %v1933
    %3092 = vmatpush.bf16.msra.mxu0 %v1925
    %3093 = vmatpush.bf16.msra.mxu0 %v1917
    %3094 = vmatpush.bf16.msra.mxu0 %v1909
    %3095 = vmatpush.bf16.msra.mxu0 %v1901
    %3096 = vmatmul.bf16.gmra.mxu0 %v540
    %v3097 = vpop.f32.mrf.mxu0
    %v3098 = vadd.f32 0.0, %v3097
    %v3099 = vpop.f32.mrf.mxu0
    %v3100 = vadd.f32 0.0, %v3099
    %3101 = vdwg.mxu0
    %3102 = vmatpush.bf16.msra.mxu0 %v2021
    %3103 = vmatpush.bf16.msra.mxu0 %v2013
    %3104 = vmatpush.bf16.msra.mxu0 %v2005
    %3105 = vmatpush.bf16.msra.mxu0 %v1997
    %3106 = vmatpush.bf16.msra.mxu0 %v1989
    %3107 = vmatpush.bf16.msra.mxu0 %v1981
    %3108 = vmatpush.bf16.msra.mxu0 %v1973
    %3109 = vmatpush.bf16.msra.mxu0 %v1965
    %3110 = vmatmul.bf16.gmra.mxu0 %v541
    %v3111 = vpop.f32.mrf.mxu0
    %v3112 = vadd.f32 %v3098, %v3111
    %v3113 = vpop.f32.mrf.mxu0
    %v3114 = vadd.f32 %v3100, %v3113
    %3115 = vdwg.mxu0
    %3116 = vmatpush.bf16.msra.mxu0 %v2085
    %3117 = vmatpush.bf16.msra.mxu0 %v2077
    %3118 = vmatpush.bf16.msra.mxu0 %v2069
    %3119 = vmatpush.bf16.msra.mxu0 %v2061
    %3120 = vmatpush.bf16.msra.mxu0 %v2053
    %3121 = vmatpush.bf16.msra.mxu0 %v2045
    %3122 = vmatpush.bf16.msra.mxu0 %v2037
    %3123 = vmatpush.bf16.msra.mxu0 %v2029
    %3124 = vmatmul.bf16.gmra.mxu0 %v542
    %v3125 = vpop.f32.mrf.mxu0
    %v3126 = vadd.f32 %v3112, %v3125
    %v3127 = vpop.f32.mrf.mxu0
    %v3128 = vadd.f32 %v3114, %v3127
    %3129 = vdwg.mxu0
    %3130 = vmatpush.bf16.msra.mxu0 %v2149
    %3131 = vmatpush.bf16.msra.mxu0 %v2141
    %3132 = vmatpush.bf16.msra.mxu0 %v2133
    %3133 = vmatpush.bf16.msra.mxu0 %v2125
    %3134 = vmatpush.bf16.msra.mxu0 %v2117
    %3135 = vmatpush.bf16.msra.mxu0 %v2109
    %3136 = vmatpush.bf16.msra.mxu0 %v2101
    %3137 = vmatpush.bf16.msra.mxu0 %v2093
    %3138 = vmatmul.bf16.gmra.mxu0 %v543
    %v3139 = vpop.f32.mrf.mxu0
    %v3140 = vadd.f32 %v3126, %v3139
    %v3141 = vpop.f32.mrf.mxu0
    %v3142 = vadd.f32 %v3128, %v3141
    %3143 = vdwg.mxu0
    %3144 = vmatpush.bf16.msra.mxu0 %v2213
    %3145 = vmatpush.bf16.msra.mxu0 %v2205
    %3146 = vmatpush.bf16.msra.mxu0 %v2197
    %3147 = vmatpush.bf16.msra.mxu0 %v2189
    %3148 = vmatpush.bf16.msra.mxu0 %v2181
    %3149 = vmatpush.bf16.msra.mxu0 %v2173
    %3150 = vmatpush.bf16.msra.mxu0 %v2165
    %3151 = vmatpush.bf16.msra.mxu0 %v2157
    %3152 = vmatmul.bf16.gmra.mxu0 %v544
    %v3153 = vpop.f32.mrf.mxu0
    %v3154 = vadd.f32 %v3140, %v3153
    %v3155 = vpop.f32.mrf.mxu0
    %v3156 = vadd.f32 %v3142, %v3155
    %3157 = vdwg.mxu0
    %3158 = vmatpush.bf16.msra.mxu0 %v2277
    %3159 = vmatpush.bf16.msra.mxu0 %v2269
    %3160 = vmatpush.bf16.msra.mxu0 %v2261
    %3161 = vmatpush.bf16.msra.mxu0 %v2253
    %3162 = vmatpush.bf16.msra.mxu0 %v2245
    %3163 = vmatpush.bf16.msra.mxu0 %v2237
    %3164 = vmatpush.bf16.msra.mxu0 %v2229
    %3165 = vmatpush.bf16.msra.mxu0 %v2221
    %3166 = vmatmul.bf16.gmra.mxu0 %v545
    %v3167 = vpop.f32.mrf.mxu0
    %v3168 = vadd.f32 %v3154, %v3167
    %v3169 = vpop.f32.mrf.mxu0
    %v3170 = vadd.f32 %v3156, %v3169
    %3171 = vdwg.mxu0
    %3172 = vmatpush.bf16.msra.mxu0 %v2341
    %3173 = vmatpush.bf16.msra.mxu0 %v2333
    %3174 = vmatpush.bf16.msra.mxu0 %v2325
    %3175 = vmatpush.bf16.msra.mxu0 %v2317
    %3176 = vmatpush.bf16.msra.mxu0 %v2309
    %3177 = vmatpush.bf16.msra.mxu0 %v2301
    %3178 = vmatpush.bf16.msra.mxu0 %v2293
    %3179 = vmatpush.bf16.msra.mxu0 %v2285
    %3180 = vmatmul.bf16.gmra.mxu0 %v546
    %v3181 = vpop.f32.mrf.mxu0
    %v3182 = vadd.f32 %v3168, %v3181
    %v3183 = vpop.f32.mrf.mxu0
    %v3184 = vadd.f32 %v3170, %v3183
    %3185 = vdwg.mxu0
    %3186 = vmatpush.bf16.msra.mxu0 %v1958
    %3187 = vmatpush.bf16.msra.mxu0 %v1950
    %3188 = vmatpush.bf16.msra.mxu0 %v1942
    %3189 = vmatpush.bf16.msra.mxu0 %v1934
    %3190 = vmatpush.bf16.msra.mxu0 %v1926
    %3191 = vmatpush.bf16.msra.mxu0 %v1918
    %3192 = vmatpush.bf16.msra.mxu0 %v1910
    %3193 = vmatpush.bf16.msra.mxu0 %v1902
    %3194 = vmatmul.bf16.gmra.mxu0 %v540
    %v3195 = vpop.f32.mrf.mxu0
    %v3196 = vadd.f32 0.0, %v3195
    %v3197 = vpop.f32.mrf.mxu0
    %v3198 = vadd.f32 0.0, %v3197
    %3199 = vdwg.mxu0
    %3200 = vmatpush.bf16.msra.mxu0 %v2022
    %3201 = vmatpush.bf16.msra.mxu0 %v2014
    %3202 = vmatpush.bf16.msra.mxu0 %v2006
    %3203 = vmatpush.bf16.msra.mxu0 %v1998
    %3204 = vmatpush.bf16.msra.mxu0 %v1990
    %3205 = vmatpush.bf16.msra.mxu0 %v1982
    %3206 = vmatpush.bf16.msra.mxu0 %v1974
    %3207 = vmatpush.bf16.msra.mxu0 %v1966
    %3208 = vmatmul.bf16.gmra.mxu0 %v541
    %v3209 = vpop.f32.mrf.mxu0
    %v3210 = vadd.f32 %v3196, %v3209
    %v3211 = vpop.f32.mrf.mxu0
    %v3212 = vadd.f32 %v3198, %v3211
    %3213 = vdwg.mxu0
    %3214 = vmatpush.bf16.msra.mxu0 %v2086
    %3215 = vmatpush.bf16.msra.mxu0 %v2078
    %3216 = vmatpush.bf16.msra.mxu0 %v2070
    %3217 = vmatpush.bf16.msra.mxu0 %v2062
    %3218 = vmatpush.bf16.msra.mxu0 %v2054
    %3219 = vmatpush.bf16.msra.mxu0 %v2046
    %3220 = vmatpush.bf16.msra.mxu0 %v2038
    %3221 = vmatpush.bf16.msra.mxu0 %v2030
    %3222 = vmatmul.bf16.gmra.mxu0 %v542
    %v3223 = vpop.f32.mrf.mxu0
    %v3224 = vadd.f32 %v3210, %v3223
    %v3225 = vpop.f32.mrf.mxu0
    %v3226 = vadd.f32 %v3212, %v3225
    %3227 = vdwg.mxu0
    %3228 = vmatpush.bf16.msra.mxu0 %v2150
    %3229 = vmatpush.bf16.msra.mxu0 %v2142
    %3230 = vmatpush.bf16.msra.mxu0 %v2134
    %3231 = vmatpush.bf16.msra.mxu0 %v2126
    %3232 = vmatpush.bf16.msra.mxu0 %v2118
    %3233 = vmatpush.bf16.msra.mxu0 %v2110
    %3234 = vmatpush.bf16.msra.mxu0 %v2102
    %3235 = vmatpush.bf16.msra.mxu0 %v2094
    %3236 = vmatmul.bf16.gmra.mxu0 %v543
    %v3237 = vpop.f32.mrf.mxu0
    %v3238 = vadd.f32 %v3224, %v3237
    %v3239 = vpop.f32.mrf.mxu0
    %v3240 = vadd.f32 %v3226, %v3239
    %3241 = vdwg.mxu0
    %3242 = vmatpush.bf16.msra.mxu0 %v2214
    %3243 = vmatpush.bf16.msra.mxu0 %v2206
    %3244 = vmatpush.bf16.msra.mxu0 %v2198
    %3245 = vmatpush.bf16.msra.mxu0 %v2190
    %3246 = vmatpush.bf16.msra.mxu0 %v2182
    %3247 = vmatpush.bf16.msra.mxu0 %v2174
    %3248 = vmatpush.bf16.msra.mxu0 %v2166
    %3249 = vmatpush.bf16.msra.mxu0 %v2158
    %3250 = vmatmul.bf16.gmra.mxu0 %v544
    %v3251 = vpop.f32.mrf.mxu0
    %v3252 = vadd.f32 %v3238, %v3251
    %v3253 = vpop.f32.mrf.mxu0
    %v3254 = vadd.f32 %v3240, %v3253
    %3255 = vdwg.mxu0
    %3256 = vmatpush.bf16.msra.mxu0 %v2278
    %3257 = vmatpush.bf16.msra.mxu0 %v2270
    %3258 = vmatpush.bf16.msra.mxu0 %v2262
    %3259 = vmatpush.bf16.msra.mxu0 %v2254
    %3260 = vmatpush.bf16.msra.mxu0 %v2246
    %3261 = vmatpush.bf16.msra.mxu0 %v2238
    %3262 = vmatpush.bf16.msra.mxu0 %v2230
    %3263 = vmatpush.bf16.msra.mxu0 %v2222
    %3264 = vmatmul.bf16.gmra.mxu0 %v545
    %v3265 = vpop.f32.mrf.mxu0
    %v3266 = vadd.f32 %v3252, %v3265
    %v3267 = vpop.f32.mrf.mxu0
    %v3268 = vadd.f32 %v3254, %v3267
    %3269 = vdwg.mxu0
    %3270 = vmatpush.bf16.msra.mxu0 %v2342
    %3271 = vmatpush.bf16.msra.mxu0 %v2334
    %3272 = vmatpush.bf16.msra.mxu0 %v2326
    %3273 = vmatpush.bf16.msra.mxu0 %v2318
    %3274 = vmatpush.bf16.msra.mxu0 %v2310
    %3275 = vmatpush.bf16.msra.mxu0 %v2302
    %3276 = vmatpush.bf16.msra.mxu0 %v2294
    %3277 = vmatpush.bf16.msra.mxu0 %v2286
    %3278 = vmatmul.bf16.gmra.mxu0 %v546
    %v3279 = vpop.f32.mrf.mxu0
    %v3280 = vadd.f32 %v3266, %v3279
    %v3281 = vpop.f32.mrf.mxu0
    %v3282 = vadd.f32 %v3268, %v3281
    %3283 = vdwg.mxu0
    %3284 = vmatpush.bf16.msra.mxu0 %v1959
    %3285 = vmatpush.bf16.msra.mxu0 %v1951
    %3286 = vmatpush.bf16.msra.mxu0 %v1943
    %3287 = vmatpush.bf16.msra.mxu0 %v1935
    %3288 = vmatpush.bf16.msra.mxu0 %v1927
    %3289 = vmatpush.bf16.msra.mxu0 %v1919
    %3290 = vmatpush.bf16.msra.mxu0 %v1911
    %3291 = vmatpush.bf16.msra.mxu0 %v1903
    %3292 = vmatmul.bf16.gmra.mxu0 %v540
    %v3293 = vpop.f32.mrf.mxu0
    %v3294 = vadd.f32 0.0, %v3293
    %v3295 = vpop.f32.mrf.mxu0
    %v3296 = vadd.f32 0.0, %v3295
    %3297 = vdwg.mxu0
    %3298 = vmatpush.bf16.msra.mxu0 %v2023
    %3299 = vmatpush.bf16.msra.mxu0 %v2015
    %3300 = vmatpush.bf16.msra.mxu0 %v2007
    %3301 = vmatpush.bf16.msra.mxu0 %v1999
    %3302 = vmatpush.bf16.msra.mxu0 %v1991
    %3303 = vmatpush.bf16.msra.mxu0 %v1983
    %3304 = vmatpush.bf16.msra.mxu0 %v1975
    %3305 = vmatpush.bf16.msra.mxu0 %v1967
    %3306 = vmatmul.bf16.gmra.mxu0 %v541
    %v3307 = vpop.f32.mrf.mxu0
    %v3308 = vadd.f32 %v3294, %v3307
    %v3309 = vpop.f32.mrf.mxu0
    %v3310 = vadd.f32 %v3296, %v3309
    %3311 = vdwg.mxu0
    %3312 = vmatpush.bf16.msra.mxu0 %v2087
    %3313 = vmatpush.bf16.msra.mxu0 %v2079
    %3314 = vmatpush.bf16.msra.mxu0 %v2071
    %3315 = vmatpush.bf16.msra.mxu0 %v2063
    %3316 = vmatpush.bf16.msra.mxu0 %v2055
    %3317 = vmatpush.bf16.msra.mxu0 %v2047
    %3318 = vmatpush.bf16.msra.mxu0 %v2039
    %3319 = vmatpush.bf16.msra.mxu0 %v2031
    %3320 = vmatmul.bf16.gmra.mxu0 %v542
    %v3321 = vpop.f32.mrf.mxu0
    %v3322 = vadd.f32 %v3308, %v3321
    %v3323 = vpop.f32.mrf.mxu0
    %v3324 = vadd.f32 %v3310, %v3323
    %3325 = vdwg.mxu0
    %3326 = vmatpush.bf16.msra.mxu0 %v2151
    %3327 = vmatpush.bf16.msra.mxu0 %v2143
    %3328 = vmatpush.bf16.msra.mxu0 %v2135
    %3329 = vmatpush.bf16.msra.mxu0 %v2127
    %3330 = vmatpush.bf16.msra.mxu0 %v2119
    %3331 = vmatpush.bf16.msra.mxu0 %v2111
    %3332 = vmatpush.bf16.msra.mxu0 %v2103
    %3333 = vmatpush.bf16.msra.mxu0 %v2095
    %3334 = vmatmul.bf16.gmra.mxu0 %v543
    %v3335 = vpop.f32.mrf.mxu0
    %v3336 = vadd.f32 %v3322, %v3335
    %v3337 = vpop.f32.mrf.mxu0
    %v3338 = vadd.f32 %v3324, %v3337
    %3339 = vdwg.mxu0
    %3340 = vmatpush.bf16.msra.mxu0 %v2215
    %3341 = vmatpush.bf16.msra.mxu0 %v2207
    %3342 = vmatpush.bf16.msra.mxu0 %v2199
    %3343 = vmatpush.bf16.msra.mxu0 %v2191
    %3344 = vmatpush.bf16.msra.mxu0 %v2183
    %3345 = vmatpush.bf16.msra.mxu0 %v2175
    %3346 = vmatpush.bf16.msra.mxu0 %v2167
    %3347 = vmatpush.bf16.msra.mxu0 %v2159
    %3348 = vmatmul.bf16.gmra.mxu0 %v544
    %v3349 = vpop.f32.mrf.mxu0
    %v3350 = vadd.f32 %v3336, %v3349
    %v3351 = vpop.f32.mrf.mxu0
    %v3352 = vadd.f32 %v3338, %v3351
    %3353 = vdwg.mxu0
    %3354 = vmatpush.bf16.msra.mxu0 %v2279
    %3355 = vmatpush.bf16.msra.mxu0 %v2271
    %3356 = vmatpush.bf16.msra.mxu0 %v2263
    %3357 = vmatpush.bf16.msra.mxu0 %v2255
    %3358 = vmatpush.bf16.msra.mxu0 %v2247
    %3359 = vmatpush.bf16.msra.mxu0 %v2239
    %3360 = vmatpush.bf16.msra.mxu0 %v2231
    %3361 = vmatpush.bf16.msra.mxu0 %v2223
    %3362 = vmatmul.bf16.gmra.mxu0 %v545
    %v3363 = vpop.f32.mrf.mxu0
    %v3364 = vadd.f32 %v3350, %v3363
    %v3365 = vpop.f32.mrf.mxu0
    %v3366 = vadd.f32 %v3352, %v3365
    %3367 = vdwg.mxu0
    %3368 = vmatpush.bf16.msra.mxu0 %v2343
    %3369 = vmatpush.bf16.msra.mxu0 %v2335
    %3370 = vmatpush.bf16.msra.mxu0 %v2327
    %3371 = vmatpush.bf16.msra.mxu0 %v2319
    %3372 = vmatpush.bf16.msra.mxu0 %v2311
    %3373 = vmatpush.bf16.msra.mxu0 %v2303
    %3374 = vmatpush.bf16.msra.mxu0 %v2295
    %3375 = vmatpush.bf16.msra.mxu0 %v2287
    %3376 = vmatmul.bf16.gmra.mxu0 %v546
    %v3377 = vpop.f32.mrf.mxu0
    %v3378 = vadd.f32 %v3364, %v3377
    %v3379 = vpop.f32.mrf.mxu0
    %v3380 = vadd.f32 %v3366, %v3379
    %3381 = vdwg.mxu0
    %3382 = vmatpush.bf16.msra.mxu0 %v1960
    %3383 = vmatpush.bf16.msra.mxu0 %v1952
    %3384 = vmatpush.bf16.msra.mxu0 %v1944
    %3385 = vmatpush.bf16.msra.mxu0 %v1936
    %3386 = vmatpush.bf16.msra.mxu0 %v1928
    %3387 = vmatpush.bf16.msra.mxu0 %v1920
    %3388 = vmatpush.bf16.msra.mxu0 %v1912
    %3389 = vmatpush.bf16.msra.mxu0 %v1904
    %3390 = vmatmul.bf16.gmra.mxu0 %v540
    %v3391 = vpop.f32.mrf.mxu0
    %v3392 = vadd.f32 0.0, %v3391
    %v3393 = vpop.f32.mrf.mxu0
    %v3394 = vadd.f32 0.0, %v3393
    %3395 = vdwg.mxu0
    %3396 = vmatpush.bf16.msra.mxu0 %v2024
    %3397 = vmatpush.bf16.msra.mxu0 %v2016
    %3398 = vmatpush.bf16.msra.mxu0 %v2008
    %3399 = vmatpush.bf16.msra.mxu0 %v2000
    %3400 = vmatpush.bf16.msra.mxu0 %v1992
    %3401 = vmatpush.bf16.msra.mxu0 %v1984
    %3402 = vmatpush.bf16.msra.mxu0 %v1976
    %3403 = vmatpush.bf16.msra.mxu0 %v1968
    %3404 = vmatmul.bf16.gmra.mxu0 %v541
    %v3405 = vpop.f32.mrf.mxu0
    %v3406 = vadd.f32 %v3392, %v3405
    %v3407 = vpop.f32.mrf.mxu0
    %v3408 = vadd.f32 %v3394, %v3407
    %3409 = vdwg.mxu0
    %3410 = vmatpush.bf16.msra.mxu0 %v2088
    %3411 = vmatpush.bf16.msra.mxu0 %v2080
    %3412 = vmatpush.bf16.msra.mxu0 %v2072
    %3413 = vmatpush.bf16.msra.mxu0 %v2064
    %3414 = vmatpush.bf16.msra.mxu0 %v2056
    %3415 = vmatpush.bf16.msra.mxu0 %v2048
    %3416 = vmatpush.bf16.msra.mxu0 %v2040
    %3417 = vmatpush.bf16.msra.mxu0 %v2032
    %3418 = vmatmul.bf16.gmra.mxu0 %v542
    %v3419 = vpop.f32.mrf.mxu0
    %v3420 = vadd.f32 %v3406, %v3419
    %v3421 = vpop.f32.mrf.mxu0
    %v3422 = vadd.f32 %v3408, %v3421
    %3423 = vdwg.mxu0
    %3424 = vmatpush.bf16.msra.mxu0 %v2152
    %3425 = vmatpush.bf16.msra.mxu0 %v2144
    %3426 = vmatpush.bf16.msra.mxu0 %v2136
    %3427 = vmatpush.bf16.msra.mxu0 %v2128
    %3428 = vmatpush.bf16.msra.mxu0 %v2120
    %3429 = vmatpush.bf16.msra.mxu0 %v2112
    %3430 = vmatpush.bf16.msra.mxu0 %v2104
    %3431 = vmatpush.bf16.msra.mxu0 %v2096
    %3432 = vmatmul.bf16.gmra.mxu0 %v543
    %v3433 = vpop.f32.mrf.mxu0
    %v3434 = vadd.f32 %v3420, %v3433
    %v3435 = vpop.f32.mrf.mxu0
    %v3436 = vadd.f32 %v3422, %v3435
    %3437 = vdwg.mxu0
    %3438 = vmatpush.bf16.msra.mxu0 %v2216
    %3439 = vmatpush.bf16.msra.mxu0 %v2208
    %3440 = vmatpush.bf16.msra.mxu0 %v2200
    %3441 = vmatpush.bf16.msra.mxu0 %v2192
    %3442 = vmatpush.bf16.msra.mxu0 %v2184
    %3443 = vmatpush.bf16.msra.mxu0 %v2176
    %3444 = vmatpush.bf16.msra.mxu0 %v2168
    %3445 = vmatpush.bf16.msra.mxu0 %v2160
    %3446 = vmatmul.bf16.gmra.mxu0 %v544
    %v3447 = vpop.f32.mrf.mxu0
    %v3448 = vadd.f32 %v3434, %v3447
    %v3449 = vpop.f32.mrf.mxu0
    %v3450 = vadd.f32 %v3436, %v3449
    %3451 = vdwg.mxu0
    %3452 = vmatpush.bf16.msra.mxu0 %v2280
    %3453 = vmatpush.bf16.msra.mxu0 %v2272
    %3454 = vmatpush.bf16.msra.mxu0 %v2264
    %3455 = vmatpush.bf16.msra.mxu0 %v2256
    %3456 = vmatpush.bf16.msra.mxu0 %v2248
    %3457 = vmatpush.bf16.msra.mxu0 %v2240
    %3458 = vmatpush.bf16.msra.mxu0 %v2232
    %3459 = vmatpush.bf16.msra.mxu0 %v2224
    %3460 = vmatmul.bf16.gmra.mxu0 %v545
    %v3461 = vpop.f32.mrf.mxu0
    %v3462 = vadd.f32 %v3448, %v3461
    %v3463 = vpop.f32.mrf.mxu0
    %v3464 = vadd.f32 %v3450, %v3463
    %3465 = vdwg.mxu0
    %3466 = vmatpush.bf16.msra.mxu0 %v2344
    %3467 = vmatpush.bf16.msra.mxu0 %v2336
    %3468 = vmatpush.bf16.msra.mxu0 %v2328
    %3469 = vmatpush.bf16.msra.mxu0 %v2320
    %3470 = vmatpush.bf16.msra.mxu0 %v2312
    %3471 = vmatpush.bf16.msra.mxu0 %v2304
    %3472 = vmatpush.bf16.msra.mxu0 %v2296
    %3473 = vmatpush.bf16.msra.mxu0 %v2288
    %3474 = vmatmul.bf16.gmra.mxu0 %v546
    %v3475 = vpop.f32.mrf.mxu0
    %v3476 = vadd.f32 %v3462, %v3475
    %v3477 = vpop.f32.mrf.mxu0
    %v3478 = vadd.f32 %v3464, %v3477
    %3479 = vdwg.mxu0
    %3480 = vmatpush.bf16.msra.mxu0 %v1961
    %3481 = vmatpush.bf16.msra.mxu0 %v1953
    %3482 = vmatpush.bf16.msra.mxu0 %v1945
    %3483 = vmatpush.bf16.msra.mxu0 %v1937
    %3484 = vmatpush.bf16.msra.mxu0 %v1929
    %3485 = vmatpush.bf16.msra.mxu0 %v1921
    %3486 = vmatpush.bf16.msra.mxu0 %v1913
    %3487 = vmatpush.bf16.msra.mxu0 %v1905
    %3488 = vmatmul.bf16.gmra.mxu0 %v540
    %v3489 = vpop.f32.mrf.mxu0
    %v3490 = vadd.f32 0.0, %v3489
    %v3491 = vpop.f32.mrf.mxu0
    %v3492 = vadd.f32 0.0, %v3491
    %3493 = vdwg.mxu0
    %3494 = vmatpush.bf16.msra.mxu0 %v2025
    %3495 = vmatpush.bf16.msra.mxu0 %v2017
    %3496 = vmatpush.bf16.msra.mxu0 %v2009
    %3497 = vmatpush.bf16.msra.mxu0 %v2001
    %3498 = vmatpush.bf16.msra.mxu0 %v1993
    %3499 = vmatpush.bf16.msra.mxu0 %v1985
    %3500 = vmatpush.bf16.msra.mxu0 %v1977
    %3501 = vmatpush.bf16.msra.mxu0 %v1969
    %3502 = vmatmul.bf16.gmra.mxu0 %v541
    %v3503 = vpop.f32.mrf.mxu0
    %v3504 = vadd.f32 %v3490, %v3503
    %v3505 = vpop.f32.mrf.mxu0
    %v3506 = vadd.f32 %v3492, %v3505
    %3507 = vdwg.mxu0
    %3508 = vmatpush.bf16.msra.mxu0 %v2089
    %3509 = vmatpush.bf16.msra.mxu0 %v2081
    %3510 = vmatpush.bf16.msra.mxu0 %v2073
    %3511 = vmatpush.bf16.msra.mxu0 %v2065
    %3512 = vmatpush.bf16.msra.mxu0 %v2057
    %3513 = vmatpush.bf16.msra.mxu0 %v2049
    %3514 = vmatpush.bf16.msra.mxu0 %v2041
    %3515 = vmatpush.bf16.msra.mxu0 %v2033
    %3516 = vmatmul.bf16.gmra.mxu0 %v542
    %v3517 = vpop.f32.mrf.mxu0
    %v3518 = vadd.f32 %v3504, %v3517
    %v3519 = vpop.f32.mrf.mxu0
    %v3520 = vadd.f32 %v3506, %v3519
    %3521 = vdwg.mxu0
    %3522 = vmatpush.bf16.msra.mxu0 %v2153
    %3523 = vmatpush.bf16.msra.mxu0 %v2145
    %3524 = vmatpush.bf16.msra.mxu0 %v2137
    %3525 = vmatpush.bf16.msra.mxu0 %v2129
    %3526 = vmatpush.bf16.msra.mxu0 %v2121
    %3527 = vmatpush.bf16.msra.mxu0 %v2113
    %3528 = vmatpush.bf16.msra.mxu0 %v2105
    %3529 = vmatpush.bf16.msra.mxu0 %v2097
    %3530 = vmatmul.bf16.gmra.mxu0 %v543
    %v3531 = vpop.f32.mrf.mxu0
    %v3532 = vadd.f32 %v3518, %v3531
    %v3533 = vpop.f32.mrf.mxu0
    %v3534 = vadd.f32 %v3520, %v3533
    %3535 = vdwg.mxu0
    %3536 = vmatpush.bf16.msra.mxu0 %v2217
    %3537 = vmatpush.bf16.msra.mxu0 %v2209
    %3538 = vmatpush.bf16.msra.mxu0 %v2201
    %3539 = vmatpush.bf16.msra.mxu0 %v2193
    %3540 = vmatpush.bf16.msra.mxu0 %v2185
    %3541 = vmatpush.bf16.msra.mxu0 %v2177
    %3542 = vmatpush.bf16.msra.mxu0 %v2169
    %3543 = vmatpush.bf16.msra.mxu0 %v2161
    %3544 = vmatmul.bf16.gmra.mxu0 %v544
    %v3545 = vpop.f32.mrf.mxu0
    %v3546 = vadd.f32 %v3532, %v3545
    %v3547 = vpop.f32.mrf.mxu0
    %v3548 = vadd.f32 %v3534, %v3547
    %3549 = vdwg.mxu0
    %3550 = vmatpush.bf16.msra.mxu0 %v2281
    %3551 = vmatpush.bf16.msra.mxu0 %v2273
    %3552 = vmatpush.bf16.msra.mxu0 %v2265
    %3553 = vmatpush.bf16.msra.mxu0 %v2257
    %3554 = vmatpush.bf16.msra.mxu0 %v2249
    %3555 = vmatpush.bf16.msra.mxu0 %v2241
    %3556 = vmatpush.bf16.msra.mxu0 %v2233
    %3557 = vmatpush.bf16.msra.mxu0 %v2225
    %3558 = vmatmul.bf16.gmra.mxu0 %v545
    %v3559 = vpop.f32.mrf.mxu0
    %v3560 = vadd.f32 %v3546, %v3559
    %v3561 = vpop.f32.mrf.mxu0
    %v3562 = vadd.f32 %v3548, %v3561
    %3563 = vdwg.mxu0
    %3564 = vmatpush.bf16.msra.mxu0 %v2345
    %3565 = vmatpush.bf16.msra.mxu0 %v2337
    %3566 = vmatpush.bf16.msra.mxu0 %v2329
    %3567 = vmatpush.bf16.msra.mxu0 %v2321
    %3568 = vmatpush.bf16.msra.mxu0 %v2313
    %3569 = vmatpush.bf16.msra.mxu0 %v2305
    %3570 = vmatpush.bf16.msra.mxu0 %v2297
    %3571 = vmatpush.bf16.msra.mxu0 %v2289
    %3572 = vmatmul.bf16.gmra.mxu0 %v546
    %v3573 = vpop.f32.mrf.mxu0
    %v3574 = vadd.f32 %v3560, %v3573
    %v3575 = vpop.f32.mrf.mxu0
    %v3576 = vadd.f32 %v3562, %v3575
    %3577 = vdwg.mxu0
    %v3578 = vmax.f32 %v2888, 0.0
    %v3579 = vmax.f32 %v2986, 0.0
    %v3580 = vmax.f32 %v3084, 0.0
    %v3581 = vmax.f32 %v3182, 0.0
    %v3582 = vmax.f32 %v3280, 0.0
    %v3583 = vmax.f32 %v3378, 0.0
    %v3584 = vmax.f32 %v3476, 0.0
    %v3585 = vmax.f32 %v3574, 0.0
    %v3586 = vmax.f32 %v2890, 0.0
    %v3587 = vmax.f32 %v2988, 0.0
    %v3588 = vmax.f32 %v3086, 0.0
    %v3589 = vmax.f32 %v3184, 0.0
    %v3590 = vmax.f32 %v3282, 0.0
    %v3591 = vmax.f32 %v3380, 0.0
    %v3592 = vmax.f32 %v3478, 0.0
    %v3593 = vmax.f32 %v3576, 0.0
    %v3594 = vmul.f32 %v3578, 0.25
    %v3595 = vmul.f32 %v3579, 0.25
    %v3596 = vmul.f32 %v3580, 0.25
    %v3597 = vmul.f32 %v3581, 0.25
    %v3598 = vmul.f32 %v3582, 0.25
    %v3599 = vmul.f32 %v3583, 0.25
    %v3600 = vmul.f32 %v3584, 0.25
    %v3601 = vmul.f32 %v3585, 0.25
    %v3602 = vmul.f32 %v3586, 0.25
    %v3603 = vmul.f32 %v3587, 0.25
    %v3604 = vmul.f32 %v3588, 0.25
    %v3605 = vmul.f32 %v3589, 0.25
    %v3606 = vmul.f32 %v3590, 0.25
    %v3607 = vmul.f32 %v3591, 0.25
    %v3608 = vmul.f32 %v3592, 0.25
    %v3609 = vmul.f32 %v3593, 0.25
    %v3610 = vfloor.f32 %v3594
    %v3611 = vfloor.f32 %v3595
    %v3612 = vfloor.f32 %v3596
    %v3613 = vfloor.f32 %v3597
    %v3614 = vfloor.f32 %v3598
    %v3615 = vfloor.f32 %v3599
    %v3616 = vfloor.f32 %v3600
    %v3617 = vfloor.f32 %v3601
    %v3618 = vfloor.f32 %v3602
    %v3619 = vfloor.f32 %v3603
    %v3620 = vfloor.f32 %v3604
    %v3621 = vfloor.f32 %v3605
    %v3622 = vfloor.f32 %v3606
    %v3623 = vfloor.f32 %v3607
    %v3624 = vfloor.f32 %v3608
    %v3625 = vfloor.f32 %v3609
    %v3626 = vmin.f32 %v3610, 255.0
    %v3627 = vmin.f32 %v3611, 255.0
    %v3628 = vmin.f32 %v3612, 255.0
    %v3629 = vmin.f32 %v3613, 255.0
    %v3630 = vmin.f32 %v3614, 255.0
    %v3631 = vmin.f32 %v3615, 255.0
    %v3632 = vmin.f32 %v3616, 255.0
    %v3633 = vmin.f32 %v3617, 255.0
    %v3634 = vmin.f32 %v3618, 255.0
    %v3635 = vmin.f32 %v3619, 255.0
    %v3636 = vmin.f32 %v3620, 255.0
    %v3637 = vmin.f32 %v3621, 255.0
    %v3638 = vmin.f32 %v3622, 255.0
    %v3639 = vmin.f32 %v3623, 255.0
    %v3640 = vmin.f32 %v3624, 255.0
    %v3641 = vmin.f32 %v3625, 255.0
    %v3642 = vpack.c.bf16 %v3634, %v3626
    %v3643 = vpack.c.bf16 %v3635, %v3627
    %v3644 = vpack.c.bf16 %v3636, %v3628
    %v3645 = vpack.c.bf16 %v3637, %v3629
    %v3646 = vpack.c.bf16 %v3638, %v3630
    %v3647 = vpack.c.bf16 %v3639, %v3631
    %v3648 = vpack.c.bf16 %v3640, %v3632
    %v3649 = vpack.c.bf16 %v3641, %v3633
    %v3650 = vld [vmem:[#allocation7] sm:$0xf]
    %v3651 = vld [vmem:[#allocation7 + $0x4] sm:$0xf]
    %v3652 = vld [vmem:[#allocation7 + $0x8] sm:$0xf]
    %v3653 = vld [vmem:[#allocation7 + $0xc] sm:$0xf]
    %v3654 = vld [vmem:[#allocation7 + $0x10] sm:$0xf]
    %v3655 = vld [vmem:[#allocation7 + $0x14] sm:$0xf]
    %v3656 = vld [vmem:[#allocation7 + $0x18] sm:$0xf]
    %v3657 = vld [vmem:[#allocation7 + $0x1c] sm:$0xf]
    %v3658 = vld [vmem:[#allocation7 + $0x20] sm:$0xf]
    %v3659 = vld [vmem:[#allocation7 + $0x24] sm:$0xf]
    %v3660 = vld [vmem:[#allocation7 + $0x28] sm:$0xf]
    %v3661 = vld [vmem:[#allocation7 + $0x2c] sm:$0xf]
    %v3662 = vld [vmem:[#allocation7 + $0x30] sm:$0xf]
    %v3663 = vld [vmem:[#allocation7 + $0x34] sm:$0xf]
    %v3664 = vld [vmem:[#allocation7 + $0x38] sm:$0xf]
    %v3665 = vld [vmem:[#allocation7 + $0x3c] sm:$0xf]
    %v3666 = vld [vmem:[#allocation7 + $0x40] sm:$0xf]
    %v3667 = vld [vmem:[#allocation7 + $0x44] sm:$0xf]
    %v3668 = vld [vmem:[#allocation7 + $0x48] sm:$0xf]
    %v3669 = vld [vmem:[#allocation7 + $0x4c] sm:$0xf]
    %v3670 = vld [vmem:[#allocation7 + $0x50] sm:$0xf]
    %v3671 = vld [vmem:[#allocation7 + $0x54] sm:$0xf]
    %v3672 = vld [vmem:[#allocation7 + $0x58] sm:$0xf]
    %v3673 = vld [vmem:[#allocation7 + $0x5c] sm:$0xf]
    %v3674 = vld [vmem:[#allocation7 + $0x60] sm:$0xf]
    %v3675 = vld [vmem:[#allocation7 + $0x64] sm:$0xf]
    %v3676 = vld [vmem:[#allocation7 + $0x68] sm:$0xf]
    %v3677 = vld [vmem:[#allocation7 + $0x6c] sm:$0xf]
    %v3678 = vld [vmem:[#allocation7 + $0x70] sm:$0xf]
    %v3679 = vld [vmem:[#allocation7 + $0x74] sm:$0xf]
    %v3680 = vld [vmem:[#allocation7 + $0x78] sm:$0xf]
    %v3681 = vld [vmem:[#allocation7 + $0x7c] sm:$0xf]
    %v3682 = vld [vmem:[#allocation7 + $0x80] sm:$0xf]
    %v3683 = vld [vmem:[#allocation7 + $0x84] sm:$0xf]
    %v3684 = vld [vmem:[#allocation7 + $0x88] sm:$0xf]
    %v3685 = vld [vmem:[#allocation7 + $0x8c] sm:$0xf]
    %v3686 = vld [vmem:[#allocation7 + $0x90] sm:$0xf]
    %v3687 = vld [vmem:[#allocation7 + $0x94] sm:$0xf]
    %v3688 = vld [vmem:[#allocation7 + $0x98] sm:$0xf]
    %v3689 = vld [vmem:[#allocation7 + $0x9c] sm:$0xf]
    %v3690 = vld [vmem:[#allocation7 + $0xa0] sm:$0xf]
    %v3691 = vld [vmem:[#allocation7 + $0xa4] sm:$0xf]
    %v3692 = vld [vmem:[#allocation7 + $0xa8] sm:$0xf]
    %v3693 = vld [vmem:[#allocation7 + $0xac] sm:$0xf]
    %v3694 = vld [vmem:[#allocation7 + $0xb0] sm:$0xf]
    %v3695 = vld [vmem:[#allocation7 + $0xb4] sm:$0xf]
    %v3696 = vld [vmem:[#allocation7 + $0xb8] sm:$0xf]
    %v3697 = vld [vmem:[#allocation7 + $0xbc] sm:$0xf]
    %v3698 = vld [vmem:[#allocation7 + $0xc0] sm:$0xf]
    %v3699 = vld [vmem:[#allocation7 + $0xc4] sm:$0xf]
    %v3700 = vld [vmem:[#allocation7 + $0xc8] sm:$0xf]
    %v3701 = vld [vmem:[#allocation7 + $0xcc] sm:$0xf]
    %v3702 = vld [vmem:[#allocation7 + $0xd0] sm:$0xf]
    %v3703 = vld [vmem:[#allocation7 + $0xd4] sm:$0xf]
    %v3704 = vld [vmem:[#allocation7 + $0xd8] sm:$0xf]
    %v3705 = vld [vmem:[#allocation7 + $0xdc] sm:$0xf]
    %v3706 = vld [vmem:[#allocation7 + $0xe0] sm:$0xf]
    %v3707 = vld [vmem:[#allocation7 + $0xe4] sm:$0xf]
    %v3708 = vld [vmem:[#allocation7 + $0xe8] sm:$0xf]
    %v3709 = vld [vmem:[#allocation7 + $0xec] sm:$0xf]
    %v3710 = vld [vmem:[#allocation7 + $0xf0] sm:$0xf]
    %v3711 = vld [vmem:[#allocation7 + $0xf4] sm:$0xf]
    %v3712 = vld [vmem:[#allocation7 + $0xf8] sm:$0xf]
    %v3713 = vld [vmem:[#allocation7 + $0xfc] sm:$0xf]
    %v3714 = vld [vmem:[#allocation7 + $0x100] sm:$0xf]
    %v3715 = vld [vmem:[#allocation7 + $0x104] sm:$0xf]
    %v3716 = vld [vmem:[#allocation7 + $0x108] sm:$0xf]
    %v3717 = vld [vmem:[#allocation7 + $0x10c] sm:$0xf]
    %v3718 = vld [vmem:[#allocation7 + $0x110] sm:$0xf]
    %v3719 = vld [vmem:[#allocation7 + $0x114] sm:$0xf]
    %v3720 = vld [vmem:[#allocation7 + $0x118] sm:$0xf]
    %v3721 = vld [vmem:[#allocation7 + $0x11c] sm:$0xf]
    %v3722 = vld [vmem:[#allocation7 + $0x120] sm:$0xf]
    %v3723 = vld [vmem:[#allocation7 + $0x124] sm:$0xf]
    %v3724 = vld [vmem:[#allocation7 + $0x128] sm:$0xf]
    %v3725 = vld [vmem:[#allocation7 + $0x12c] sm:$0xf]
    %v3726 = vld [vmem:[#allocation7 + $0x130] sm:$0xf]
    %v3727 = vld [vmem:[#allocation7 + $0x134] sm:$0xf]
    %v3728 = vld [vmem:[#allocation7 + $0x138] sm:$0xf]
    %v3729 = vld [vmem:[#allocation7 + $0x13c] sm:$0xf]
    %v3730 = vld [vmem:[#allocation7 + $0x140] sm:$0xf]
    %v3731 = vld [vmem:[#allocation7 + $0x144] sm:$0xf]
    %v3732 = vld [vmem:[#allocation7 + $0x148] sm:$0xf]
    %v3733 = vld [vmem:[#allocation7 + $0x14c] sm:$0xf]
    %v3734 = vld [vmem:[#allocation7 + $0x150] sm:$0xf]
    %v3735 = vld [vmem:[#allocation7 + $0x154] sm:$0xf]
    %v3736 = vld [vmem:[#allocation7 + $0x158] sm:$0xf]
    %v3737 = vld [vmem:[#allocation7 + $0x15c] sm:$0xf]
    %v3738 = vld [vmem:[#allocation7 + $0x160] sm:$0xf]
    %v3739 = vld [vmem:[#allocation7 + $0x164] sm:$0xf]
    %v3740 = vld [vmem:[#allocation7 + $0x168] sm:$0xf]
    %v3741 = vld [vmem:[#allocation7 + $0x16c] sm:$0xf]
    %v3742 = vld [vmem:[#allocation7 + $0x170] sm:$0xf]
    %v3743 = vld [vmem:[#allocation7 + $0x174] sm:$0xf]
    %v3744 = vld [vmem:[#allocation7 + $0x178] sm:$0xf]
    %v3745 = vld [vmem:[#allocation7 + $0x17c] sm:$0xf]
    %v3746 = vld [vmem:[#allocation7 + $0x180] sm:$0xf]
    %v3747 = vld [vmem:[#allocation7 + $0x184] sm:$0xf]
    %v3748 = vld [vmem:[#allocation7 + $0x188] sm:$0xf]
    %v3749 = vld [vmem:[#allocation7 + $0x18c] sm:$0xf]
    %v3750 = vld [vmem:[#allocation7 + $0x190] sm:$0xf]
    %v3751 = vld [vmem:[#allocation7 + $0x194] sm:$0xf]
    %v3752 = vld [vmem:[#allocation7 + $0x198] sm:$0xf]
    %v3753 = vld [vmem:[#allocation7 + $0x19c] sm:$0xf]
    %v3754 = vld [vmem:[#allocation7 + $0x1a0] sm:$0xf]
    %v3755 = vld [vmem:[#allocation7 + $0x1a4] sm:$0xf]
    %v3756 = vld [vmem:[#allocation7 + $0x1a8] sm:$0xf]
    %v3757 = vld [vmem:[#allocation7 + $0x1ac] sm:$0xf]
    %v3758 = vld [vmem:[#allocation7 + $0x1b0] sm:$0xf]
    %v3759 = vld [vmem:[#allocation7 + $0x1b4] sm:$0xf]
    %v3760 = vld [vmem:[#allocation7 + $0x1b8] sm:$0xf]
    %v3761 = vld [vmem:[#allocation7 + $0x1bc] sm:$0xf]
    %v3762 = vld [vmem:[#allocation7 + $0x1c0] sm:$0xf]
    %v3763 = vld [vmem:[#allocation7 + $0x1c4] sm:$0xf]
    %v3764 = vld [vmem:[#allocation7 + $0x1c8] sm:$0xf]
    %v3765 = vld [vmem:[#allocation7 + $0x1cc] sm:$0xf]
    %v3766 = vld [vmem:[#allocation7 + $0x1d0] sm:$0xf]
    %v3767 = vld [vmem:[#allocation7 + $0x1d4] sm:$0xf]
    %v3768 = vld [vmem:[#allocation7 + $0x1d8] sm:$0xf]
    %v3769 = vld [vmem:[#allocation7 + $0x1dc] sm:$0xf]
    %v3770 = vld [vmem:[#allocation7 + $0x1e0] sm:$0xf]
    %v3771 = vld [vmem:[#allocation7 + $0x1e4] sm:$0xf]
    %v3772 = vld [vmem:[#allocation7 + $0x1e8] sm:$0xf]
    %v3773 = vld [vmem:[#allocation7 + $0x1ec] sm:$0xf]
    %v3774 = vld [vmem:[#allocation7 + $0x1f0] sm:$0xf]
    %v3775 = vld [vmem:[#allocation7 + $0x1f4] sm:$0xf]
    %v3776 = vld [vmem:[#allocation7 + $0x1f8] sm:$0xf]
    %v3777 = vld [vmem:[#allocation7 + $0x1fc] sm:$0xf]
    %v3906 = vunpack.c.l.b16 %v3650
    %v3907 = vunpack.c.l.b16 %v3651
    %v3908 = vunpack.c.l.b16 %v3652
    %v3909 = vunpack.c.l.b16 %v3653
    %v3910 = vunpack.c.l.b16 %v3654
    %v3911 = vunpack.c.l.b16 %v3655
    %v3912 = vunpack.c.l.b16 %v3656
    %v3913 = vunpack.c.l.b16 %v3657
    %v3914 = vunpack.c.l.b16 %v3658
    %v3915 = vunpack.c.l.b16 %v3659
    %v3916 = vunpack.c.l.b16 %v3660
    %v3917 = vunpack.c.l.b16 %v3661
    %v3918 = vunpack.c.l.b16 %v3662
    %v3919 = vunpack.c.l.b16 %v3663
    %v3920 = vunpack.c.l.b16 %v3664
    %v3921 = vunpack.c.l.b16 %v3665
    %v3922 = vunpack.c.l.b16 %v3666
    %v3923 = vunpack.c.l.b16 %v3667
    %v3924 = vunpack.c.l.b16 %v3668
    %v3925 = vunpack.c.l.b16 %v3669
    %v3926 = vunpack.c.l.b16 %v3670
    %v3927 = vunpack.c.l.b16 %v3671
    %v3928 = vunpack.c.l.b16 %v3672
    %v3929 = vunpack.c.l.b16 %v3673
    %v3930 = vunpack.c.l.b16 %v3674
    %v3931 = vunpack.c.l.b16 %v3675
    %v3932 = vunpack.c.l.b16 %v3676
    %v3933 = vunpack.c.l.b16 %v3677
    %v3934 = vunpack.c.l.b16 %v3678
    %v3935 = vunpack.c.l.b16 %v3679
    %v3936 = vunpack.c.l.b16 %v3680
    %v3937 = vunpack.c.l.b16 %v3681
    %v3938 = vunpack.c.l.b16 %v3682
    %v3939 = vunpack.c.l.b16 %v3683
    %v3940 = vunpack.c.l.b16 %v3684
    %v3941 = vunpack.c.l.b16 %v3685
    %v3942 = vunpack.c.l.b16 %v3686
    %v3943 = vunpack.c.l.b16 %v3687
    %v3944 = vunpack.c.l.b16 %v3688
    %v3945 = vunpack.c.l.b16 %v3689
    %v3946 = vunpack.c.l.b16 %v3690
    %v3947 = vunpack.c.l.b16 %v3691
    %v3948 = vunpack.c.l.b16 %v3692
    %v3949 = vunpack.c.l.b16 %v3693
    %v3950 = vunpack.c.l.b16 %v3694
    %v3951 = vunpack.c.l.b16 %v3695
    %v3952 = vunpack.c.l.b16 %v3696
    %v3953 = vunpack.c.l.b16 %v3697
    %v3954 = vunpack.c.l.b16 %v3698
    %v3955 = vunpack.c.l.b16 %v3699
    %v3956 = vunpack.c.l.b16 %v3700
    %v3957 = vunpack.c.l.b16 %v3701
    %v3958 = vunpack.c.l.b16 %v3702
    %v3959 = vunpack.c.l.b16 %v3703
    %v3960 = vunpack.c.l.b16 %v3704
    %v3961 = vunpack.c.l.b16 %v3705
    %v3962 = vunpack.c.l.b16 %v3706
    %v3963 = vunpack.c.l.b16 %v3707
    %v3964 = vunpack.c.l.b16 %v3708
    %v3965 = vunpack.c.l.b16 %v3709
    %v3966 = vunpack.c.l.b16 %v3710
    %v3967 = vunpack.c.l.b16 %v3711
    %v3968 = vunpack.c.l.b16 %v3712
    %v3969 = vunpack.c.l.b16 %v3713
    %v3970 = vunpack.c.l.b16 %v3714
    %v3971 = vunpack.c.l.b16 %v3715
    %v3972 = vunpack.c.l.b16 %v3716
    %v3973 = vunpack.c.l.b16 %v3717
    %v3974 = vunpack.c.l.b16 %v3718
    %v3975 = vunpack.c.l.b16 %v3719
    %v3976 = vunpack.c.l.b16 %v3720
    %v3977 = vunpack.c.l.b16 %v3721
    %v3978 = vunpack.c.l.b16 %v3722
    %v3979 = vunpack.c.l.b16 %v3723
    %v3980 = vunpack.c.l.b16 %v3724
    %v3981 = vunpack.c.l.b16 %v3725
    %v3982 = vunpack.c.l.b16 %v3726
    %v3983 = vunpack.c.l.b16 %v3727
    %v3984 = vunpack.c.l.b16 %v3728
    %v3985 = vunpack.c.l.b16 %v3729
    %v3986 = vunpack.c.l.b16 %v3730
    %v3987 = vunpack.c.l.b16 %v3731
    %v3988 = vunpack.c.l.b16 %v3732
    %v3989 = vunpack.c.l.b16 %v3733
    %v3990 = vunpack.c.l.b16 %v3734
    %v3991 = vunpack.c.l.b16 %v3735
    %v3992 = vunpack.c.l.b16 %v3736
    %v3993 = vunpack.c.l.b16 %v3737
    %v3994 = vunpack.c.l.b16 %v3738
    %v3995 = vunpack.c.l.b16 %v3739
    %v3996 = vunpack.c.l.b16 %v3740
    %v3997 = vunpack.c.l.b16 %v3741
    %v3998 = vunpack.c.l.b16 %v3742
    %v3999 = vunpack.c.l.b16 %v3743
    %v4000 = vunpack.c.l.b16 %v3744
    %v4001 = vunpack.c.l.b16 %v3745
    %v4002 = vunpack.c.l.b16 %v3746
    %v4003 = vunpack.c.l.b16 %v3747
    %v4004 = vunpack.c.l.b16 %v3748
    %v4005 = vunpack.c.l.b16 %v3749
    %v4006 = vunpack.c.l.b16 %v3750
    %v4007 = vunpack.c.l.b16 %v3751
    %v4008 = vunpack.c.l.b16 %v3752
    %v4009 = vunpack.c.l.b16 %v3753
    %v4010 = vunpack.c.l.b16 %v3754
    %v4011 = vunpack.c.l.b16 %v3755
    %v4012 = vunpack.c.l.b16 %v3756
    %v4013 = vunpack.c.l.b16 %v3757
    %v4014 = vunpack.c.l.b16 %v3758
    %v4015 = vunpack.c.l.b16 %v3759
    %v4016 = vunpack.c.l.b16 %v3760
    %v4017 = vunpack.c.l.b16 %v3761
    %v4018 = vunpack.c.l.b16 %v3762
    %v4019 = vunpack.c.l.b16 %v3763
    %v4020 = vunpack.c.l.b16 %v3764
    %v4021 = vunpack.c.l.b16 %v3765
    %v4022 = vunpack.c.l.b16 %v3766
    %v4023 = vunpack.c.l.b16 %v3767
    %v4024 = vunpack.c.l.b16 %v3768
    %v4025 = vunpack.c.l.b16 %v3769
    %v4026 = vunpack.c.l.b16 %v3770
    %v4027 = vunpack.c.l.b16 %v3771
    %v4028 = vunpack.c.l.b16 %v3772
    %v4029 = vunpack.c.l.b16 %v3773
    %v4030 = vunpack.c.l.b16 %v3774
    %v4031 = vunpack.c.l.b16 %v3775
    %v4032 = vunpack.c.l.b16 %v3776
    %v4033 = vunpack.c.l.b16 %v3777
    %v4034 = vpack.c.b16 %v3907, %v3906
    %v4035 = vpack.c.b16 %v3909, %v3908
    %v4036 = vpack.c.b16 %v3911, %v3910
    %v4037 = vpack.c.b16 %v3913, %v3912
    %v4038 = vpack.c.b16 %v3915, %v3914
    %v4039 = vpack.c.b16 %v3917, %v3916
    %v4040 = vpack.c.b16 %v3919, %v3918
    %v4041 = vpack.c.b16 %v3921, %v3920
    %v4042 = vpack.c.b16 %v3923, %v3922
    %v4043 = vpack.c.b16 %v3925, %v3924
    %v4044 = vpack.c.b16 %v3927, %v3926
    %v4045 = vpack.c.b16 %v3929, %v3928
    %v4046 = vpack.c.b16 %v3931, %v3930
    %v4047 = vpack.c.b16 %v3933, %v3932
    %v4048 = vpack.c.b16 %v3935, %v3934
    %v4049 = vpack.c.b16 %v3937, %v3936
    %v4050 = vpack.c.b16 %v3939, %v3938
    %v4051 = vpack.c.b16 %v3941, %v3940
    %v4052 = vpack.c.b16 %v3943, %v3942
    %v4053 = vpack.c.b16 %v3945, %v3944
    %v4054 = vpack.c.b16 %v3947, %v3946
    %v4055 = vpack.c.b16 %v3949, %v3948
    %v4056 = vpack.c.b16 %v3951, %v3950
    %v4057 = vpack.c.b16 %v3953, %v3952
    %v4058 = vpack.c.b16 %v3955, %v3954
    %v4059 = vpack.c.b16 %v3957, %v3956
    %v4060 = vpack.c.b16 %v3959, %v3958
    %v4061 = vpack.c.b16 %v3961, %v3960
    %v4062 = vpack.c.b16 %v3963, %v3962
    %v4063 = vpack.c.b16 %v3965, %v3964
    %v4064 = vpack.c.b16 %v3967, %v3966
    %v4065 = vpack.c.b16 %v3969, %v3968
    %v4066 = vpack.c.b16 %v3971, %v3970
    %v4067 = vpack.c.b16 %v3973, %v3972
    %v4068 = vpack.c.b16 %v3975, %v3974
    %v4069 = vpack.c.b16 %v3977, %v3976
    %v4070 = vpack.c.b16 %v3979, %v3978
    %v4071 = vpack.c.b16 %v3981, %v3980
    %v4072 = vpack.c.b16 %v3983, %v3982
    %v4073 = vpack.c.b16 %v3985, %v3984
    %v4074 = vpack.c.b16 %v3987, %v3986
    %v4075 = vpack.c.b16 %v3989, %v3988
    %v4076 = vpack.c.b16 %v3991, %v3990
    %v4077 = vpack.c.b16 %v3993, %v3992
    %v4078 = vpack.c.b16 %v3995, %v3994
    %v4079 = vpack.c.b16 %v3997, %v3996
    %v4080 = vpack.c.b16 %v3999, %v3998
    %v4081 = vpack.c.b16 %v4001, %v4000
    %v4082 = vpack.c.b16 %v4003, %v4002
    %v4083 = vpack.c.b16 %v4005, %v4004
    %v4084 = vpack.c.b16 %v4007, %v4006
    %v4085 = vpack.c.b16 %v4009, %v4008
    %v4086 = vpack.c.b16 %v4011, %v4010
    %v4087 = vpack.c.b16 %v4013, %v4012
    %v4088 = vpack.c.b16 %v4015, %v4014
    %v4089 = vpack.c.b16 %v4017, %v4016
    %v4090 = vpack.c.b16 %v4019, %v4018
    %v4091 = vpack.c.b16 %v4021, %v4020
    %v4092 = vpack.c.b16 %v4023, %v4022
    %v4093 = vpack.c.b16 %v4025, %v4024
    %v4094 = vpack.c.b16 %v4027, %v4026
    %v4095 = vpack.c.b16 %v4029, %v4028
    %v4096 = vpack.c.b16 %v4031, %v4030
    %v4097 = vpack.c.b16 %v4033, %v4032
    %4162 = vmatpush.bf16.msra.mxu0 %v4041
    %4163 = vmatpush.bf16.msra.mxu0 %v4040
    %4164 = vmatpush.bf16.msra.mxu0 %v4039
    %4165 = vmatpush.bf16.msra.mxu0 %v4038
    %4166 = vmatpush.bf16.msra.mxu0 %v4037
    %4167 = vmatpush.bf16.msra.mxu0 %v4036
    %4168 = vmatpush.bf16.msra.mxu0 %v4035
    %4169 = vmatpush.bf16.msra.mxu0 %v4034
    %4170 = vmatmul.bf16.gmra.mxu0 %v3642
    %v4171 = vpop.f32.mrf.mxu0
    %v4172 = vadd.f32 0.0, %v4171
    %v4173 = vpop.f32.mrf.mxu0
    %v4174 = vadd.f32 0.0, %v4173
    %4175 = vdwg.mxu0
    %4176 = vmatpush.bf16.msra.mxu0 %v4049
    %4177 = vmatpush.bf16.msra.mxu0 %v4048
    %4178 = vmatpush.bf16.msra.mxu0 %v4047
    %4179 = vmatpush.bf16.msra.mxu0 %v4046
    %4180 = vmatpush.bf16.msra.mxu0 %v4045
    %4181 = vmatpush.bf16.msra.mxu0 %v4044
    %4182 = vmatpush.bf16.msra.mxu0 %v4043
    %4183 = vmatpush.bf16.msra.mxu0 %v4042
    %4184 = vmatmul.bf16.gmra.mxu0 %v3643
    %v4185 = vpop.f32.mrf.mxu0
    %v4186 = vadd.f32 %v4172, %v4185
    %v4187 = vpop.f32.mrf.mxu0
    %v4188 = vadd.f32 %v4174, %v4187
    %4189 = vdwg.mxu0
    %4190 = vmatpush.bf16.msra.mxu0 %v4057
    %4191 = vmatpush.bf16.msra.mxu0 %v4056
    %4192 = vmatpush.bf16.msra.mxu0 %v4055
    %4193 = vmatpush.bf16.msra.mxu0 %v4054
    %4194 = vmatpush.bf16.msra.mxu0 %v4053
    %4195 = vmatpush.bf16.msra.mxu0 %v4052
    %4196 = vmatpush.bf16.msra.mxu0 %v4051
    %4197 = vmatpush.bf16.msra.mxu0 %v4050
    %4198 = vmatmul.bf16.gmra.mxu0 %v3644
    %v4199 = vpop.f32.mrf.mxu0
    %v4200 = vadd.f32 %v4186, %v4199
    %v4201 = vpop.f32.mrf.mxu0
    %v4202 = vadd.f32 %v4188, %v4201
    %4203 = vdwg.mxu0
    %4204 = vmatpush.bf16.msra.mxu0 %v4065
    %4205 = vmatpush.bf16.msra.mxu0 %v4064
    %4206 = vmatpush.bf16.msra.mxu0 %v4063
    %4207 = vmatpush.bf16.msra.mxu0 %v4062
    %4208 = vmatpush.bf16.msra.mxu0 %v4061
    %4209 = vmatpush.bf16.msra.mxu0 %v4060
    %4210 = vmatpush.bf16.msra.mxu0 %v4059
    %4211 = vmatpush.bf16.msra.mxu0 %v4058
    %4212 = vmatmul.bf16.gmra.mxu0 %v3645
    %v4213 = vpop.f32.mrf.mxu0
    %v4214 = vadd.f32 %v4200, %v4213
    %v4215 = vpop.f32.mrf.mxu0
    %v4216 = vadd.f32 %v4202, %v4215
    %4217 = vdwg.mxu0
    %4218 = vmatpush.bf16.msra.mxu0 %v4073
    %4219 = vmatpush.bf16.msra.mxu0 %v4072
    %4220 = vmatpush.bf16.msra.mxu0 %v4071
    %4221 = vmatpush.bf16.msra.mxu0 %v4070
    %4222 = vmatpush.bf16.msra.mxu0 %v4069
    %4223 = vmatpush.bf16.msra.mxu0 %v4068
    %4224 = vmatpush.bf16.msra.mxu0 %v4067
    %4225 = vmatpush.bf16.msra.mxu0 %v4066
    %4226 = vmatmul.bf16.gmra.mxu0 %v3646
    %v4227 = vpop.f32.mrf.mxu0
    %v4228 = vadd.f32 %v4214, %v4227
    %v4229 = vpop.f32.mrf.mxu0
    %v4230 = vadd.f32 %v4216, %v4229
    %4231 = vdwg.mxu0
    %4232 = vmatpush.bf16.msra.mxu0 %v4081
    %4233 = vmatpush.bf16.msra.mxu0 %v4080
    %4234 = vmatpush.bf16.msra.mxu0 %v4079
    %4235 = vmatpush.bf16.msra.mxu0 %v4078
    %4236 = vmatpush.bf16.msra.mxu0 %v4077
    %4237 = vmatpush.bf16.msra.mxu0 %v4076
    %4238 = vmatpush.bf16.msra.mxu0 %v4075
    %4239 = vmatpush.bf16.msra.mxu0 %v4074
    %4240 = vmatmul.bf16.gmra.mxu0 %v3647
    %v4241 = vpop.f32.mrf.mxu0
    %v4242 = vadd.f32 %v4228, %v4241
    %v4243 = vpop.f32.mrf.mxu0
    %v4244 = vadd.f32 %v4230, %v4243
    %4245 = vdwg.mxu0
    %4246 = vmatpush.bf16.msra.mxu0 %v4089
    %4247 = vmatpush.bf16.msra.mxu0 %v4088
    %4248 = vmatpush.bf16.msra.mxu0 %v4087
    %4249 = vmatpush.bf16.msra.mxu0 %v4086
    %4250 = vmatpush.bf16.msra.mxu0 %v4085
    %4251 = vmatpush.bf16.msra.mxu0 %v4084
    %4252 = vmatpush.bf16.msra.mxu0 %v4083
    %4253 = vmatpush.bf16.msra.mxu0 %v4082
    %4254 = vmatmul.bf16.gmra.mxu0 %v3648
    %v4255 = vpop.f32.mrf.mxu0
    %v4256 = vadd.f32 %v4242, %v4255
    %v4257 = vpop.f32.mrf.mxu0
    %v4258 = vadd.f32 %v4244, %v4257
    %4259 = vdwg.mxu0
    %4260 = vmatpush.bf16.msra.mxu0 %v4097
    %4261 = vmatpush.bf16.msra.mxu0 %v4096
    %4262 = vmatpush.bf16.msra.mxu0 %v4095
    %4263 = vmatpush.bf16.msra.mxu0 %v4094
    %4264 = vmatpush.bf16.msra.mxu0 %v4093
    %4265 = vmatpush.bf16.msra.mxu0 %v4092
    %4266 = vmatpush.bf16.msra.mxu0 %v4091
    %4267 = vmatpush.bf16.msra.mxu0 %v4090
    %4268 = vmatmul.bf16.gmra.mxu0 %v3649
    %v4269 = vpop.f32.mrf.mxu0
    %v4270 = vadd.f32 %v4256, %v4269
    %v4271 = vpop.f32.mrf.mxu0
    %v4272 = vadd.f32 %v4258, %v4271
    %4273 = vdwg.mxu0
    %4274 = vst [vmem:[#allocation8] sm:$0xff] %v4270
    %4275 = vst [vmem:[#allocation8 + $0x8] sm:$0xff] %v4272
    // Predicated region
    $region26: #{tpu_custom_call.1} parent=1 // pred_check
      _
    $region27: #{tpu_custom_call.1} parent=1 // pred_check_branch
      %4277 = sbr.rel (0) target = $region29
    $region28: #{tpu_custom_call.1} parent=1 // pred_region
      %4279 = vsyncadd [#allocation4], 0
      %s4280 = sshll.u32 [#allocation8], 4
      %s4281 = int_to_ptr.vmem [resolvable:$true] %s4280
      %s4282 = sshll.u32 %s3, 4
      %s4283 = int_to_ptr.hbm [resolvable:$true] %s4282
      %4288 = dma.vmem_to_hbm [thread:$0]  %s4281, 256, %s4283, [#allocation4], 128, 128, 8
    $region29: #{tpu_custom_call.1} parent=1 // pred_fallthru
      _
    // Predicated region
    $region30: #{tpu_custom_call.1} parent=1 // pred_check
      _
    $region31: #{tpu_custom_call.1} parent=1 // pred_check_branch
      %4290 = sbr.rel (0) target = $region33
    $region32: #{tpu_custom_call.1} parent=1 // pred_region
      %4292 = dma.done [#allocation4], 256
    $region33: #{tpu_custom_call.1} parent=1 // pred_fallthru
      _
    %4293 = vsyncpa [#allocation3], 1
    %4294 = vsyncpa [#allocation6], 1
    %4295 = vsyncpa [#allocation4], 1

</llo_original>
